<compile_context>
chip_gen: v7x
topology: tpu7x:2x2x1
jax: 0.10.0
libtpu: 0.0.40
codegen_flags: <defaults>
</compile_context>

<pallas_src>
import functools
import itertools

import numpy as np
import jax
import jax.numpy as jnp
from jax import lax
from jax.experimental import pallas as pl
from jax.experimental.pallas import tpu as pltpu

NEG_SLOPE = 0.2


def _round_up(x, m):
    return (x + m - 1) // m * m


def _fused_kernel(x_ref, w_ref, b_ref, m_ref, o_ref, xw_ref, *,
                  td_count, n_off_d, cin_p, cout, qh_n, qw_n, pw, qc, taps):
    """One grid step: `td_count` output d-planes of one batch element.

    x_ref : (Pd, Cin_p, S_p)   bf16  padded input volume for this batch (resident)
    w_ref : (PC, NOFF*Cin_p)   bf16  phase/tap-stacked weights (PC = 8*Cout)
    b_ref : (PC, 1)            f32   conv bias tiled over the 8 phases
    m_ref : (PC, 1)            f32   learnable multiplier tiled over the 8 phases
    o_ref : (Cout, TD*Qh*Qw)   f32   pooled output planes, compact NCDHW layout
    xw_ref: (NOFF*Cin_p, TLe)  bf16  scratch: tap-stacked shifted windows
    """
    dblk = pl.program_id(1)
    w = w_ref[...]
    b = b_ref[...]
    m = m_ref[...]
    for i in range(td_count):                              # static unroll over d-planes
        qd = dblk * td_count + i
        # Load the R distinct input d-planes once; build the tap-stacked window with
        # static lane-offset slices (stale lanes only ever land in garbage columns).
        planes = [x_ref[qd + dd] for dd in range(n_off_d)]  # each (Cin_p, S_p)
        for t, (doff, hw_base, width) in enumerate(taps):
            xw_ref[t * cin_p:(t + 1) * cin_p, 0:width] = \
                planes[doff][:, hw_base:hw_base + width]
        # Single MXU contraction over all taps and input channels (bf16 -> f32 acc).
        y = jnp.dot(w, xw_ref[...], preferred_element_type=jnp.float32)  # (PC, TLe)
        y = y + b                                           # conv bias
        y = jnp.maximum(y, y * NEG_SLOPE)                   # LeakyReLU #1
        y = y * m                                           # per-channel multiplier
        y = jnp.maximum(y, y * NEG_SLOPE)                   # LeakyReLU #2
        # MaxPool3d(2) == max over the 8 phase row-blocks (pairwise tree).
        p01 = jnp.maximum(y[0 * cout:1 * cout], y[1 * cout:2 * cout])
        p23 = jnp.maximum(y[2 * cout:3 * cout], y[3 * cout:4 * cout])
        p45 = jnp.maximum(y[4 * cout:5 * cout], y[5 * cout:6 * cout])
        p67 = jnp.maximum(y[6 * cout:7 * cout], y[7 * cout:8 * cout])
        r = jnp.maximum(jnp.maximum(p01, p23), jnp.maximum(p45, p67))   # (Cout, TLe)
        # Compact the extended rows (stride Pw) into dense Qh*Qw lanes and store.
        for row in range(qh_n):
            dst0 = i * qc + row * qw_n
            src0 = row * pw
            o_ref[:, dst0:dst0 + qw_n] = r[:, src0:src0 + qw_n]


def model_forward(x, weight, bias, multiplier, *, stride, padding, output_padding):
    """x: (N, Cin, D, H, W); weight: (Cin, Cout, K, K, K) (ConvTranspose3d layout)."""
    N, Cin, D, H, W = x.shape
    Cin_w, Cout, K, K2, K3 = weight.shape
    assert Cin_w == Cin and K2 == K and K3 == K
    assert stride == 2, "fused phase/max-pool path requires stride == 2 (== pool size)"
    assert 0 <= padding <= K - 1

    def outdim(n):
        return (n - 1) * stride - 2 * padding + K + output_padding

    Dout, Hout, Wout = outdim(D), outdim(H), outdim(W)
    assert Dout % 2 == 0 and Hout % 2 == 0 and Wout % 2 == 0, \
        "MaxPool3d(2) on odd conv-transpose outputs not supported by the fused path"
    Qd, Qh, Qw = Dout // 2, Hout // 2, Wout // 2

    # Phase decomposition (stride 2): output o = 2q + r gets contributions from input
    # index q + j with kernel tap k = -2*j + r + padding, 0 <= k < K.
    jmin = -((K - 1 - padding) // 2)
    jmax = (padding + 1) // 2
    R = jmax - jmin + 1                       # distinct input offsets per axis
    NOFF = R ** 3

    Pd, Ph, Pw = Qd + R - 1, Qh + R - 1, Qw + R - 1
    S_p = Ph * Pw                             # flattened (h, w) input-plane length
    Qc = Qh * Qw                              # compact pooled plane length
    Wext = Qh * Pw                            # extended plane width actually computed
    TLe = _round_up(Wext, 128)

    Cin_p = _round_up(Cin, 16)                # bf16 sublane tile
    PC = 8 * Cout
    CK = NOFF * Cin_p

    # ---- input: one fused transpose/pad/reshape pass, bf16, plane-leading layout ----
    def pads(Din, Q):
        lo = -jmin
        hi = (Q + R - 1) - Din - lo
        return lo, hi

    (lod, hid), (loh, hih), (low, hiw) = pads(D, Qd), pads(H, Qh), pads(W, Qw)
    xt = jnp.transpose(x.astype(jnp.bfloat16), (0, 2, 1, 3, 4))       # (N, D, Cin, H, W)
    xp = lax.pad(xt, jnp.array(0, dtype=xt.dtype),
                 [(0, 0, 0), (lod, hid, 0), (0, Cin_p - Cin, 0),
                  (loh, hih, 0), (low, hiw, 0)])                      # (N, Pd, Cin_p, Ph, Pw)
    xr = xp.reshape(N, Pd, Cin_p, S_p)

    # ---- static tap table + per-(phase, tap) weight gather into (PC, NOFF*Cin_p) ----
    taps = []
    for (td_, th_, tw_) in itertools.product(range(R), repeat=3):
        hw_base = th_ * Pw + tw_
        taps.append((td_, hw_base, min(Wext, S_p - hw_base)))

    kidx = np.zeros((8, NOFF), np.int32)
    vmask = np.zeros((8, NOFF), np.float32)
    for p_i, (rd, rh, rw) in enumerate(itertools.product((0, 1), repeat=3)):
        for t_i, (td_, th_, tw_) in enumerate(itertools.product(range(R), repeat=3)):
            ks, ok = [], True
            for t_ax, r_ax in ((td_, rd), (th_, rh), (tw_, rw)):
                k_ax = -2 * (t_ax + jmin) + r_ax + padding
                if 0 <= k_ax < K:
                    ks.append(k_ax)
                else:
                    ok = False
                    break
            if ok:
                kidx[p_i, t_i] = (ks[0] * K + ks[1]) * K + ks[2]
                vmask[p_i, t_i] = 1.0

    w_oc = jnp.transpose(weight.astype(jnp.float32), (1, 0, 2, 3, 4)).reshape(Cout, Cin, K ** 3)
    g = jnp.take(w_oc, jnp.asarray(kidx.reshape(-1)), axis=2)         # (Cout, Cin, 8*NOFF)
    g = g.reshape(Cout, Cin, 8, NOFF) * jnp.asarray(vmask)[None, None]
    g = jnp.transpose(g, (2, 0, 3, 1))                                # (8, Cout, NOFF, Cin)
    g = jnp.pad(g, ((0, 0), (0, 0), (0, 0), (0, Cin_p - Cin)))
    wstack = g.reshape(PC, CK).astype(jnp.bfloat16)

    b_stack = jnp.tile(bias.astype(jnp.float32).reshape(Cout), (8,)).reshape(PC, 1)
    m_stack = jnp.tile(multiplier.astype(jnp.float32).reshape(Cout), (8,)).reshape(PC, 1)

    # ---- choose d-planes per grid step: bounded VMEM, lane-dense (128-mult) output ----
    cands = [td for td in range(1, Qd + 1)
             if Qd % td == 0 and ((td * Qc) % 128 == 0 or td == Qd)]
    good = [td for td in cands if td <= 32 and Cout * td * Qc * 4 <= (2 << 20)]
    TD = max(good) if good else min(cands)
    n_dblk = Qd // TD

    kernel = functools.partial(
        _fused_kernel, td_count=TD, n_off_d=R, cin_p=Cin_p, cout=Cout,
        qh_n=Qh, qw_n=Qw, pw=Pw, qc=Qc, taps=tuple(taps))

    out_flat = pl.pallas_call(
        kernel,
        out_shape=jax.ShapeDtypeStruct((N, Cout, Qd * Qc), jnp.float32),
        grid=(N, n_dblk),
        in_specs=[
            pl.BlockSpec((None, Pd, Cin_p, S_p), lambda n, d: (n, 0, 0, 0)),
            pl.BlockSpec((PC, CK), lambda n, d: (0, 0)),
            pl.BlockSpec((PC, 1), lambda n, d: (0, 0)),
            pl.BlockSpec((PC, 1), lambda n, d: (0, 0)),
        ],
        out_specs=pl.BlockSpec((None, Cout, TD * Qc), lambda n, d: (n, 0, d)),
        scratch_shapes=[pltpu.VMEM((CK, TLe), jnp.bfloat16)],
        compiler_params=pltpu.CompilerParams(
            dimension_semantics=("parallel", "parallel")),
    )(xr, wstack, b_stack, m_stack)

    # Output is already compact NCDHW; splitting the trailing dim is a free reshape.
    return out_flat.reshape(N, Cout, Qd, Qh, Qw)


def reference_forward(x, weight, bias, multiplier, *, stride, padding, output_padding):
    """Pure-JAX reference (dilated-input conv + elementwise + reduce_window)."""
    N, Cin, D, H, W = x.shape
    _, Cout, K, _, _ = weight.shape
    s = stride
    pad_lo = K - 1 - padding
    pad_hi = K - 1 - padding + output_padding
    xp = lax.pad(x.astype(jnp.float32), jnp.float32(0),
                 [(0, 0, 0), (0, 0, 0)] + [(pad_lo, pad_hi, s - 1)] * 3)
    wf = jnp.transpose(jnp.flip(weight.astype(jnp.float32), (2, 3, 4)), (1, 0, 2, 3, 4))
    y = lax.conv_general_dilated(xp, wf, window_strides=(1, 1, 1), padding='VALID',
                                 dimension_numbers=('NCDHW', 'OIDHW', 'NCDHW'),
                                 precision=lax.Precision.HIGHEST)
    y = y + bias.reshape(1, Cout, 1, 1, 1)
    y = jnp.where(y >= 0, y, y * NEG_SLOPE)
    y = y * multiplier.reshape(1, Cout, 1, 1, 1)
    y = jnp.where(y >= 0, y, y * NEG_SLOPE)
    y = lax.reduce_window(y, -jnp.inf, lax.max,
                          (1, 1, 2, 2, 2), (1, 1, 2, 2, 2), 'VALID')
    return y


if __name__ == "__main__":
    key = jax.random.PRNGKey(0)
    k1, k2, k3, k4 = jax.random.split(key, 4)

    # Small shapes consistent with the module's forward.
    N, Cin, Cout, K = 2, 4, 8, 3
    stride, padding, output_padding = 2, 1, 1
    D = H = W = 8
    multiplier_shape = (Cout, 1, 1, 1)

    x = jax.random.normal(k1, (N, Cin, D, H, W), jnp.float32)
    # Deterministic in-script parameter init (shapes match nn.ConvTranspose3d / nn.Parameter).
    weight = jax.random.normal(k2, (Cin, Cout, K, K, K), jnp.float32) * 0.1
    bias = jax.random.normal(k3, (Cout,), jnp.float32) * 0.1
    multiplier = jax.random.normal(k4, multiplier_shape, jnp.float32)

    fwd = jax.jit(functools.partial(model_forward, stride=stride, padding=padding,
                                    output_padding=output_padding))
    out = jax.block_until_ready(fwd(x, weight, bias, multiplier))

    ref = reference_forward(x, weight, bias, multiplier,
                            stride=stride, padding=padding, output_padding=output_padding)
    # bf16 matmul operands (f32 accumulation) -> bf16-appropriate tolerance.
    np.testing.assert_allclose(np.asarray(out), np.asarray(ref), rtol=2e-2, atol=2e-2)

    print("KERNEL_OK")
</pallas_src>

<mosaic_0001>
module attributes {stable_mosaic.version = 11 : i64} {
  func.func @_fused_kernel(%arg0: i32, %arg1: i32, %arg2: memref<1x9x16x81xbf16, #tpu.memory_space<vmem>>, %arg3: memref<64x128xbf16, #tpu.memory_space<vmem>>, %arg4: memref<64x1xf32, #tpu.memory_space<vmem>>, %arg5: memref<64x1xf32, #tpu.memory_space<vmem>>, %arg6: memref<1x8x512xf32, #tpu.memory_space<vmem>>, %arg7: memref<128x128xbf16, #tpu.memory_space<vmem>>) attributes {dimension_semantics = [#tpu.dimension_semantics<parallel>, #tpu.dimension_semantics<parallel>], iteration_bounds = array<i64: 2, 1>, scalar_prefetch = 0 : i64, scratch_operands = 1 : i64, tpu.core_type = #tpu.core_type<tc>, window_params = [{transform_indices = @transform_0, window_bounds = array<i64: 1, 9, 16, 81>}, {pipeline_mode = #tpu.pipeline_mode<synchronous>, transform_indices = @transform_1, window_bounds = array<i64: 64, 128>}, {pipeline_mode = #tpu.pipeline_mode<synchronous>, transform_indices = @transform_2, window_bounds = array<i64: 64, 1>}, {pipeline_mode = #tpu.pipeline_mode<synchronous>, transform_indices = @transform_3, window_bounds = array<i64: 64, 1>}, {transform_indices = @transform_4, window_bounds = array<i64: 1, 8, 512>}]} {
    %c0 = arith.constant 0 : index
    %c0_0 = arith.constant 0 : index
    %0 = vector.load %arg3[%c0, %c0_0] : memref<64x128xbf16, #tpu.memory_space<vmem>>, vector<64x128xbf16>
    %c0_1 = arith.constant 0 : index
    %c0_2 = arith.constant 0 : index
    %1 = vector.load %arg4[%c0_1, %c0_2] : memref<64x1xf32, #tpu.memory_space<vmem>>, vector<64x1xf32>
    %c0_3 = arith.constant 0 : index
    %c0_4 = arith.constant 0 : index
    %2 = vector.load %arg5[%c0_3, %c0_4] : memref<64x1xf32, #tpu.memory_space<vmem>>, vector<64x1xf32>
    %c8_i32 = arith.constant 8 : i32
    %3 = arith.muli %arg1, %c8_i32 : i32
    %c0_i32 = arith.constant 0 : i32
    %4 = arith.addi %3, %c0_i32 : i32
    %c0_i32_5 = arith.constant 0 : i32
    %5 = arith.addi %4, %c0_i32_5 : i32
    %c0_6 = arith.constant 0 : index
    %6 = arith.index_cast %5 : i32 to index
    %c0_7 = arith.constant 0 : index
    %c0_8 = arith.constant 0 : index
    %7 = vector.load %arg2[%c0_6, %6, %c0_7, %c0_8] : memref<1x9x16x81xbf16, #tpu.memory_space<vmem>>, vector<1x1x16x81xbf16>
    %8 = vector.shape_cast %7 : vector<1x1x16x81xbf16> to vector<16x81xbf16>
    %c1_i32 = arith.constant 1 : i32
    %9 = arith.addi %4, %c1_i32 : i32
    %c0_9 = arith.constant 0 : index
    %10 = arith.index_cast %9 : i32 to index
    %c0_10 = arith.constant 0 : index
    %c0_11 = arith.constant 0 : index
    %11 = vector.load %arg2[%c0_9, %10, %c0_10, %c0_11] : memref<1x9x16x81xbf16, #tpu.memory_space<vmem>>, vector<1x1x16x81xbf16>
    %12 = vector.shape_cast %11 : vector<1x1x16x81xbf16> to vector<16x81xbf16>
    %13 = vector.extract_strided_slice %8 {offsets = [0, 0], sizes = [16, 72], strides = [1, 1]} : vector<16x81xbf16> to vector<16x72xbf16>
    %c0_12 = arith.constant 0 : index
    %c0_13 = arith.constant 0 : index
    %14 = vector.load %arg7[%c0_12, %c0_13] : memref<128x128xbf16, #tpu.memory_space<vmem>>, vector<16x72xbf16>
    tpu.vector_store %arg7[%c0_12, %c0_13], %13 {strides = array<i32>} : memref<128x128xbf16, #tpu.memory_space<vmem>>, vector<16x72xbf16>,
    %15 = vector.extract_strided_slice %8 {offsets = [0, 1], sizes = [16, 72], strides = [1, 1]} : vector<16x81xbf16> to vector<16x72xbf16>
    %c16 = arith.constant 16 : index
    %c0_14 = arith.constant 0 : index
    %16 = vector.load %arg7[%c16, %c0_14] : memref<128x128xbf16, #tpu.memory_space<vmem>>, vector<16x72xbf16>
    tpu.vector_store %arg7[%c16, %c0_14], %15 {strides = array<i32>} : memref<128x128xbf16, #tpu.memory_space<vmem>>, vector<16x72xbf16>,
    %17 = vector.extract_strided_slice %8 {offsets = [0, 9], sizes = [16, 72], strides = [1, 1]} : vector<16x81xbf16> to vector<16x72xbf16>
    %c32 = arith.constant 32 : index
    %c0_15 = arith.constant 0 : index
    %18 = vector.load %arg7[%c32, %c0_15] : memref<128x128xbf16, #tpu.memory_space<vmem>>, vector<16x72xbf16>
    tpu.vector_store %arg7[%c32, %c0_15], %17 {strides = array<i32>} : memref<128x128xbf16, #tpu.memory_space<vmem>>, vector<16x72xbf16>,
    %19 = vector.extract_strided_slice %8 {offsets = [0, 10], sizes = [16, 71], strides = [1, 1]} : vector<16x81xbf16> to vector<16x71xbf16>
    %c48 = arith.constant 48 : index
    %c0_16 = arith.constant 0 : index
    %20 = vector.load %arg7[%c48, %c0_16] : memref<128x128xbf16, #tpu.memory_space<vmem>>, vector<16x71xbf16>
    tpu.vector_store %arg7[%c48, %c0_16], %19 {strides = array<i32>} : memref<128x128xbf16, #tpu.memory_space<vmem>>, vector<16x71xbf16>,
    %21 = vector.extract_strided_slice %12 {offsets = [0, 0], sizes = [16, 72], strides = [1, 1]} : vector<16x81xbf16> to vector<16x72xbf16>
    %c64 = arith.constant 64 : index
    %c0_17 = arith.constant 0 : index
    %22 = vector.load %arg7[%c64, %c0_17] : memref<128x128xbf16, #tpu.memory_space<vmem>>, vector<16x72xbf16>
    tpu.vector_store %arg7[%c64, %c0_17], %21 {strides = array<i32>} : memref<128x128xbf16, #tpu.memory_space<vmem>>, vector<16x72xbf16>,
    %23 = vector.extract_strided_slice %12 {offsets = [0, 1], sizes = [16, 72], strides = [1, 1]} : vector<16x81xbf16> to vector<16x72xbf16>
    %c80 = arith.constant 80 : index
    %c0_18 = arith.constant 0 : index
    %24 = vector.load %arg7[%c80, %c0_18] : memref<128x128xbf16, #tpu.memory_space<vmem>>, vector<16x72xbf16>
    tpu.vector_store %arg7[%c80, %c0_18], %23 {strides = array<i32>} : memref<128x128xbf16, #tpu.memory_space<vmem>>, vector<16x72xbf16>,
    %25 = vector.extract_strided_slice %12 {offsets = [0, 9], sizes = [16, 72], strides = [1, 1]} : vector<16x81xbf16> to vector<16x72xbf16>
    %c96 = arith.constant 96 : index
    %c0_19 = arith.constant 0 : index
    %26 = vector.load %arg7[%c96, %c0_19] : memref<128x128xbf16, #tpu.memory_space<vmem>>, vector<16x72xbf16>
    tpu.vector_store %arg7[%c96, %c0_19], %25 {strides = array<i32>} : memref<128x128xbf16, #tpu.memory_space<vmem>>, vector<16x72xbf16>,
    %27 = vector.extract_strided_slice %12 {offsets = [0, 10], sizes = [16, 71], strides = [1, 1]} : vector<16x81xbf16> to vector<16x71xbf16>
    %c112 = arith.constant 112 : index
    %c0_20 = arith.constant 0 : index
    %28 = vector.load %arg7[%c112, %c0_20] : memref<128x128xbf16, #tpu.memory_space<vmem>>, vector<16x71xbf16>
    tpu.vector_store %arg7[%c112, %c0_20], %27 {strides = array<i32>} : memref<128x128xbf16, #tpu.memory_space<vmem>>, vector<16x71xbf16>,
    %c0_21 = arith.constant 0 : index
    %c0_22 = arith.constant 0 : index
    %29 = vector.load %arg7[%c0_21, %c0_22] : memref<128x128xbf16, #tpu.memory_space<vmem>>, vector<128x128xbf16>
    %cst = arith.constant dense<0.000000e+00> : vector<64x128xf32>
    %30 = tpu.matmul %0, %29, %cst {dimension_numbers = #tpu.dot_dimension_numbers<[1], [0], [0], [1], [0, 0, 1, 1], [], []>} : vector<64x128xbf16>, vector<128x128xbf16>, vector<64x128xf32> -> vector<64x128xf32>
    %31 = vector.broadcast %1 : vector<64x1xf32> to vector<64x128xf32>
    %32 = arith.addf %30, %31 : vector<64x128xf32>
    %cst_23 = arith.constant 2.000000e-01 : f32
    %33 = vector.broadcast %cst_23 : f32 to vector<64x128xf32>
    %34 = arith.mulf %32, %33 : vector<64x128xf32>
    %35 = arith.maximumf %32, %34 : vector<64x128xf32>
    %36 = vector.broadcast %2 : vector<64x1xf32> to vector<64x128xf32>
    %37 = arith.mulf %35, %36 : vector<64x128xf32>
    %cst_24 = arith.constant 2.000000e-01 : f32
    %38 = vector.broadcast %cst_24 : f32 to vector<64x128xf32>
    %39 = arith.mulf %37, %38 : vector<64x128xf32>
    %40 = arith.maximumf %37, %39 : vector<64x128xf32>
    %41 = vector.extract_strided_slice %40 {offsets = [0, 0], sizes = [8, 128], strides = [1, 1]} : vector<64x128xf32> to vector<8x128xf32>
    %42 = vector.extract_strided_slice %40 {offsets = [8, 0], sizes = [8, 128], strides = [1, 1]} : vector<64x128xf32> to vector<8x128xf32>
    %43 = arith.maximumf %41, %42 : vector<8x128xf32>
    %44 = vector.extract_strided_slice %40 {offsets = [16, 0], sizes = [8, 128], strides = [1, 1]} : vector<64x128xf32> to vector<8x128xf32>
    %45 = vector.extract_strided_slice %40 {offsets = [24, 0], sizes = [8, 128], strides = [1, 1]} : vector<64x128xf32> to vector<8x128xf32>
    %46 = arith.maximumf %44, %45 : vector<8x128xf32>
    %47 = vector.extract_strided_slice %40 {offsets = [32, 0], sizes = [8, 128], strides = [1, 1]} : vector<64x128xf32> to vector<8x128xf32>
    %48 = vector.extract_strided_slice %40 {offsets = [40, 0], sizes = [8, 128], strides = [1, 1]} : vector<64x128xf32> to vector<8x128xf32>
    %49 = arith.maximumf %47, %48 : vector<8x128xf32>
    %50 = vector.extract_strided_slice %40 {offsets = [48, 0], sizes = [8, 128], strides = [1, 1]} : vector<64x128xf32> to vector<8x128xf32>
    %51 = vector.extract_strided_slice %40 {offsets = [56, 0], sizes = [8, 128], strides = [1, 1]} : vector<64x128xf32> to vector<8x128xf32>
    %52 = arith.maximumf %50, %51 : vector<8x128xf32>
    %53 = arith.maximumf %43, %46 : vector<8x128xf32>
    %54 = arith.maximumf %49, %52 : vector<8x128xf32>
    %55 = arith.maximumf %53, %54 : vector<8x128xf32>
    %56 = vector.extract_strided_slice %55 {offsets = [0, 0], sizes = [8, 8], strides = [1, 1]} : vector<8x128xf32> to vector<8x8xf32>
    %c0_25 = arith.constant 0 : index
    %c0_26 = arith.constant 0 : index
    %c0_27 = arith.constant 0 : index
    %57 = vector.load %arg6[%c0_25, %c0_26, %c0_27] : memref<1x8x512xf32, #tpu.memory_space<vmem>>, vector<1x8x8xf32>
    %58 = vector.shape_cast %57 : vector<1x8x8xf32> to vector<8x8xf32>
    %59 = vector.shape_cast %56 : vector<8x8xf32> to vector<1x8x8xf32>
    tpu.vector_store %arg6[%c0_25, %c0_26, %c0_27], %59 {strides = array<i32>} : memref<1x8x512xf32, #tpu.memory_space<vmem>>, vector<1x8x8xf32>,
    %60 = vector.extract_strided_slice %55 {offsets = [0, 9], sizes = [8, 8], strides = [1, 1]} : vector<8x128xf32> to vector<8x8xf32>
    %c0_28 = arith.constant 0 : index
    %c0_29 = arith.constant 0 : index
    %c8 = arith.constant 8 : index
    %61 = vector.load %arg6[%c0_28, %c0_29, %c8] : memref<1x8x512xf32, #tpu.memory_space<vmem>>, vector<1x8x8xf32>
    %62 = vector.shape_cast %61 : vector<1x8x8xf32> to vector<8x8xf32>
    %63 = vector.shape_cast %60 : vector<8x8xf32> to vector<1x8x8xf32>
    tpu.vector_store %arg6[%c0_28, %c0_29, %c8], %63 {strides = array<i32>} : memref<1x8x512xf32, #tpu.memory_space<vmem>>, vector<1x8x8xf32>,
    %64 = vector.extract_strided_slice %55 {offsets = [0, 18], sizes = [8, 8], strides = [1, 1]} : vector<8x128xf32> to vector<8x8xf32>
    %c0_30 = arith.constant 0 : index
    %c0_31 = arith.constant 0 : index
    %c16_32 = arith.constant 16 : index
    %65 = vector.load %arg6[%c0_30, %c0_31, %c16_32] : memref<1x8x512xf32, #tpu.memory_space<vmem>>, vector<1x8x8xf32>
    %66 = vector.shape_cast %65 : vector<1x8x8xf32> to vector<8x8xf32>
    %67 = vector.shape_cast %64 : vector<8x8xf32> to vector<1x8x8xf32>
    tpu.vector_store %arg6[%c0_30, %c0_31, %c16_32], %67 {strides = array<i32>} : memref<1x8x512xf32, #tpu.memory_space<vmem>>, vector<1x8x8xf32>,
    %68 = vector.extract_strided_slice %55 {offsets = [0, 27], sizes = [8, 8], strides = [1, 1]} : vector<8x128xf32> to vector<8x8xf32>
    %c0_33 = arith.constant 0 : index
    %c0_34 = arith.constant 0 : index
    %c24 = arith.constant 24 : index
    %69 = vector.load %arg6[%c0_33, %c0_34, %c24] : memref<1x8x512xf32, #tpu.memory_space<vmem>>, vector<1x8x8xf32>
    %70 = vector.shape_cast %69 : vector<1x8x8xf32> to vector<8x8xf32>
    %71 = vector.shape_cast %68 : vector<8x8xf32> to vector<1x8x8xf32>
    tpu.vector_store %arg6[%c0_33, %c0_34, %c24], %71 {strides = array<i32>} : memref<1x8x512xf32, #tpu.memory_space<vmem>>, vector<1x8x8xf32>,
    %72 = vector.extract_strided_slice %55 {offsets = [0, 36], sizes = [8, 8], strides = [1, 1]} : vector<8x128xf32> to vector<8x8xf32>
    %c0_35 = arith.constant 0 : index
    %c0_36 = arith.constant 0 : index
    %c32_37 = arith.constant 32 : index
    %73 = vector.load %arg6[%c0_35, %c0_36, %c32_37] : memref<1x8x512xf32, #tpu.memory_space<vmem>>, vector<1x8x8xf32>
    %74 = vector.shape_cast %73 : vector<1x8x8xf32> to vector<8x8xf32>
    %75 = vector.shape_cast %72 : vector<8x8xf32> to vector<1x8x8xf32>
    tpu.vector_store %arg6[%c0_35, %c0_36, %c32_37], %75 {strides = array<i32>} : memref<1x8x512xf32, #tpu.memory_space<vmem>>, vector<1x8x8xf32>,
    %76 = vector.extract_strided_slice %55 {offsets = [0, 45], sizes = [8, 8], strides = [1, 1]} : vector<8x128xf32> to vector<8x8xf32>
    %c0_38 = arith.constant 0 : index
    %c0_39 = arith.constant 0 : index
    %c40 = arith.constant 40 : index
    %77 = vector.load %arg6[%c0_38, %c0_39, %c40] : memref<1x8x512xf32, #tpu.memory_space<vmem>>, vector<1x8x8xf32>
    %78 = vector.shape_cast %77 : vector<1x8x8xf32> to vector<8x8xf32>
    %79 = vector.shape_cast %76 : vector<8x8xf32> to vector<1x8x8xf32>
    tpu.vector_store %arg6[%c0_38, %c0_39, %c40], %79 {strides = array<i32>} : memref<1x8x512xf32, #tpu.memory_space<vmem>>, vector<1x8x8xf32>,
    %80 = vector.extract_strided_slice %55 {offsets = [0, 54], sizes = [8, 8], strides = [1, 1]} : vector<8x128xf32> to vector<8x8xf32>
    %c0_40 = arith.constant 0 : index
    %c0_41 = arith.constant 0 : index
    %c48_42 = arith.constant 48 : index
    %81 = vector.load %arg6[%c0_40, %c0_41, %c48_42] : memref<1x8x512xf32, #tpu.memory_space<vmem>>, vector<1x8x8xf32>
    %82 = vector.shape_cast %81 : vector<1x8x8xf32> to vector<8x8xf32>
    %83 = vector.shape_cast %80 : vector<8x8xf32> to vector<1x8x8xf32>
    tpu.vector_store %arg6[%c0_40, %c0_41, %c48_42], %83 {strides = array<i32>} : memref<1x8x512xf32, #tpu.memory_space<vmem>>, vector<1x8x8xf32>,
    %84 = vector.extract_strided_slice %55 {offsets = [0, 63], sizes = [8, 8], strides = [1, 1]} : vector<8x128xf32> to vector<8x8xf32>
    %c0_43 = arith.constant 0 : index
    %c0_44 = arith.constant 0 : index
    %c56 = arith.constant 56 : index
    %85 = vector.load %arg6[%c0_43, %c0_44, %c56] : memref<1x8x512xf32, #tpu.memory_space<vmem>>, vector<1x8x8xf32>
    %86 = vector.shape_cast %85 : vector<1x8x8xf32> to vector<8x8xf32>
    %87 = vector.shape_cast %84 : vector<8x8xf32> to vector<1x8x8xf32>
    tpu.vector_store %arg6[%c0_43, %c0_44, %c56], %87 {strides = array<i32>} : memref<1x8x512xf32, #tpu.memory_space<vmem>>, vector<1x8x8xf32>,
    %c8_i32_45 = arith.constant 8 : i32
    %88 = arith.muli %arg1, %c8_i32_45 : i32
    %c1_i32_46 = arith.constant 1 : i32
    %89 = arith.addi %88, %c1_i32_46 : i32
    %c0_i32_47 = arith.constant 0 : i32
    %90 = arith.addi %89, %c0_i32_47 : i32
    %c0_48 = arith.constant 0 : index
    %91 = arith.index_cast %90 : i32 to index
    %c0_49 = arith.constant 0 : index
    %c0_50 = arith.constant 0 : index
    %92 = vector.load %arg2[%c0_48, %91, %c0_49, %c0_50] : memref<1x9x16x81xbf16, #tpu.memory_space<vmem>>, vector<1x1x16x81xbf16>
    %93 = vector.shape_cast %92 : vector<1x1x16x81xbf16> to vector<16x81xbf16>
    %c1_i32_51 = arith.constant 1 : i32
    %94 = arith.addi %89, %c1_i32_51 : i32
    %c0_52 = arith.constant 0 : index
    %95 = arith.index_cast %94 : i32 to index
    %c0_53 = arith.constant 0 : index
    %c0_54 = arith.constant 0 : index
    %96 = vector.load %arg2[%c0_52, %95, %c0_53, %c0_54] : memref<1x9x16x81xbf16, #tpu.memory_space<vmem>>, vector<1x1x16x81xbf16>
    %97 = vector.shape_cast %96 : vector<1x1x16x81xbf16> to vector<16x81xbf16>
    %98 = vector.extract_strided_slice %93 {offsets = [0, 0], sizes = [16, 72], strides = [1, 1]} : vector<16x81xbf16> to vector<16x72xbf16>
    %c0_55 = arith.constant 0 : index
    %c0_56 = arith.constant 0 : index
    %99 = vector.load %arg7[%c0_55, %c0_56] : memref<128x128xbf16, #tpu.memory_space<vmem>>, vector<16x72xbf16>
    tpu.vector_store %arg7[%c0_55, %c0_56], %98 {strides = array<i32>} : memref<128x128xbf16, #tpu.memory_space<vmem>>, vector<16x72xbf16>,
    %100 = vector.extract_strided_slice %93 {offsets = [0, 1], sizes = [16, 72], strides = [1, 1]} : vector<16x81xbf16> to vector<16x72xbf16>
    %c16_57 = arith.constant 16 : index
    %c0_58 = arith.constant 0 : index
    %101 = vector.load %arg7[%c16_57, %c0_58] : memref<128x128xbf16, #tpu.memory_space<vmem>>, vector<16x72xbf16>
    tpu.vector_store %arg7[%c16_57, %c0_58], %100 {strides = array<i32>} : memref<128x128xbf16, #tpu.memory_space<vmem>>, vector<16x72xbf16>,
    %102 = vector.extract_strided_slice %93 {offsets = [0, 9], sizes = [16, 72], strides = [1, 1]} : vector<16x81xbf16> to vector<16x72xbf16>
    %c32_59 = arith.constant 32 : index
    %c0_60 = arith.constant 0 : index
    %103 = vector.load %arg7[%c32_59, %c0_60] : memref<128x128xbf16, #tpu.memory_space<vmem>>, vector<16x72xbf16>
    tpu.vector_store %arg7[%c32_59, %c0_60], %102 {strides = array<i32>} : memref<128x128xbf16, #tpu.memory_space<vmem>>, vector<16x72xbf16>,
    %104 = vector.extract_strided_slice %93 {offsets = [0, 10], sizes = [16, 71], strides = [1, 1]} : vector<16x81xbf16> to vector<16x71xbf16>
    %c48_61 = arith.constant 48 : index
    %c0_62 = arith.constant 0 : index
    %105 = vector.load %arg7[%c48_61, %c0_62] : memref<128x128xbf16, #tpu.memory_space<vmem>>, vector<16x71xbf16>
    tpu.vector_store %arg7[%c48_61, %c0_62], %104 {strides = array<i32>} : memref<128x128xbf16, #tpu.memory_space<vmem>>, vector<16x71xbf16>,
    %106 = vector.extract_strided_slice %97 {offsets = [0, 0], sizes = [16, 72], strides = [1, 1]} : vector<16x81xbf16> to vector<16x72xbf16>
    %c64_63 = arith.constant 64 : index
    %c0_64 = arith.constant 0 : index
    %107 = vector.load %arg7[%c64_63, %c0_64] : memref<128x128xbf16, #tpu.memory_space<vmem>>, vector<16x72xbf16>
    tpu.vector_store %arg7[%c64_63, %c0_64], %106 {strides = array<i32>} : memref<128x128xbf16, #tpu.memory_space<vmem>>, vector<16x72xbf16>,
    %108 = vector.extract_strided_slice %97 {offsets = [0, 1], sizes = [16, 72], strides = [1, 1]} : vector<16x81xbf16> to vector<16x72xbf16>
    %c80_65 = arith.constant 80 : index
    %c0_66 = arith.constant 0 : index
    %109 = vector.load %arg7[%c80_65, %c0_66] : memref<128x128xbf16, #tpu.memory_space<vmem>>, vector<16x72xbf16>
    tpu.vector_store %arg7[%c80_65, %c0_66], %108 {strides = array<i32>} : memref<128x128xbf16, #tpu.memory_space<vmem>>, vector<16x72xbf16>,
    %110 = vector.extract_strided_slice %97 {offsets = [0, 9], sizes = [16, 72], strides = [1, 1]} : vector<16x81xbf16> to vector<16x72xbf16>
    %c96_67 = arith.constant 96 : index
    %c0_68 = arith.constant 0 : index
    %111 = vector.load %arg7[%c96_67, %c0_68] : memref<128x128xbf16, #tpu.memory_space<vmem>>, vector<16x72xbf16>
    tpu.vector_store %arg7[%c96_67, %c0_68], %110 {strides = array<i32>} : memref<128x128xbf16, #tpu.memory_space<vmem>>, vector<16x72xbf16>,
    %112 = vector.extract_strided_slice %97 {offsets = [0, 10], sizes = [16, 71], strides = [1, 1]} : vector<16x81xbf16> to vector<16x71xbf16>
    %c112_69 = arith.constant 112 : index
    %c0_70 = arith.constant 0 : index
    %113 = vector.load %arg7[%c112_69, %c0_70] : memref<128x128xbf16, #tpu.memory_space<vmem>>, vector<16x71xbf16>
    tpu.vector_store %arg7[%c112_69, %c0_70], %112 {strides = array<i32>} : memref<128x128xbf16, #tpu.memory_space<vmem>>, vector<16x71xbf16>,
    %c0_71 = arith.constant 0 : index
    %c0_72 = arith.constant 0 : index
    %114 = vector.load %arg7[%c0_71, %c0_72] : memref<128x128xbf16, #tpu.memory_space<vmem>>, vector<128x128xbf16>
    %cst_73 = arith.constant dense<0.000000e+00> : vector<64x128xf32>
    %115 = tpu.matmul %0, %114, %cst_73 {dimension_numbers = #tpu.dot_dimension_numbers<[1], [0], [0], [1], [0, 0, 1, 1], [], []>} : vector<64x128xbf16>, vector<128x128xbf16>, vector<64x128xf32> -> vector<64x128xf32>
    %116 = vector.broadcast %1 : vector<64x1xf32> to vector<64x128xf32>
    %117 = arith.addf %115, %116 : vector<64x128xf32>
    %cst_74 = arith.constant 2.000000e-01 : f32
    %118 = vector.broadcast %cst_74 : f32 to vector<64x128xf32>
    %119 = arith.mulf %117, %118 : vector<64x128xf32>
    %120 = arith.maximumf %117, %119 : vector<64x128xf32>
    %121 = vector.broadcast %2 : vector<64x1xf32> to vector<64x128xf32>
    %122 = arith.mulf %120, %121 : vector<64x128xf32>
    %cst_75 = arith.constant 2.000000e-01 : f32
    %123 = vector.broadcast %cst_75 : f32 to vector<64x128xf32>
    %124 = arith.mulf %122, %123 : vector<64x128xf32>
    %125 = arith.maximumf %122, %124 : vector<64x128xf32>
    %126 = vector.extract_strided_slice %125 {offsets = [0, 0], sizes = [8, 128], strides = [1, 1]} : vector<64x128xf32> to vector<8x128xf32>
    %127 = vector.extract_strided_slice %125 {offsets = [8, 0], sizes = [8, 128], strides = [1, 1]} : vector<64x128xf32> to vector<8x128xf32>
    %128 = arith.maximumf %126, %127 : vector<8x128xf32>
    %129 = vector.extract_strided_slice %125 {offsets = [16, 0], sizes = [8, 128], strides = [1, 1]} : vector<64x128xf32> to vector<8x128xf32>
    %130 = vector.extract_strided_slice %125 {offsets = [24, 0], sizes = [8, 128], strides = [1, 1]} : vector<64x128xf32> to vector<8x128xf32>
    %131 = arith.maximumf %129, %130 : vector<8x128xf32>
    %132 = vector.extract_strided_slice %125 {offsets = [32, 0], sizes = [8, 128], strides = [1, 1]} : vector<64x128xf32> to vector<8x128xf32>
    %133 = vector.extract_strided_slice %125 {offsets = [40, 0], sizes = [8, 128], strides = [1, 1]} : vector<64x128xf32> to vector<8x128xf32>
    %134 = arith.maximumf %132, %133 : vector<8x128xf32>
    %135 = vector.extract_strided_slice %125 {offsets = [48, 0], sizes = [8, 128], strides = [1, 1]} : vector<64x128xf32> to vector<8x128xf32>
    %136 = vector.extract_strided_slice %125 {offsets = [56, 0], sizes = [8, 128], strides = [1, 1]} : vector<64x128xf32> to vector<8x128xf32>
    %137 = arith.maximumf %135, %136 : vector<8x128xf32>
    %138 = arith.maximumf %128, %131 : vector<8x128xf32>
    %139 = arith.maximumf %134, %137 : vector<8x128xf32>
    %140 = arith.maximumf %138, %139 : vector<8x128xf32>
    %141 = vector.extract_strided_slice %140 {offsets = [0, 0], sizes = [8, 8], strides = [1, 1]} : vector<8x128xf32> to vector<8x8xf32>
    %c0_76 = arith.constant 0 : index
    %c0_77 = arith.constant 0 : index
    %c64_78 = arith.constant 64 : index
    %142 = vector.load %arg6[%c0_76, %c0_77, %c64_78] : memref<1x8x512xf32, #tpu.memory_space<vmem>>, vector<1x8x8xf32>
    %143 = vector.shape_cast %142 : vector<1x8x8xf32> to vector<8x8xf32>
    %144 = vector.shape_cast %141 : vector<8x8xf32> to vector<1x8x8xf32>
    tpu.vector_store %arg6[%c0_76, %c0_77, %c64_78], %144 {strides = array<i32>} : memref<1x8x512xf32, #tpu.memory_space<vmem>>, vector<1x8x8xf32>,
    %145 = vector.extract_strided_slice %140 {offsets = [0, 9], sizes = [8, 8], strides = [1, 1]} : vector<8x128xf32> to vector<8x8xf32>
    %c0_79 = arith.constant 0 : index
    %c0_80 = arith.constant 0 : index
    %c72 = arith.constant 72 : index
    %146 = vector.load %arg6[%c0_79, %c0_80, %c72] : memref<1x8x512xf32, #tpu.memory_space<vmem>>, vector<1x8x8xf32>
    %147 = vector.shape_cast %146 : vector<1x8x8xf32> to vector<8x8xf32>
    %148 = vector.shape_cast %145 : vector<8x8xf32> to vector<1x8x8xf32>
    tpu.vector_store %arg6[%c0_79, %c0_80, %c72], %148 {strides = array<i32>} : memref<1x8x512xf32, #tpu.memory_space<vmem>>, vector<1x8x8xf32>,
    %149 = vector.extract_strided_slice %140 {offsets = [0, 18], sizes = [8, 8], strides = [1, 1]} : vector<8x128xf32> to vector<8x8xf32>
    %c0_81 = arith.constant 0 : index
    %c0_82 = arith.constant 0 : index
    %c80_83 = arith.constant 80 : index
    %150 = vector.load %arg6[%c0_81, %c0_82, %c80_83] : memref<1x8x512xf32, #tpu.memory_space<vmem>>, vector<1x8x8xf32>
    %151 = vector.shape_cast %150 : vector<1x8x8xf32> to vector<8x8xf32>
    %152 = vector.shape_cast %149 : vector<8x8xf32> to vector<1x8x8xf32>
    tpu.vector_store %arg6[%c0_81, %c0_82, %c80_83], %152 {strides = array<i32>} : memref<1x8x512xf32, #tpu.memory_space<vmem>>, vector<1x8x8xf32>,
    %153 = vector.extract_strided_slice %140 {offsets = [0, 27], sizes = [8, 8], strides = [1, 1]} : vector<8x128xf32> to vector<8x8xf32>
    %c0_84 = arith.constant 0 : index
    %c0_85 = arith.constant 0 : index
    %c88 = arith.constant 88 : index
    %154 = vector.load %arg6[%c0_84, %c0_85, %c88] : memref<1x8x512xf32, #tpu.memory_space<vmem>>, vector<1x8x8xf32>
    %155 = vector.shape_cast %154 : vector<1x8x8xf32> to vector<8x8xf32>
    %156 = vector.shape_cast %153 : vector<8x8xf32> to vector<1x8x8xf32>
    tpu.vector_store %arg6[%c0_84, %c0_85, %c88], %156 {strides = array<i32>} : memref<1x8x512xf32, #tpu.memory_space<vmem>>, vector<1x8x8xf32>,
    %157 = vector.extract_strided_slice %140 {offsets = [0, 36], sizes = [8, 8], strides = [1, 1]} : vector<8x128xf32> to vector<8x8xf32>
    %c0_86 = arith.constant 0 : index
    %c0_87 = arith.constant 0 : index
    %c96_88 = arith.constant 96 : index
    %158 = vector.load %arg6[%c0_86, %c0_87, %c96_88] : memref<1x8x512xf32, #tpu.memory_space<vmem>>, vector<1x8x8xf32>
    %159 = vector.shape_cast %158 : vector<1x8x8xf32> to vector<8x8xf32>
    %160 = vector.shape_cast %157 : vector<8x8xf32> to vector<1x8x8xf32>
    tpu.vector_store %arg6[%c0_86, %c0_87, %c96_88], %160 {strides = array<i32>} : memref<1x8x512xf32, #tpu.memory_space<vmem>>, vector<1x8x8xf32>,
    %161 = vector.extract_strided_slice %140 {offsets = [0, 45], sizes = [8, 8], strides = [1, 1]} : vector<8x128xf32> to vector<8x8xf32>
    %c0_89 = arith.constant 0 : index
    %c0_90 = arith.constant 0 : index
    %c104 = arith.constant 104 : index
    %162 = vector.load %arg6[%c0_89, %c0_90, %c104] : memref<1x8x512xf32, #tpu.memory_space<vmem>>, vector<1x8x8xf32>
    %163 = vector.shape_cast %162 : vector<1x8x8xf32> to vector<8x8xf32>
    %164 = vector.shape_cast %161 : vector<8x8xf32> to vector<1x8x8xf32>
    tpu.vector_store %arg6[%c0_89, %c0_90, %c104], %164 {strides = array<i32>} : memref<1x8x512xf32, #tpu.memory_space<vmem>>, vector<1x8x8xf32>,
    %165 = vector.extract_strided_slice %140 {offsets = [0, 54], sizes = [8, 8], strides = [1, 1]} : vector<8x128xf32> to vector<8x8xf32>
    %c0_91 = arith.constant 0 : index
    %c0_92 = arith.constant 0 : index
    %c112_93 = arith.constant 112 : index
    %166 = vector.load %arg6[%c0_91, %c0_92, %c112_93] : memref<1x8x512xf32, #tpu.memory_space<vmem>>, vector<1x8x8xf32>
    %167 = vector.shape_cast %166 : vector<1x8x8xf32> to vector<8x8xf32>
    %168 = vector.shape_cast %165 : vector<8x8xf32> to vector<1x8x8xf32>
    tpu.vector_store %arg6[%c0_91, %c0_92, %c112_93], %168 {strides = array<i32>} : memref<1x8x512xf32, #tpu.memory_space<vmem>>, vector<1x8x8xf32>,
    %169 = vector.extract_strided_slice %140 {offsets = [0, 63], sizes = [8, 8], strides = [1, 1]} : vector<8x128xf32> to vector<8x8xf32>
    %c0_94 = arith.constant 0 : index
    %c0_95 = arith.constant 0 : index
    %c120 = arith.constant 120 : index
    %170 = vector.load %arg6[%c0_94, %c0_95, %c120] : memref<1x8x512xf32, #tpu.memory_space<vmem>>, vector<1x8x8xf32>
    %171 = vector.shape_cast %170 : vector<1x8x8xf32> to vector<8x8xf32>
    %172 = vector.shape_cast %169 : vector<8x8xf32> to vector<1x8x8xf32>
    tpu.vector_store %arg6[%c0_94, %c0_95, %c120], %172 {strides = array<i32>} : memref<1x8x512xf32, #tpu.memory_space<vmem>>, vector<1x8x8xf32>,
    %c8_i32_96 = arith.constant 8 : i32
    %173 = arith.muli %arg1, %c8_i32_96 : i32
    %c2_i32 = arith.constant 2 : i32
    %174 = arith.addi %173, %c2_i32 : i32
    %c0_i32_97 = arith.constant 0 : i32
    %175 = arith.addi %174, %c0_i32_97 : i32
    %c0_98 = arith.constant 0 : index
    %176 = arith.index_cast %175 : i32 to index
    %c0_99 = arith.constant 0 : index
    %c0_100 = arith.constant 0 : index
    %177 = vector.load %arg2[%c0_98, %176, %c0_99, %c0_100] : memref<1x9x16x81xbf16, #tpu.memory_space<vmem>>, vector<1x1x16x81xbf16>
    %178 = vector.shape_cast %177 : vector<1x1x16x81xbf16> to vector<16x81xbf16>
    %c1_i32_101 = arith.constant 1 : i32
    %179 = arith.addi %174, %c1_i32_101 : i32
    %c0_102 = arith.constant 0 : index
    %180 = arith.index_cast %179 : i32 to index
    %c0_103 = arith.constant 0 : index
    %c0_104 = arith.constant 0 : index
    %181 = vector.load %arg2[%c0_102, %180, %c0_103, %c0_104] : memref<1x9x16x81xbf16, #tpu.memory_space<vmem>>, vector<1x1x16x81xbf16>
    %182 = vector.shape_cast %181 : vector<1x1x16x81xbf16> to vector<16x81xbf16>
    %183 = vector.extract_strided_slice %178 {offsets = [0, 0], sizes = [16, 72], strides = [1, 1]} : vector<16x81xbf16> to vector<16x72xbf16>
    %c0_105 = arith.constant 0 : index
    %c0_106 = arith.constant 0 : index
    %184 = vector.load %arg7[%c0_105, %c0_106] : memref<128x128xbf16, #tpu.memory_space<vmem>>, vector<16x72xbf16>
    tpu.vector_store %arg7[%c0_105, %c0_106], %183 {strides = array<i32>} : memref<128x128xbf16, #tpu.memory_space<vmem>>, vector<16x72xbf16>,
    %185 = vector.extract_strided_slice %178 {offsets = [0, 1], sizes = [16, 72], strides = [1, 1]} : vector<16x81xbf16> to vector<16x72xbf16>
    %c16_107 = arith.constant 16 : index
    %c0_108 = arith.constant 0 : index
    %186 = vector.load %arg7[%c16_107, %c0_108] : memref<128x128xbf16, #tpu.memory_space<vmem>>, vector<16x72xbf16>
    tpu.vector_store %arg7[%c16_107, %c0_108], %185 {strides = array<i32>} : memref<128x128xbf16, #tpu.memory_space<vmem>>, vector<16x72xbf16>,
    %187 = vector.extract_strided_slice %178 {offsets = [0, 9], sizes = [16, 72], strides = [1, 1]} : vector<16x81xbf16> to vector<16x72xbf16>
    %c32_109 = arith.constant 32 : index
    %c0_110 = arith.constant 0 : index
    %188 = vector.load %arg7[%c32_109, %c0_110] : memref<128x128xbf16, #tpu.memory_space<vmem>>, vector<16x72xbf16>
    tpu.vector_store %arg7[%c32_109, %c0_110], %187 {strides = array<i32>} : memref<128x128xbf16, #tpu.memory_space<vmem>>, vector<16x72xbf16>,
    %189 = vector.extract_strided_slice %178 {offsets = [0, 10], sizes = [16, 71], strides = [1, 1]} : vector<16x81xbf16> to vector<16x71xbf16>
    %c48_111 = arith.constant 48 : index
    %c0_112 = arith.constant 0 : index
    %190 = vector.load %arg7[%c48_111, %c0_112] : memref<128x128xbf16, #tpu.memory_space<vmem>>, vector<16x71xbf16>
    tpu.vector_store %arg7[%c48_111, %c0_112], %189 {strides = array<i32>} : memref<128x128xbf16, #tpu.memory_space<vmem>>, vector<16x71xbf16>,
    %191 = vector.extract_strided_slice %182 {offsets = [0, 0], sizes = [16, 72], strides = [1, 1]} : vector<16x81xbf16> to vector<16x72xbf16>
    %c64_113 = arith.constant 64 : index
    %c0_114 = arith.constant 0 : index
    %192 = vector.load %arg7[%c64_113, %c0_114] : memref<128x128xbf16, #tpu.memory_space<vmem>>, vector<16x72xbf16>
    tpu.vector_store %arg7[%c64_113, %c0_114], %191 {strides = array<i32>} : memref<128x128xbf16, #tpu.memory_space<vmem>>, vector<16x72xbf16>,
    %193 = vector.extract_strided_slice %182 {offsets = [0, 1], sizes = [16, 72], strides = [1, 1]} : vector<16x81xbf16> to vector<16x72xbf16>
    %c80_115 = arith.constant 80 : index
    %c0_116 = arith.constant 0 : index
    %194 = vector.load %arg7[%c80_115, %c0_116] : memref<128x128xbf16, #tpu.memory_space<vmem>>, vector<16x72xbf16>
    tpu.vector_store %arg7[%c80_115, %c0_116], %193 {strides = array<i32>} : memref<128x128xbf16, #tpu.memory_space<vmem>>, vector<16x72xbf16>,
    %195 = vector.extract_strided_slice %182 {offsets = [0, 9], sizes = [16, 72], strides = [1, 1]} : vector<16x81xbf16> to vector<16x72xbf16>
    %c96_117 = arith.constant 96 : index
    %c0_118 = arith.constant 0 : index
    %196 = vector.load %arg7[%c96_117, %c0_118] : memref<128x128xbf16, #tpu.memory_space<vmem>>, vector<16x72xbf16>
    tpu.vector_store %arg7[%c96_117, %c0_118], %195 {strides = array<i32>} : memref<128x128xbf16, #tpu.memory_space<vmem>>, vector<16x72xbf16>,
    %197 = vector.extract_strided_slice %182 {offsets = [0, 10], sizes = [16, 71], strides = [1, 1]} : vector<16x81xbf16> to vector<16x71xbf16>
    %c112_119 = arith.constant 112 : index
    %c0_120 = arith.constant 0 : index
    %198 = vector.load %arg7[%c112_119, %c0_120] : memref<128x128xbf16, #tpu.memory_space<vmem>>, vector<16x71xbf16>
    tpu.vector_store %arg7[%c112_119, %c0_120], %197 {strides = array<i32>} : memref<128x128xbf16, #tpu.memory_space<vmem>>, vector<16x71xbf16>,
    %c0_121 = arith.constant 0 : index
    %c0_122 = arith.constant 0 : index
    %199 = vector.load %arg7[%c0_121, %c0_122] : memref<128x128xbf16, #tpu.memory_space<vmem>>, vector<128x128xbf16>
    %cst_123 = arith.constant dense<0.000000e+00> : vector<64x128xf32>
    %200 = tpu.matmul %0, %199, %cst_123 {dimension_numbers = #tpu.dot_dimension_numbers<[1], [0], [0], [1], [0, 0, 1, 1], [], []>} : vector<64x128xbf16>, vector<128x128xbf16>, vector<64x128xf32> -> vector<64x128xf32>
    %201 = vector.broadcast %1 : vector<64x1xf32> to vector<64x128xf32>
    %202 = arith.addf %200, %201 : vector<64x128xf32>
    %cst_124 = arith.constant 2.000000e-01 : f32
    %203 = vector.broadcast %cst_124 : f32 to vector<64x128xf32>
    %204 = arith.mulf %202, %203 : vector<64x128xf32>
    %205 = arith.maximumf %202, %204 : vector<64x128xf32>
    %206 = vector.broadcast %2 : vector<64x1xf32> to vector<64x128xf32>
    %207 = arith.mulf %205, %206 : vector<64x128xf32>
    %cst_125 = arith.constant 2.000000e-01 : f32
    %208 = vector.broadcast %cst_125 : f32 to vector<64x128xf32>
    %209 = arith.mulf %207, %208 : vector<64x128xf32>
    %210 = arith.maximumf %207, %209 : vector<64x128xf32>
    %211 = vector.extract_strided_slice %210 {offsets = [0, 0], sizes = [8, 128], strides = [1, 1]} : vector<64x128xf32> to vector<8x128xf32>
    %212 = vector.extract_strided_slice %210 {offsets = [8, 0], sizes = [8, 128], strides = [1, 1]} : vector<64x128xf32> to vector<8x128xf32>
    %213 = arith.maximumf %211, %212 : vector<8x128xf32>
    %214 = vector.extract_strided_slice %210 {offsets = [16, 0], sizes = [8, 128], strides = [1, 1]} : vector<64x128xf32> to vector<8x128xf32>
    %215 = vector.extract_strided_slice %210 {offsets = [24, 0], sizes = [8, 128], strides = [1, 1]} : vector<64x128xf32> to vector<8x128xf32>
    %216 = arith.maximumf %214, %215 : vector<8x128xf32>
    %217 = vector.extract_strided_slice %210 {offsets = [32, 0], sizes = [8, 128], strides = [1, 1]} : vector<64x128xf32> to vector<8x128xf32>
    %218 = vector.extract_strided_slice %210 {offsets = [40, 0], sizes = [8, 128], strides = [1, 1]} : vector<64x128xf32> to vector<8x128xf32>
    %219 = arith.maximumf %217, %218 : vector<8x128xf32>
    %220 = vector.extract_strided_slice %210 {offsets = [48, 0], sizes = [8, 128], strides = [1, 1]} : vector<64x128xf32> to vector<8x128xf32>
    %221 = vector.extract_strided_slice %210 {offsets = [56, 0], sizes = [8, 128], strides = [1, 1]} : vector<64x128xf32> to vector<8x128xf32>
    %222 = arith.maximumf %220, %221 : vector<8x128xf32>
    %223 = arith.maximumf %213, %216 : vector<8x128xf32>
    %224 = arith.maximumf %219, %222 : vector<8x128xf32>
    %225 = arith.maximumf %223, %224 : vector<8x128xf32>
    %226 = vector.extract_strided_slice %225 {offsets = [0, 0], sizes = [8, 8], strides = [1, 1]} : vector<8x128xf32> to vector<8x8xf32>
    %c0_126 = arith.constant 0 : index
    %c0_127 = arith.constant 0 : index
    %c128 = arith.constant 128 : index
    %227 = vector.load %arg6[%c0_126, %c0_127, %c128] : memref<1x8x512xf32, #tpu.memory_space<vmem>>, vector<1x8x8xf32>
    %228 = vector.shape_cast %227 : vector<1x8x8xf32> to vector<8x8xf32>
    %229 = vector.shape_cast %226 : vector<8x8xf32> to vector<1x8x8xf32>
    tpu.vector_store %arg6[%c0_126, %c0_127, %c128], %229 {strides = array<i32>} : memref<1x8x512xf32, #tpu.memory_space<vmem>>, vector<1x8x8xf32>,
    %230 = vector.extract_strided_slice %225 {offsets = [0, 9], sizes = [8, 8], strides = [1, 1]} : vector<8x128xf32> to vector<8x8xf32>
    %c0_128 = arith.constant 0 : index
    %c0_129 = arith.constant 0 : index
    %c136 = arith.constant 136 : index
    %231 = vector.load %arg6[%c0_128, %c0_129, %c136] : memref<1x8x512xf32, #tpu.memory_space<vmem>>, vector<1x8x8xf32>
    %232 = vector.shape_cast %231 : vector<1x8x8xf32> to vector<8x8xf32>
    %233 = vector.shape_cast %230 : vector<8x8xf32> to vector<1x8x8xf32>
    tpu.vector_store %arg6[%c0_128, %c0_129, %c136], %233 {strides = array<i32>} : memref<1x8x512xf32, #tpu.memory_space<vmem>>, vector<1x8x8xf32>,
    %234 = vector.extract_strided_slice %225 {offsets = [0, 18], sizes = [8, 8], strides = [1, 1]} : vector<8x128xf32> to vector<8x8xf32>
    %c0_130 = arith.constant 0 : index
    %c0_131 = arith.constant 0 : index
    %c144 = arith.constant 144 : index
    %235 = vector.load %arg6[%c0_130, %c0_131, %c144] : memref<1x8x512xf32, #tpu.memory_space<vmem>>, vector<1x8x8xf32>
    %236 = vector.shape_cast %235 : vector<1x8x8xf32> to vector<8x8xf32>
    %237 = vector.shape_cast %234 : vector<8x8xf32> to vector<1x8x8xf32>
    tpu.vector_store %arg6[%c0_130, %c0_131, %c144], %237 {strides = array<i32>} : memref<1x8x512xf32, #tpu.memory_space<vmem>>, vector<1x8x8xf32>,
    %238 = vector.extract_strided_slice %225 {offsets = [0, 27], sizes = [8, 8], strides = [1, 1]} : vector<8x128xf32> to vector<8x8xf32>
    %c0_132 = arith.constant 0 : index
    %c0_133 = arith.constant 0 : index
    %c152 = arith.constant 152 : index
    %239 = vector.load %arg6[%c0_132, %c0_133, %c152] : memref<1x8x512xf32, #tpu.memory_space<vmem>>, vector<1x8x8xf32>
    %240 = vector.shape_cast %239 : vector<1x8x8xf32> to vector<8x8xf32>
    %241 = vector.shape_cast %238 : vector<8x8xf32> to vector<1x8x8xf32>
    tpu.vector_store %arg6[%c0_132, %c0_133, %c152], %241 {strides = array<i32>} : memref<1x8x512xf32, #tpu.memory_space<vmem>>, vector<1x8x8xf32>,
    %242 = vector.extract_strided_slice %225 {offsets = [0, 36], sizes = [8, 8], strides = [1, 1]} : vector<8x128xf32> to vector<8x8xf32>
    %c0_134 = arith.constant 0 : index
    %c0_135 = arith.constant 0 : index
    %c160 = arith.constant 160 : index
    %243 = vector.load %arg6[%c0_134, %c0_135, %c160] : memref<1x8x512xf32, #tpu.memory_space<vmem>>, vector<1x8x8xf32>
    %244 = vector.shape_cast %243 : vector<1x8x8xf32> to vector<8x8xf32>
    %245 = vector.shape_cast %242 : vector<8x8xf32> to vector<1x8x8xf32>
    tpu.vector_store %arg6[%c0_134, %c0_135, %c160], %245 {strides = array<i32>} : memref<1x8x512xf32, #tpu.memory_space<vmem>>, vector<1x8x8xf32>,
    %246 = vector.extract_strided_slice %225 {offsets = [0, 45], sizes = [8, 8], strides = [1, 1]} : vector<8x128xf32> to vector<8x8xf32>
    %c0_136 = arith.constant 0 : index
    %c0_137 = arith.constant 0 : index
    %c168 = arith.constant 168 : index
    %247 = vector.load %arg6[%c0_136, %c0_137, %c168] : memref<1x8x512xf32, #tpu.memory_space<vmem>>, vector<1x8x8xf32>
    %248 = vector.shape_cast %247 : vector<1x8x8xf32> to vector<8x8xf32>
    %249 = vector.shape_cast %246 : vector<8x8xf32> to vector<1x8x8xf32>
    tpu.vector_store %arg6[%c0_136, %c0_137, %c168], %249 {strides = array<i32>} : memref<1x8x512xf32, #tpu.memory_space<vmem>>, vector<1x8x8xf32>,
    %250 = vector.extract_strided_slice %225 {offsets = [0, 54], sizes = [8, 8], strides = [1, 1]} : vector<8x128xf32> to vector<8x8xf32>
    %c0_138 = arith.constant 0 : index
    %c0_139 = arith.constant 0 : index
    %c176 = arith.constant 176 : index
    %251 = vector.load %arg6[%c0_138, %c0_139, %c176] : memref<1x8x512xf32, #tpu.memory_space<vmem>>, vector<1x8x8xf32>
    %252 = vector.shape_cast %251 : vector<1x8x8xf32> to vector<8x8xf32>
    %253 = vector.shape_cast %250 : vector<8x8xf32> to vector<1x8x8xf32>
    tpu.vector_store %arg6[%c0_138, %c0_139, %c176], %253 {strides = array<i32>} : memref<1x8x512xf32, #tpu.memory_space<vmem>>, vector<1x8x8xf32>,
    %254 = vector.extract_strided_slice %225 {offsets = [0, 63], sizes = [8, 8], strides = [1, 1]} : vector<8x128xf32> to vector<8x8xf32>
    %c0_140 = arith.constant 0 : index
    %c0_141 = arith.constant 0 : index
    %c184 = arith.constant 184 : index
    %255 = vector.load %arg6[%c0_140, %c0_141, %c184] : memref<1x8x512xf32, #tpu.memory_space<vmem>>, vector<1x8x8xf32>
    %256 = vector.shape_cast %255 : vector<1x8x8xf32> to vector<8x8xf32>
    %257 = vector.shape_cast %254 : vector<8x8xf32> to vector<1x8x8xf32>
    tpu.vector_store %arg6[%c0_140, %c0_141, %c184], %257 {strides = array<i32>} : memref<1x8x512xf32, #tpu.memory_space<vmem>>, vector<1x8x8xf32>,
    %c8_i32_142 = arith.constant 8 : i32
    %258 = arith.muli %arg1, %c8_i32_142 : i32
    %c3_i32 = arith.constant 3 : i32
    %259 = arith.addi %258, %c3_i32 : i32
    %c0_i32_143 = arith.constant 0 : i32
    %260 = arith.addi %259, %c0_i32_143 : i32
    %c0_144 = arith.constant 0 : index
    %261 = arith.index_cast %260 : i32 to index
    %c0_145 = arith.constant 0 : index
    %c0_146 = arith.constant 0 : index
    %262 = vector.load %arg2[%c0_144, %261, %c0_145, %c0_146] : memref<1x9x16x81xbf16, #tpu.memory_space<vmem>>, vector<1x1x16x81xbf16>
    %263 = vector.shape_cast %262 : vector<1x1x16x81xbf16> to vector<16x81xbf16>
    %c1_i32_147 = arith.constant 1 : i32
    %264 = arith.addi %259, %c1_i32_147 : i32
    %c0_148 = arith.constant 0 : index
    %265 = arith.index_cast %264 : i32 to index
    %c0_149 = arith.constant 0 : index
    %c0_150 = arith.constant 0 : index
    %266 = vector.load %arg2[%c0_148, %265, %c0_149, %c0_150] : memref<1x9x16x81xbf16, #tpu.memory_space<vmem>>, vector<1x1x16x81xbf16>
    %267 = vector.shape_cast %266 : vector<1x1x16x81xbf16> to vector<16x81xbf16>
    %268 = vector.extract_strided_slice %263 {offsets = [0, 0], sizes = [16, 72], strides = [1, 1]} : vector<16x81xbf16> to vector<16x72xbf16>
    %c0_151 = arith.constant 0 : index
    %c0_152 = arith.constant 0 : index
    %269 = vector.load %arg7[%c0_151, %c0_152] : memref<128x128xbf16, #tpu.memory_space<vmem>>, vector<16x72xbf16>
    tpu.vector_store %arg7[%c0_151, %c0_152], %268 {strides = array<i32>} : memref<128x128xbf16, #tpu.memory_space<vmem>>, vector<16x72xbf16>,
    %270 = vector.extract_strided_slice %263 {offsets = [0, 1], sizes = [16, 72], strides = [1, 1]} : vector<16x81xbf16> to vector<16x72xbf16>
    %c16_153 = arith.constant 16 : index
    %c0_154 = arith.constant 0 : index
    %271 = vector.load %arg7[%c16_153, %c0_154] : memref<128x128xbf16, #tpu.memory_space<vmem>>, vector<16x72xbf16>
    tpu.vector_store %arg7[%c16_153, %c0_154], %270 {strides = array<i32>} : memref<128x128xbf16, #tpu.memory_space<vmem>>, vector<16x72xbf16>,
    %272 = vector.extract_strided_slice %263 {offsets = [0, 9], sizes = [16, 72], strides = [1, 1]} : vector<16x81xbf16> to vector<16x72xbf16>
    %c32_155 = arith.constant 32 : index
    %c0_156 = arith.constant 0 : index
    %273 = vector.load %arg7[%c32_155, %c0_156] : memref<128x128xbf16, #tpu.memory_space<vmem>>, vector<16x72xbf16>
    tpu.vector_store %arg7[%c32_155, %c0_156], %272 {strides = array<i32>} : memref<128x128xbf16, #tpu.memory_space<vmem>>, vector<16x72xbf16>,
    %274 = vector.extract_strided_slice %263 {offsets = [0, 10], sizes = [16, 71], strides = [1, 1]} : vector<16x81xbf16> to vector<16x71xbf16>
    %c48_157 = arith.constant 48 : index
    %c0_158 = arith.constant 0 : index
    %275 = vector.load %arg7[%c48_157, %c0_158] : memref<128x128xbf16, #tpu.memory_space<vmem>>, vector<16x71xbf16>
    tpu.vector_store %arg7[%c48_157, %c0_158], %274 {strides = array<i32>} : memref<128x128xbf16, #tpu.memory_space<vmem>>, vector<16x71xbf16>,
    %276 = vector.extract_strided_slice %267 {offsets = [0, 0], sizes = [16, 72], strides = [1, 1]} : vector<16x81xbf16> to vector<16x72xbf16>
    %c64_159 = arith.constant 64 : index
    %c0_160 = arith.constant 0 : index
    %277 = vector.load %arg7[%c64_159, %c0_160] : memref<128x128xbf16, #tpu.memory_space<vmem>>, vector<16x72xbf16>
    tpu.vector_store %arg7[%c64_159, %c0_160], %276 {strides = array<i32>} : memref<128x128xbf16, #tpu.memory_space<vmem>>, vector<16x72xbf16>,
    %278 = vector.extract_strided_slice %267 {offsets = [0, 1], sizes = [16, 72], strides = [1, 1]} : vector<16x81xbf16> to vector<16x72xbf16>
    %c80_161 = arith.constant 80 : index
    %c0_162 = arith.constant 0 : index
    %279 = vector.load %arg7[%c80_161, %c0_162] : memref<128x128xbf16, #tpu.memory_space<vmem>>, vector<16x72xbf16>
    tpu.vector_store %arg7[%c80_161, %c0_162], %278 {strides = array<i32>} : memref<128x128xbf16, #tpu.memory_space<vmem>>, vector<16x72xbf16>,
    %280 = vector.extract_strided_slice %267 {offsets = [0, 9], sizes = [16, 72], strides = [1, 1]} : vector<16x81xbf16> to vector<16x72xbf16>
    %c96_163 = arith.constant 96 : index
    %c0_164 = arith.constant 0 : index
    %281 = vector.load %arg7[%c96_163, %c0_164] : memref<128x128xbf16, #tpu.memory_space<vmem>>, vector<16x72xbf16>
    tpu.vector_store %arg7[%c96_163, %c0_164], %280 {strides = array<i32>} : memref<128x128xbf16, #tpu.memory_space<vmem>>, vector<16x72xbf16>,
    %282 = vector.extract_strided_slice %267 {offsets = [0, 10], sizes = [16, 71], strides = [1, 1]} : vector<16x81xbf16> to vector<16x71xbf16>
    %c112_165 = arith.constant 112 : index
    %c0_166 = arith.constant 0 : index
    %283 = vector.load %arg7[%c112_165, %c0_166] : memref<128x128xbf16, #tpu.memory_space<vmem>>, vector<16x71xbf16>
    tpu.vector_store %arg7[%c112_165, %c0_166], %282 {strides = array<i32>} : memref<128x128xbf16, #tpu.memory_space<vmem>>, vector<16x71xbf16>,
    %c0_167 = arith.constant 0 : index
    %c0_168 = arith.constant 0 : index
    %284 = vector.load %arg7[%c0_167, %c0_168] : memref<128x128xbf16, #tpu.memory_space<vmem>>, vector<128x128xbf16>
    %cst_169 = arith.constant dense<0.000000e+00> : vector<64x128xf32>
    %285 = tpu.matmul %0, %284, %cst_169 {dimension_numbers = #tpu.dot_dimension_numbers<[1], [0], [0], [1], [0, 0, 1, 1], [], []>} : vector<64x128xbf16>, vector<128x128xbf16>, vector<64x128xf32> -> vector<64x128xf32>
    %286 = vector.broadcast %1 : vector<64x1xf32> to vector<64x128xf32>
    %287 = arith.addf %285, %286 : vector<64x128xf32>
    %cst_170 = arith.constant 2.000000e-01 : f32
    %288 = vector.broadcast %cst_170 : f32 to vector<64x128xf32>
    %289 = arith.mulf %287, %288 : vector<64x128xf32>
    %290 = arith.maximumf %287, %289 : vector<64x128xf32>
    %291 = vector.broadcast %2 : vector<64x1xf32> to vector<64x128xf32>
    %292 = arith.mulf %290, %291 : vector<64x128xf32>
    %cst_171 = arith.constant 2.000000e-01 : f32
    %293 = vector.broadcast %cst_171 : f32 to vector<64x128xf32>
    %294 = arith.mulf %292, %293 : vector<64x128xf32>
    %295 = arith.maximumf %292, %294 : vector<64x128xf32>
    %296 = vector.extract_strided_slice %295 {offsets = [0, 0], sizes = [8, 128], strides = [1, 1]} : vector<64x128xf32> to vector<8x128xf32>
    %297 = vector.extract_strided_slice %295 {offsets = [8, 0], sizes = [8, 128], strides = [1, 1]} : vector<64x128xf32> to vector<8x128xf32>
    %298 = arith.maximumf %296, %297 : vector<8x128xf32>
    %299 = vector.extract_strided_slice %295 {offsets = [16, 0], sizes = [8, 128], strides = [1, 1]} : vector<64x128xf32> to vector<8x128xf32>
    %300 = vector.extract_strided_slice %295 {offsets = [24, 0], sizes = [8, 128], strides = [1, 1]} : vector<64x128xf32> to vector<8x128xf32>
    %301 = arith.maximumf %299, %300 : vector<8x128xf32>
    %302 = vector.extract_strided_slice %295 {offsets = [32, 0], sizes = [8, 128], strides = [1, 1]} : vector<64x128xf32> to vector<8x128xf32>
    %303 = vector.extract_strided_slice %295 {offsets = [40, 0], sizes = [8, 128], strides = [1, 1]} : vector<64x128xf32> to vector<8x128xf32>
    %304 = arith.maximumf %302, %303 : vector<8x128xf32>
    %305 = vector.extract_strided_slice %295 {offsets = [48, 0], sizes = [8, 128], strides = [1, 1]} : vector<64x128xf32> to vector<8x128xf32>
    %306 = vector.extract_strided_slice %295 {offsets = [56, 0], sizes = [8, 128], strides = [1, 1]} : vector<64x128xf32> to vector<8x128xf32>
    %307 = arith.maximumf %305, %306 : vector<8x128xf32>
    %308 = arith.maximumf %298, %301 : vector<8x128xf32>
    %309 = arith.maximumf %304, %307 : vector<8x128xf32>
    %310 = arith.maximumf %308, %309 : vector<8x128xf32>
    %311 = vector.extract_strided_slice %310 {offsets = [0, 0], sizes = [8, 8], strides = [1, 1]} : vector<8x128xf32> to vector<8x8xf32>
    %c0_172 = arith.constant 0 : index
    %c0_173 = arith.constant 0 : index
    %c192 = arith.constant 192 : index
    %312 = vector.load %arg6[%c0_172, %c0_173, %c192] : memref<1x8x512xf32, #tpu.memory_space<vmem>>, vector<1x8x8xf32>
    %313 = vector.shape_cast %312 : vector<1x8x8xf32> to vector<8x8xf32>
    %314 = vector.shape_cast %311 : vector<8x8xf32> to vector<1x8x8xf32>
    tpu.vector_store %arg6[%c0_172, %c0_173, %c192], %314 {strides = array<i32>} : memref<1x8x512xf32, #tpu.memory_space<vmem>>, vector<1x8x8xf32>,
    %315 = vector.extract_strided_slice %310 {offsets = [0, 9], sizes = [8, 8], strides = [1, 1]} : vector<8x128xf32> to vector<8x8xf32>
    %c0_174 = arith.constant 0 : index
    %c0_175 = arith.constant 0 : index
    %c200 = arith.constant 200 : index
    %316 = vector.load %arg6[%c0_174, %c0_175, %c200] : memref<1x8x512xf32, #tpu.memory_space<vmem>>, vector<1x8x8xf32>
    %317 = vector.shape_cast %316 : vector<1x8x8xf32> to vector<8x8xf32>
    %318 = vector.shape_cast %315 : vector<8x8xf32> to vector<1x8x8xf32>
    tpu.vector_store %arg6[%c0_174, %c0_175, %c200], %318 {strides = array<i32>} : memref<1x8x512xf32, #tpu.memory_space<vmem>>, vector<1x8x8xf32>,
    %319 = vector.extract_strided_slice %310 {offsets = [0, 18], sizes = [8, 8], strides = [1, 1]} : vector<8x128xf32> to vector<8x8xf32>
    %c0_176 = arith.constant 0 : index
    %c0_177 = arith.constant 0 : index
    %c208 = arith.constant 208 : index
    %320 = vector.load %arg6[%c0_176, %c0_177, %c208] : memref<1x8x512xf32, #tpu.memory_space<vmem>>, vector<1x8x8xf32>
    %321 = vector.shape_cast %320 : vector<1x8x8xf32> to vector<8x8xf32>
    %322 = vector.shape_cast %319 : vector<8x8xf32> to vector<1x8x8xf32>
    tpu.vector_store %arg6[%c0_176, %c0_177, %c208], %322 {strides = array<i32>} : memref<1x8x512xf32, #tpu.memory_space<vmem>>, vector<1x8x8xf32>,
    %323 = vector.extract_strided_slice %310 {offsets = [0, 27], sizes = [8, 8], strides = [1, 1]} : vector<8x128xf32> to vector<8x8xf32>
    %c0_178 = arith.constant 0 : index
    %c0_179 = arith.constant 0 : index
    %c216 = arith.constant 216 : index
    %324 = vector.load %arg6[%c0_178, %c0_179, %c216] : memref<1x8x512xf32, #tpu.memory_space<vmem>>, vector<1x8x8xf32>
    %325 = vector.shape_cast %324 : vector<1x8x8xf32> to vector<8x8xf32>
    %326 = vector.shape_cast %323 : vector<8x8xf32> to vector<1x8x8xf32>
    tpu.vector_store %arg6[%c0_178, %c0_179, %c216], %326 {strides = array<i32>} : memref<1x8x512xf32, #tpu.memory_space<vmem>>, vector<1x8x8xf32>,
    %327 = vector.extract_strided_slice %310 {offsets = [0, 36], sizes = [8, 8], strides = [1, 1]} : vector<8x128xf32> to vector<8x8xf32>
    %c0_180 = arith.constant 0 : index
    %c0_181 = arith.constant 0 : index
    %c224 = arith.constant 224 : index
    %328 = vector.load %arg6[%c0_180, %c0_181, %c224] : memref<1x8x512xf32, #tpu.memory_space<vmem>>, vector<1x8x8xf32>
    %329 = vector.shape_cast %328 : vector<1x8x8xf32> to vector<8x8xf32>
    %330 = vector.shape_cast %327 : vector<8x8xf32> to vector<1x8x8xf32>
    tpu.vector_store %arg6[%c0_180, %c0_181, %c224], %330 {strides = array<i32>} : memref<1x8x512xf32, #tpu.memory_space<vmem>>, vector<1x8x8xf32>,
    %331 = vector.extract_strided_slice %310 {offsets = [0, 45], sizes = [8, 8], strides = [1, 1]} : vector<8x128xf32> to vector<8x8xf32>
    %c0_182 = arith.constant 0 : index
    %c0_183 = arith.constant 0 : index
    %c232 = arith.constant 232 : index
    %332 = vector.load %arg6[%c0_182, %c0_183, %c232] : memref<1x8x512xf32, #tpu.memory_space<vmem>>, vector<1x8x8xf32>
    %333 = vector.shape_cast %332 : vector<1x8x8xf32> to vector<8x8xf32>
    %334 = vector.shape_cast %331 : vector<8x8xf32> to vector<1x8x8xf32>
    tpu.vector_store %arg6[%c0_182, %c0_183, %c232], %334 {strides = array<i32>} : memref<1x8x512xf32, #tpu.memory_space<vmem>>, vector<1x8x8xf32>,
    %335 = vector.extract_strided_slice %310 {offsets = [0, 54], sizes = [8, 8], strides = [1, 1]} : vector<8x128xf32> to vector<8x8xf32>
    %c0_184 = arith.constant 0 : index
    %c0_185 = arith.constant 0 : index
    %c240 = arith.constant 240 : index
    %336 = vector.load %arg6[%c0_184, %c0_185, %c240] : memref<1x8x512xf32, #tpu.memory_space<vmem>>, vector<1x8x8xf32>
    %337 = vector.shape_cast %336 : vector<1x8x8xf32> to vector<8x8xf32>
    %338 = vector.shape_cast %335 : vector<8x8xf32> to vector<1x8x8xf32>
    tpu.vector_store %arg6[%c0_184, %c0_185, %c240], %338 {strides = array<i32>} : memref<1x8x512xf32, #tpu.memory_space<vmem>>, vector<1x8x8xf32>,
    %339 = vector.extract_strided_slice %310 {offsets = [0, 63], sizes = [8, 8], strides = [1, 1]} : vector<8x128xf32> to vector<8x8xf32>
    %c0_186 = arith.constant 0 : index
    %c0_187 = arith.constant 0 : index
    %c248 = arith.constant 248 : index
    %340 = vector.load %arg6[%c0_186, %c0_187, %c248] : memref<1x8x512xf32, #tpu.memory_space<vmem>>, vector<1x8x8xf32>
    %341 = vector.shape_cast %340 : vector<1x8x8xf32> to vector<8x8xf32>
    %342 = vector.shape_cast %339 : vector<8x8xf32> to vector<1x8x8xf32>
    tpu.vector_store %arg6[%c0_186, %c0_187, %c248], %342 {strides = array<i32>} : memref<1x8x512xf32, #tpu.memory_space<vmem>>, vector<1x8x8xf32>,
    %c8_i32_188 = arith.constant 8 : i32
    %343 = arith.muli %arg1, %c8_i32_188 : i32
    %c4_i32 = arith.constant 4 : i32
    %344 = arith.addi %343, %c4_i32 : i32
    %c0_i32_189 = arith.constant 0 : i32
    %345 = arith.addi %344, %c0_i32_189 : i32
    %c0_190 = arith.constant 0 : index
    %346 = arith.index_cast %345 : i32 to index
    %c0_191 = arith.constant 0 : index
    %c0_192 = arith.constant 0 : index
    %347 = vector.load %arg2[%c0_190, %346, %c0_191, %c0_192] : memref<1x9x16x81xbf16, #tpu.memory_space<vmem>>, vector<1x1x16x81xbf16>
    %348 = vector.shape_cast %347 : vector<1x1x16x81xbf16> to vector<16x81xbf16>
    %c1_i32_193 = arith.constant 1 : i32
    %349 = arith.addi %344, %c1_i32_193 : i32
    %c0_194 = arith.constant 0 : index
    %350 = arith.index_cast %349 : i32 to index
    %c0_195 = arith.constant 0 : index
    %c0_196 = arith.constant 0 : index
    %351 = vector.load %arg2[%c0_194, %350, %c0_195, %c0_196] : memref<1x9x16x81xbf16, #tpu.memory_space<vmem>>, vector<1x1x16x81xbf16>
    %352 = vector.shape_cast %351 : vector<1x1x16x81xbf16> to vector<16x81xbf16>
    %353 = vector.extract_strided_slice %348 {offsets = [0, 0], sizes = [16, 72], strides = [1, 1]} : vector<16x81xbf16> to vector<16x72xbf16>
    %c0_197 = arith.constant 0 : index
    %c0_198 = arith.constant 0 : index
    %354 = vector.load %arg7[%c0_197, %c0_198] : memref<128x128xbf16, #tpu.memory_space<vmem>>, vector<16x72xbf16>
    tpu.vector_store %arg7[%c0_197, %c0_198], %353 {strides = array<i32>} : memref<128x128xbf16, #tpu.memory_space<vmem>>, vector<16x72xbf16>,
    %355 = vector.extract_strided_slice %348 {offsets = [0, 1], sizes = [16, 72], strides = [1, 1]} : vector<16x81xbf16> to vector<16x72xbf16>
    %c16_199 = arith.constant 16 : index
    %c0_200 = arith.constant 0 : index
    %356 = vector.load %arg7[%c16_199, %c0_200] : memref<128x128xbf16, #tpu.memory_space<vmem>>, vector<16x72xbf16>
    tpu.vector_store %arg7[%c16_199, %c0_200], %355 {strides = array<i32>} : memref<128x128xbf16, #tpu.memory_space<vmem>>, vector<16x72xbf16>,
    %357 = vector.extract_strided_slice %348 {offsets = [0, 9], sizes = [16, 72], strides = [1, 1]} : vector<16x81xbf16> to vector<16x72xbf16>
    %c32_201 = arith.constant 32 : index
    %c0_202 = arith.constant 0 : index
    %358 = vector.load %arg7[%c32_201, %c0_202] : memref<128x128xbf16, #tpu.memory_space<vmem>>, vector<16x72xbf16>
    tpu.vector_store %arg7[%c32_201, %c0_202], %357 {strides = array<i32>} : memref<128x128xbf16, #tpu.memory_space<vmem>>, vector<16x72xbf16>,
    %359 = vector.extract_strided_slice %348 {offsets = [0, 10], sizes = [16, 71], strides = [1, 1]} : vector<16x81xbf16> to vector<16x71xbf16>
    %c48_203 = arith.constant 48 : index
    %c0_204 = arith.constant 0 : index
    %360 = vector.load %arg7[%c48_203, %c0_204] : memref<128x128xbf16, #tpu.memory_space<vmem>>, vector<16x71xbf16>
    tpu.vector_store %arg7[%c48_203, %c0_204], %359 {strides = array<i32>} : memref<128x128xbf16, #tpu.memory_space<vmem>>, vector<16x71xbf16>,
    %361 = vector.extract_strided_slice %352 {offsets = [0, 0], sizes = [16, 72], strides = [1, 1]} : vector<16x81xbf16> to vector<16x72xbf16>
    %c64_205 = arith.constant 64 : index
    %c0_206 = arith.constant 0 : index
    %362 = vector.load %arg7[%c64_205, %c0_206] : memref<128x128xbf16, #tpu.memory_space<vmem>>, vector<16x72xbf16>
    tpu.vector_store %arg7[%c64_205, %c0_206], %361 {strides = array<i32>} : memref<128x128xbf16, #tpu.memory_space<vmem>>, vector<16x72xbf16>,
    %363 = vector.extract_strided_slice %352 {offsets = [0, 1], sizes = [16, 72], strides = [1, 1]} : vector<16x81xbf16> to vector<16x72xbf16>
    %c80_207 = arith.constant 80 : index
    %c0_208 = arith.constant 0 : index
    %364 = vector.load %arg7[%c80_207, %c0_208] : memref<128x128xbf16, #tpu.memory_space<vmem>>, vector<16x72xbf16>
    tpu.vector_store %arg7[%c80_207, %c0_208], %363 {strides = array<i32>} : memref<128x128xbf16, #tpu.memory_space<vmem>>, vector<16x72xbf16>,
    %365 = vector.extract_strided_slice %352 {offsets = [0, 9], sizes = [16, 72], strides = [1, 1]} : vector<16x81xbf16> to vector<16x72xbf16>
    %c96_209 = arith.constant 96 : index
    %c0_210 = arith.constant 0 : index
    %366 = vector.load %arg7[%c96_209, %c0_210] : memref<128x128xbf16, #tpu.memory_space<vmem>>, vector<16x72xbf16>
    tpu.vector_store %arg7[%c96_209, %c0_210], %365 {strides = array<i32>} : memref<128x128xbf16, #tpu.memory_space<vmem>>, vector<16x72xbf16>,
    %367 = vector.extract_strided_slice %352 {offsets = [0, 10], sizes = [16, 71], strides = [1, 1]} : vector<16x81xbf16> to vector<16x71xbf16>
    %c112_211 = arith.constant 112 : index
    %c0_212 = arith.constant 0 : index
    %368 = vector.load %arg7[%c112_211, %c0_212] : memref<128x128xbf16, #tpu.memory_space<vmem>>, vector<16x71xbf16>
    tpu.vector_store %arg7[%c112_211, %c0_212], %367 {strides = array<i32>} : memref<128x128xbf16, #tpu.memory_space<vmem>>, vector<16x71xbf16>,
    %c0_213 = arith.constant 0 : index
    %c0_214 = arith.constant 0 : index
    %369 = vector.load %arg7[%c0_213, %c0_214] : memref<128x128xbf16, #tpu.memory_space<vmem>>, vector<128x128xbf16>
    %cst_215 = arith.constant dense<0.000000e+00> : vector<64x128xf32>
    %370 = tpu.matmul %0, %369, %cst_215 {dimension_numbers = #tpu.dot_dimension_numbers<[1], [0], [0], [1], [0, 0, 1, 1], [], []>} : vector<64x128xbf16>, vector<128x128xbf16>, vector<64x128xf32> -> vector<64x128xf32>
    %371 = vector.broadcast %1 : vector<64x1xf32> to vector<64x128xf32>
    %372 = arith.addf %370, %371 : vector<64x128xf32>
    %cst_216 = arith.constant 2.000000e-01 : f32
    %373 = vector.broadcast %cst_216 : f32 to vector<64x128xf32>
    %374 = arith.mulf %372, %373 : vector<64x128xf32>
    %375 = arith.maximumf %372, %374 : vector<64x128xf32>
    %376 = vector.broadcast %2 : vector<64x1xf32> to vector<64x128xf32>
    %377 = arith.mulf %375, %376 : vector<64x128xf32>
    %cst_217 = arith.constant 2.000000e-01 : f32
    %378 = vector.broadcast %cst_217 : f32 to vector<64x128xf32>
    %379 = arith.mulf %377, %378 : vector<64x128xf32>
    %380 = arith.maximumf %377, %379 : vector<64x128xf32>
    %381 = vector.extract_strided_slice %380 {offsets = [0, 0], sizes = [8, 128], strides = [1, 1]} : vector<64x128xf32> to vector<8x128xf32>
    %382 = vector.extract_strided_slice %380 {offsets = [8, 0], sizes = [8, 128], strides = [1, 1]} : vector<64x128xf32> to vector<8x128xf32>
    %383 = arith.maximumf %381, %382 : vector<8x128xf32>
    %384 = vector.extract_strided_slice %380 {offsets = [16, 0], sizes = [8, 128], strides = [1, 1]} : vector<64x128xf32> to vector<8x128xf32>
    %385 = vector.extract_strided_slice %380 {offsets = [24, 0], sizes = [8, 128], strides = [1, 1]} : vector<64x128xf32> to vector<8x128xf32>
    %386 = arith.maximumf %384, %385 : vector<8x128xf32>
    %387 = vector.extract_strided_slice %380 {offsets = [32, 0], sizes = [8, 128], strides = [1, 1]} : vector<64x128xf32> to vector<8x128xf32>
    %388 = vector.extract_strided_slice %380 {offsets = [40, 0], sizes = [8, 128], strides = [1, 1]} : vector<64x128xf32> to vector<8x128xf32>
    %389 = arith.maximumf %387, %388 : vector<8x128xf32>
    %390 = vector.extract_strided_slice %380 {offsets = [48, 0], sizes = [8, 128], strides = [1, 1]} : vector<64x128xf32> to vector<8x128xf32>
    %391 = vector.extract_strided_slice %380 {offsets = [56, 0], sizes = [8, 128], strides = [1, 1]} : vector<64x128xf32> to vector<8x128xf32>
    %392 = arith.maximumf %390, %391 : vector<8x128xf32>
    %393 = arith.maximumf %383, %386 : vector<8x128xf32>
    %394 = arith.maximumf %389, %392 : vector<8x128xf32>
    %395 = arith.maximumf %393, %394 : vector<8x128xf32>
    %396 = vector.extract_strided_slice %395 {offsets = [0, 0], sizes = [8, 8], strides = [1, 1]} : vector<8x128xf32> to vector<8x8xf32>
    %c0_218 = arith.constant 0 : index
    %c0_219 = arith.constant 0 : index
    %c256 = arith.constant 256 : index
    %397 = vector.load %arg6[%c0_218, %c0_219, %c256] : memref<1x8x512xf32, #tpu.memory_space<vmem>>, vector<1x8x8xf32>
    %398 = vector.shape_cast %397 : vector<1x8x8xf32> to vector<8x8xf32>
    %399 = vector.shape_cast %396 : vector<8x8xf32> to vector<1x8x8xf32>
    tpu.vector_store %arg6[%c0_218, %c0_219, %c256], %399 {strides = array<i32>} : memref<1x8x512xf32, #tpu.memory_space<vmem>>, vector<1x8x8xf32>,
    %400 = vector.extract_strided_slice %395 {offsets = [0, 9], sizes = [8, 8], strides = [1, 1]} : vector<8x128xf32> to vector<8x8xf32>
    %c0_220 = arith.constant 0 : index
    %c0_221 = arith.constant 0 : index
    %c264 = arith.constant 264 : index
    %401 = vector.load %arg6[%c0_220, %c0_221, %c264] : memref<1x8x512xf32, #tpu.memory_space<vmem>>, vector<1x8x8xf32>
    %402 = vector.shape_cast %401 : vector<1x8x8xf32> to vector<8x8xf32>
    %403 = vector.shape_cast %400 : vector<8x8xf32> to vector<1x8x8xf32>
    tpu.vector_store %arg6[%c0_220, %c0_221, %c264], %403 {strides = array<i32>} : memref<1x8x512xf32, #tpu.memory_space<vmem>>, vector<1x8x8xf32>,
    %404 = vector.extract_strided_slice %395 {offsets = [0, 18], sizes = [8, 8], strides = [1, 1]} : vector<8x128xf32> to vector<8x8xf32>
    %c0_222 = arith.constant 0 : index
    %c0_223 = arith.constant 0 : index
    %c272 = arith.constant 272 : index
    %405 = vector.load %arg6[%c0_222, %c0_223, %c272] : memref<1x8x512xf32, #tpu.memory_space<vmem>>, vector<1x8x8xf32>
    %406 = vector.shape_cast %405 : vector<1x8x8xf32> to vector<8x8xf32>
    %407 = vector.shape_cast %404 : vector<8x8xf32> to vector<1x8x8xf32>
    tpu.vector_store %arg6[%c0_222, %c0_223, %c272], %407 {strides = array<i32>} : memref<1x8x512xf32, #tpu.memory_space<vmem>>, vector<1x8x8xf32>,
    %408 = vector.extract_strided_slice %395 {offsets = [0, 27], sizes = [8, 8], strides = [1, 1]} : vector<8x128xf32> to vector<8x8xf32>
    %c0_224 = arith.constant 0 : index
    %c0_225 = arith.constant 0 : index
    %c280 = arith.constant 280 : index
    %409 = vector.load %arg6[%c0_224, %c0_225, %c280] : memref<1x8x512xf32, #tpu.memory_space<vmem>>, vector<1x8x8xf32>
    %410 = vector.shape_cast %409 : vector<1x8x8xf32> to vector<8x8xf32>
    %411 = vector.shape_cast %408 : vector<8x8xf32> to vector<1x8x8xf32>
    tpu.vector_store %arg6[%c0_224, %c0_225, %c280], %411 {strides = array<i32>} : memref<1x8x512xf32, #tpu.memory_space<vmem>>, vector<1x8x8xf32>,
    %412 = vector.extract_strided_slice %395 {offsets = [0, 36], sizes = [8, 8], strides = [1, 1]} : vector<8x128xf32> to vector<8x8xf32>
    %c0_226 = arith.constant 0 : index
    %c0_227 = arith.constant 0 : index
    %c288 = arith.constant 288 : index
    %413 = vector.load %arg6[%c0_226, %c0_227, %c288] : memref<1x8x512xf32, #tpu.memory_space<vmem>>, vector<1x8x8xf32>
    %414 = vector.shape_cast %413 : vector<1x8x8xf32> to vector<8x8xf32>
    %415 = vector.shape_cast %412 : vector<8x8xf32> to vector<1x8x8xf32>
    tpu.vector_store %arg6[%c0_226, %c0_227, %c288], %415 {strides = array<i32>} : memref<1x8x512xf32, #tpu.memory_space<vmem>>, vector<1x8x8xf32>,
    %416 = vector.extract_strided_slice %395 {offsets = [0, 45], sizes = [8, 8], strides = [1, 1]} : vector<8x128xf32> to vector<8x8xf32>
    %c0_228 = arith.constant 0 : index
    %c0_229 = arith.constant 0 : index
    %c296 = arith.constant 296 : index
    %417 = vector.load %arg6[%c0_228, %c0_229, %c296] : memref<1x8x512xf32, #tpu.memory_space<vmem>>, vector<1x8x8xf32>
    %418 = vector.shape_cast %417 : vector<1x8x8xf32> to vector<8x8xf32>
    %419 = vector.shape_cast %416 : vector<8x8xf32> to vector<1x8x8xf32>
    tpu.vector_store %arg6[%c0_228, %c0_229, %c296], %419 {strides = array<i32>} : memref<1x8x512xf32, #tpu.memory_space<vmem>>, vector<1x8x8xf32>,
    %420 = vector.extract_strided_slice %395 {offsets = [0, 54], sizes = [8, 8], strides = [1, 1]} : vector<8x128xf32> to vector<8x8xf32>
    %c0_230 = arith.constant 0 : index
    %c0_231 = arith.constant 0 : index
    %c304 = arith.constant 304 : index
    %421 = vector.load %arg6[%c0_230, %c0_231, %c304] : memref<1x8x512xf32, #tpu.memory_space<vmem>>, vector<1x8x8xf32>
    %422 = vector.shape_cast %421 : vector<1x8x8xf32> to vector<8x8xf32>
    %423 = vector.shape_cast %420 : vector<8x8xf32> to vector<1x8x8xf32>
    tpu.vector_store %arg6[%c0_230, %c0_231, %c304], %423 {strides = array<i32>} : memref<1x8x512xf32, #tpu.memory_space<vmem>>, vector<1x8x8xf32>,
    %424 = vector.extract_strided_slice %395 {offsets = [0, 63], sizes = [8, 8], strides = [1, 1]} : vector<8x128xf32> to vector<8x8xf32>
    %c0_232 = arith.constant 0 : index
    %c0_233 = arith.constant 0 : index
    %c312 = arith.constant 312 : index
    %425 = vector.load %arg6[%c0_232, %c0_233, %c312] : memref<1x8x512xf32, #tpu.memory_space<vmem>>, vector<1x8x8xf32>
    %426 = vector.shape_cast %425 : vector<1x8x8xf32> to vector<8x8xf32>
    %427 = vector.shape_cast %424 : vector<8x8xf32> to vector<1x8x8xf32>
    tpu.vector_store %arg6[%c0_232, %c0_233, %c312], %427 {strides = array<i32>} : memref<1x8x512xf32, #tpu.memory_space<vmem>>, vector<1x8x8xf32>,
    %c8_i32_234 = arith.constant 8 : i32
    %428 = arith.muli %arg1, %c8_i32_234 : i32
    %c5_i32 = arith.constant 5 : i32
    %429 = arith.addi %428, %c5_i32 : i32
    %c0_i32_235 = arith.constant 0 : i32
    %430 = arith.addi %429, %c0_i32_235 : i32
    %c0_236 = arith.constant 0 : index
    %431 = arith.index_cast %430 : i32 to index
    %c0_237 = arith.constant 0 : index
    %c0_238 = arith.constant 0 : index
    %432 = vector.load %arg2[%c0_236, %431, %c0_237, %c0_238] : memref<1x9x16x81xbf16, #tpu.memory_space<vmem>>, vector<1x1x16x81xbf16>
    %433 = vector.shape_cast %432 : vector<1x1x16x81xbf16> to vector<16x81xbf16>
    %c1_i32_239 = arith.constant 1 : i32
    %434 = arith.addi %429, %c1_i32_239 : i32
    %c0_240 = arith.constant 0 : index
    %435 = arith.index_cast %434 : i32 to index
    %c0_241 = arith.constant 0 : index
    %c0_242 = arith.constant 0 : index
    %436 = vector.load %arg2[%c0_240, %435, %c0_241, %c0_242] : memref<1x9x16x81xbf16, #tpu.memory_space<vmem>>, vector<1x1x16x81xbf16>
    %437 = vector.shape_cast %436 : vector<1x1x16x81xbf16> to vector<16x81xbf16>
    %438 = vector.extract_strided_slice %433 {offsets = [0, 0], sizes = [16, 72], strides = [1, 1]} : vector<16x81xbf16> to vector<16x72xbf16>
    %c0_243 = arith.constant 0 : index
    %c0_244 = arith.constant 0 : index
    %439 = vector.load %arg7[%c0_243, %c0_244] : memref<128x128xbf16, #tpu.memory_space<vmem>>, vector<16x72xbf16>
    tpu.vector_store %arg7[%c0_243, %c0_244], %438 {strides = array<i32>} : memref<128x128xbf16, #tpu.memory_space<vmem>>, vector<16x72xbf16>,
    %440 = vector.extract_strided_slice %433 {offsets = [0, 1], sizes = [16, 72], strides = [1, 1]} : vector<16x81xbf16> to vector<16x72xbf16>
    %c16_245 = arith.constant 16 : index
    %c0_246 = arith.constant 0 : index
    %441 = vector.load %arg7[%c16_245, %c0_246] : memref<128x128xbf16, #tpu.memory_space<vmem>>, vector<16x72xbf16>
    tpu.vector_store %arg7[%c16_245, %c0_246], %440 {strides = array<i32>} : memref<128x128xbf16, #tpu.memory_space<vmem>>, vector<16x72xbf16>,
    %442 = vector.extract_strided_slice %433 {offsets = [0, 9], sizes = [16, 72], strides = [1, 1]} : vector<16x81xbf16> to vector<16x72xbf16>
    %c32_247 = arith.constant 32 : index
    %c0_248 = arith.constant 0 : index
    %443 = vector.load %arg7[%c32_247, %c0_248] : memref<128x128xbf16, #tpu.memory_space<vmem>>, vector<16x72xbf16>
    tpu.vector_store %arg7[%c32_247, %c0_248], %442 {strides = array<i32>} : memref<128x128xbf16, #tpu.memory_space<vmem>>, vector<16x72xbf16>,
    %444 = vector.extract_strided_slice %433 {offsets = [0, 10], sizes = [16, 71], strides = [1, 1]} : vector<16x81xbf16> to vector<16x71xbf16>
    %c48_249 = arith.constant 48 : index
    %c0_250 = arith.constant 0 : index
    %445 = vector.load %arg7[%c48_249, %c0_250] : memref<128x128xbf16, #tpu.memory_space<vmem>>, vector<16x71xbf16>
    tpu.vector_store %arg7[%c48_249, %c0_250], %444 {strides = array<i32>} : memref<128x128xbf16, #tpu.memory_space<vmem>>, vector<16x71xbf16>,
    %446 = vector.extract_strided_slice %437 {offsets = [0, 0], sizes = [16, 72], strides = [1, 1]} : vector<16x81xbf16> to vector<16x72xbf16>
    %c64_251 = arith.constant 64 : index
    %c0_252 = arith.constant 0 : index
    %447 = vector.load %arg7[%c64_251, %c0_252] : memref<128x128xbf16, #tpu.memory_space<vmem>>, vector<16x72xbf16>
    tpu.vector_store %arg7[%c64_251, %c0_252], %446 {strides = array<i32>} : memref<128x128xbf16, #tpu.memory_space<vmem>>, vector<16x72xbf16>,
    %448 = vector.extract_strided_slice %437 {offsets = [0, 1], sizes = [16, 72], strides = [1, 1]} : vector<16x81xbf16> to vector<16x72xbf16>
    %c80_253 = arith.constant 80 : index
    %c0_254 = arith.constant 0 : index
    %449 = vector.load %arg7[%c80_253, %c0_254] : memref<128x128xbf16, #tpu.memory_space<vmem>>, vector<16x72xbf16>
    tpu.vector_store %arg7[%c80_253, %c0_254], %448 {strides = array<i32>} : memref<128x128xbf16, #tpu.memory_space<vmem>>, vector<16x72xbf16>,
    %450 = vector.extract_strided_slice %437 {offsets = [0, 9], sizes = [16, 72], strides = [1, 1]} : vector<16x81xbf16> to vector<16x72xbf16>
    %c96_255 = arith.constant 96 : index
    %c0_256 = arith.constant 0 : index
    %451 = vector.load %arg7[%c96_255, %c0_256] : memref<128x128xbf16, #tpu.memory_space<vmem>>, vector<16x72xbf16>
    tpu.vector_store %arg7[%c96_255, %c0_256], %450 {strides = array<i32>} : memref<128x128xbf16, #tpu.memory_space<vmem>>, vector<16x72xbf16>,
    %452 = vector.extract_strided_slice %437 {offsets = [0, 10], sizes = [16, 71], strides = [1, 1]} : vector<16x81xbf16> to vector<16x71xbf16>
    %c112_257 = arith.constant 112 : index
    %c0_258 = arith.constant 0 : index
    %453 = vector.load %arg7[%c112_257, %c0_258] : memref<128x128xbf16, #tpu.memory_space<vmem>>, vector<16x71xbf16>
    tpu.vector_store %arg7[%c112_257, %c0_258], %452 {strides = array<i32>} : memref<128x128xbf16, #tpu.memory_space<vmem>>, vector<16x71xbf16>,
    %c0_259 = arith.constant 0 : index
    %c0_260 = arith.constant 0 : index
    %454 = vector.load %arg7[%c0_259, %c0_260] : memref<128x128xbf16, #tpu.memory_space<vmem>>, vector<128x128xbf16>
    %cst_261 = arith.constant dense<0.000000e+00> : vector<64x128xf32>
    %455 = tpu.matmul %0, %454, %cst_261 {dimension_numbers = #tpu.dot_dimension_numbers<[1], [0], [0], [1], [0, 0, 1, 1], [], []>} : vector<64x128xbf16>, vector<128x128xbf16>, vector<64x128xf32> -> vector<64x128xf32>
    %456 = vector.broadcast %1 : vector<64x1xf32> to vector<64x128xf32>
    %457 = arith.addf %455, %456 : vector<64x128xf32>
    %cst_262 = arith.constant 2.000000e-01 : f32
    %458 = vector.broadcast %cst_262 : f32 to vector<64x128xf32>
    %459 = arith.mulf %457, %458 : vector<64x128xf32>
    %460 = arith.maximumf %457, %459 : vector<64x128xf32>
    %461 = vector.broadcast %2 : vector<64x1xf32> to vector<64x128xf32>
    %462 = arith.mulf %460, %461 : vector<64x128xf32>
    %cst_263 = arith.constant 2.000000e-01 : f32
    %463 = vector.broadcast %cst_263 : f32 to vector<64x128xf32>
    %464 = arith.mulf %462, %463 : vector<64x128xf32>
    %465 = arith.maximumf %462, %464 : vector<64x128xf32>
    %466 = vector.extract_strided_slice %465 {offsets = [0, 0], sizes = [8, 128], strides = [1, 1]} : vector<64x128xf32> to vector<8x128xf32>
    %467 = vector.extract_strided_slice %465 {offsets = [8, 0], sizes = [8, 128], strides = [1, 1]} : vector<64x128xf32> to vector<8x128xf32>
    %468 = arith.maximumf %466, %467 : vector<8x128xf32>
    %469 = vector.extract_strided_slice %465 {offsets = [16, 0], sizes = [8, 128], strides = [1, 1]} : vector<64x128xf32> to vector<8x128xf32>
    %470 = vector.extract_strided_slice %465 {offsets = [24, 0], sizes = [8, 128], strides = [1, 1]} : vector<64x128xf32> to vector<8x128xf32>
    %471 = arith.maximumf %469, %470 : vector<8x128xf32>
    %472 = vector.extract_strided_slice %465 {offsets = [32, 0], sizes = [8, 128], strides = [1, 1]} : vector<64x128xf32> to vector<8x128xf32>
    %473 = vector.extract_strided_slice %465 {offsets = [40, 0], sizes = [8, 128], strides = [1, 1]} : vector<64x128xf32> to vector<8x128xf32>
    %474 = arith.maximumf %472, %473 : vector<8x128xf32>
    %475 = vector.extract_strided_slice %465 {offsets = [48, 0], sizes = [8, 128], strides = [1, 1]} : vector<64x128xf32> to vector<8x128xf32>
    %476 = vector.extract_strided_slice %465 {offsets = [56, 0], sizes = [8, 128], strides = [1, 1]} : vector<64x128xf32> to vector<8x128xf32>
    %477 = arith.maximumf %475, %476 : vector<8x128xf32>
    %478 = arith.maximumf %468, %471 : vector<8x128xf32>
    %479 = arith.maximumf %474, %477 : vector<8x128xf32>
    %480 = arith.maximumf %478, %479 : vector<8x128xf32>
    %481 = vector.extract_strided_slice %480 {offsets = [0, 0], sizes = [8, 8], strides = [1, 1]} : vector<8x128xf32> to vector<8x8xf32>
    %c0_264 = arith.constant 0 : index
    %c0_265 = arith.constant 0 : index
    %c320 = arith.constant 320 : index
    %482 = vector.load %arg6[%c0_264, %c0_265, %c320] : memref<1x8x512xf32, #tpu.memory_space<vmem>>, vector<1x8x8xf32>
    %483 = vector.shape_cast %482 : vector<1x8x8xf32> to vector<8x8xf32>
    %484 = vector.shape_cast %481 : vector<8x8xf32> to vector<1x8x8xf32>
    tpu.vector_store %arg6[%c0_264, %c0_265, %c320], %484 {strides = array<i32>} : memref<1x8x512xf32, #tpu.memory_space<vmem>>, vector<1x8x8xf32>,
    %485 = vector.extract_strided_slice %480 {offsets = [0, 9], sizes = [8, 8], strides = [1, 1]} : vector<8x128xf32> to vector<8x8xf32>
    %c0_266 = arith.constant 0 : index
    %c0_267 = arith.constant 0 : index
    %c328 = arith.constant 328 : index
    %486 = vector.load %arg6[%c0_266, %c0_267, %c328] : memref<1x8x512xf32, #tpu.memory_space<vmem>>, vector<1x8x8xf32>
    %487 = vector.shape_cast %486 : vector<1x8x8xf32> to vector<8x8xf32>
    %488 = vector.shape_cast %485 : vector<8x8xf32> to vector<1x8x8xf32>
    tpu.vector_store %arg6[%c0_266, %c0_267, %c328], %488 {strides = array<i32>} : memref<1x8x512xf32, #tpu.memory_space<vmem>>, vector<1x8x8xf32>,
    %489 = vector.extract_strided_slice %480 {offsets = [0, 18], sizes = [8, 8], strides = [1, 1]} : vector<8x128xf32> to vector<8x8xf32>
    %c0_268 = arith.constant 0 : index
    %c0_269 = arith.constant 0 : index
    %c336 = arith.constant 336 : index
    %490 = vector.load %arg6[%c0_268, %c0_269, %c336] : memref<1x8x512xf32, #tpu.memory_space<vmem>>, vector<1x8x8xf32>
    %491 = vector.shape_cast %490 : vector<1x8x8xf32> to vector<8x8xf32>
    %492 = vector.shape_cast %489 : vector<8x8xf32> to vector<1x8x8xf32>
    tpu.vector_store %arg6[%c0_268, %c0_269, %c336], %492 {strides = array<i32>} : memref<1x8x512xf32, #tpu.memory_space<vmem>>, vector<1x8x8xf32>,
    %493 = vector.extract_strided_slice %480 {offsets = [0, 27], sizes = [8, 8], strides = [1, 1]} : vector<8x128xf32> to vector<8x8xf32>
    %c0_270 = arith.constant 0 : index
    %c0_271 = arith.constant 0 : index
    %c344 = arith.constant 344 : index
    %494 = vector.load %arg6[%c0_270, %c0_271, %c344] : memref<1x8x512xf32, #tpu.memory_space<vmem>>, vector<1x8x8xf32>
    %495 = vector.shape_cast %494 : vector<1x8x8xf32> to vector<8x8xf32>
    %496 = vector.shape_cast %493 : vector<8x8xf32> to vector<1x8x8xf32>
    tpu.vector_store %arg6[%c0_270, %c0_271, %c344], %496 {strides = array<i32>} : memref<1x8x512xf32, #tpu.memory_space<vmem>>, vector<1x8x8xf32>,
    %497 = vector.extract_strided_slice %480 {offsets = [0, 36], sizes = [8, 8], strides = [1, 1]} : vector<8x128xf32> to vector<8x8xf32>
    %c0_272 = arith.constant 0 : index
    %c0_273 = arith.constant 0 : index
    %c352 = arith.constant 352 : index
    %498 = vector.load %arg6[%c0_272, %c0_273, %c352] : memref<1x8x512xf32, #tpu.memory_space<vmem>>, vector<1x8x8xf32>
    %499 = vector.shape_cast %498 : vector<1x8x8xf32> to vector<8x8xf32>
    %500 = vector.shape_cast %497 : vector<8x8xf32> to vector<1x8x8xf32>
    tpu.vector_store %arg6[%c0_272, %c0_273, %c352], %500 {strides = array<i32>} : memref<1x8x512xf32, #tpu.memory_space<vmem>>, vector<1x8x8xf32>,
    %501 = vector.extract_strided_slice %480 {offsets = [0, 45], sizes = [8, 8], strides = [1, 1]} : vector<8x128xf32> to vector<8x8xf32>
    %c0_274 = arith.constant 0 : index
    %c0_275 = arith.constant 0 : index
    %c360 = arith.constant 360 : index
    %502 = vector.load %arg6[%c0_274, %c0_275, %c360] : memref<1x8x512xf32, #tpu.memory_space<vmem>>, vector<1x8x8xf32>
    %503 = vector.shape_cast %502 : vector<1x8x8xf32> to vector<8x8xf32>
    %504 = vector.shape_cast %501 : vector<8x8xf32> to vector<1x8x8xf32>
    tpu.vector_store %arg6[%c0_274, %c0_275, %c360], %504 {strides = array<i32>} : memref<1x8x512xf32, #tpu.memory_space<vmem>>, vector<1x8x8xf32>,
    %505 = vector.extract_strided_slice %480 {offsets = [0, 54], sizes = [8, 8], strides = [1, 1]} : vector<8x128xf32> to vector<8x8xf32>
    %c0_276 = arith.constant 0 : index
    %c0_277 = arith.constant 0 : index
    %c368 = arith.constant 368 : index
    %506 = vector.load %arg6[%c0_276, %c0_277, %c368] : memref<1x8x512xf32, #tpu.memory_space<vmem>>, vector<1x8x8xf32>
    %507 = vector.shape_cast %506 : vector<1x8x8xf32> to vector<8x8xf32>
    %508 = vector.shape_cast %505 : vector<8x8xf32> to vector<1x8x8xf32>
    tpu.vector_store %arg6[%c0_276, %c0_277, %c368], %508 {strides = array<i32>} : memref<1x8x512xf32, #tpu.memory_space<vmem>>, vector<1x8x8xf32>,
    %509 = vector.extract_strided_slice %480 {offsets = [0, 63], sizes = [8, 8], strides = [1, 1]} : vector<8x128xf32> to vector<8x8xf32>
    %c0_278 = arith.constant 0 : index
    %c0_279 = arith.constant 0 : index
    %c376 = arith.constant 376 : index
    %510 = vector.load %arg6[%c0_278, %c0_279, %c376] : memref<1x8x512xf32, #tpu.memory_space<vmem>>, vector<1x8x8xf32>
    %511 = vector.shape_cast %510 : vector<1x8x8xf32> to vector<8x8xf32>
    %512 = vector.shape_cast %509 : vector<8x8xf32> to vector<1x8x8xf32>
    tpu.vector_store %arg6[%c0_278, %c0_279, %c376], %512 {strides = array<i32>} : memref<1x8x512xf32, #tpu.memory_space<vmem>>, vector<1x8x8xf32>,
    %c8_i32_280 = arith.constant 8 : i32
    %513 = arith.muli %arg1, %c8_i32_280 : i32
    %c6_i32 = arith.constant 6 : i32
    %514 = arith.addi %513, %c6_i32 : i32
    %c0_i32_281 = arith.constant 0 : i32
    %515 = arith.addi %514, %c0_i32_281 : i32
    %c0_282 = arith.constant 0 : index
    %516 = arith.index_cast %515 : i32 to index
    %c0_283 = arith.constant 0 : index
    %c0_284 = arith.constant 0 : index
    %517 = vector.load %arg2[%c0_282, %516, %c0_283, %c0_284] : memref<1x9x16x81xbf16, #tpu.memory_space<vmem>>, vector<1x1x16x81xbf16>
    %518 = vector.shape_cast %517 : vector<1x1x16x81xbf16> to vector<16x81xbf16>
    %c1_i32_285 = arith.constant 1 : i32
    %519 = arith.addi %514, %c1_i32_285 : i32
    %c0_286 = arith.constant 0 : index
    %520 = arith.index_cast %519 : i32 to index
    %c0_287 = arith.constant 0 : index
    %c0_288 = arith.constant 0 : index
    %521 = vector.load %arg2[%c0_286, %520, %c0_287, %c0_288] : memref<1x9x16x81xbf16, #tpu.memory_space<vmem>>, vector<1x1x16x81xbf16>
    %522 = vector.shape_cast %521 : vector<1x1x16x81xbf16> to vector<16x81xbf16>
    %523 = vector.extract_strided_slice %518 {offsets = [0, 0], sizes = [16, 72], strides = [1, 1]} : vector<16x81xbf16> to vector<16x72xbf16>
    %c0_289 = arith.constant 0 : index
    %c0_290 = arith.constant 0 : index
    %524 = vector.load %arg7[%c0_289, %c0_290] : memref<128x128xbf16, #tpu.memory_space<vmem>>, vector<16x72xbf16>
    tpu.vector_store %arg7[%c0_289, %c0_290], %523 {strides = array<i32>} : memref<128x128xbf16, #tpu.memory_space<vmem>>, vector<16x72xbf16>,
    %525 = vector.extract_strided_slice %518 {offsets = [0, 1], sizes = [16, 72], strides = [1, 1]} : vector<16x81xbf16> to vector<16x72xbf16>
    %c16_291 = arith.constant 16 : index
    %c0_292 = arith.constant 0 : index
    %526 = vector.load %arg7[%c16_291, %c0_292] : memref<128x128xbf16, #tpu.memory_space<vmem>>, vector<16x72xbf16>
    tpu.vector_store %arg7[%c16_291, %c0_292], %525 {strides = array<i32>} : memref<128x128xbf16, #tpu.memory_space<vmem>>, vector<16x72xbf16>,
    %527 = vector.extract_strided_slice %518 {offsets = [0, 9], sizes = [16, 72], strides = [1, 1]} : vector<16x81xbf16> to vector<16x72xbf16>
    %c32_293 = arith.constant 32 : index
    %c0_294 = arith.constant 0 : index
    %528 = vector.load %arg7[%c32_293, %c0_294] : memref<128x128xbf16, #tpu.memory_space<vmem>>, vector<16x72xbf16>
    tpu.vector_store %arg7[%c32_293, %c0_294], %527 {strides = array<i32>} : memref<128x128xbf16, #tpu.memory_space<vmem>>, vector<16x72xbf16>,
    %529 = vector.extract_strided_slice %518 {offsets = [0, 10], sizes = [16, 71], strides = [1, 1]} : vector<16x81xbf16> to vector<16x71xbf16>
    %c48_295 = arith.constant 48 : index
    %c0_296 = arith.constant 0 : index
    %530 = vector.load %arg7[%c48_295, %c0_296] : memref<128x128xbf16, #tpu.memory_space<vmem>>, vector<16x71xbf16>
    tpu.vector_store %arg7[%c48_295, %c0_296], %529 {strides = array<i32>} : memref<128x128xbf16, #tpu.memory_space<vmem>>, vector<16x71xbf16>,
    %531 = vector.extract_strided_slice %522 {offsets = [0, 0], sizes = [16, 72], strides = [1, 1]} : vector<16x81xbf16> to vector<16x72xbf16>
    %c64_297 = arith.constant 64 : index
    %c0_298 = arith.constant 0 : index
    %532 = vector.load %arg7[%c64_297, %c0_298] : memref<128x128xbf16, #tpu.memory_space<vmem>>, vector<16x72xbf16>
    tpu.vector_store %arg7[%c64_297, %c0_298], %531 {strides = array<i32>} : memref<128x128xbf16, #tpu.memory_space<vmem>>, vector<16x72xbf16>,
    %533 = vector.extract_strided_slice %522 {offsets = [0, 1], sizes = [16, 72], strides = [1, 1]} : vector<16x81xbf16> to vector<16x72xbf16>
    %c80_299 = arith.constant 80 : index
    %c0_300 = arith.constant 0 : index
    %534 = vector.load %arg7[%c80_299, %c0_300] : memref<128x128xbf16, #tpu.memory_space<vmem>>, vector<16x72xbf16>
    tpu.vector_store %arg7[%c80_299, %c0_300], %533 {strides = array<i32>} : memref<128x128xbf16, #tpu.memory_space<vmem>>, vector<16x72xbf16>,
    %535 = vector.extract_strided_slice %522 {offsets = [0, 9], sizes = [16, 72], strides = [1, 1]} : vector<16x81xbf16> to vector<16x72xbf16>
    %c96_301 = arith.constant 96 : index
    %c0_302 = arith.constant 0 : index
    %536 = vector.load %arg7[%c96_301, %c0_302] : memref<128x128xbf16, #tpu.memory_space<vmem>>, vector<16x72xbf16>
    tpu.vector_store %arg7[%c96_301, %c0_302], %535 {strides = array<i32>} : memref<128x128xbf16, #tpu.memory_space<vmem>>, vector<16x72xbf16>,
    %537 = vector.extract_strided_slice %522 {offsets = [0, 10], sizes = [16, 71], strides = [1, 1]} : vector<16x81xbf16> to vector<16x71xbf16>
    %c112_303 = arith.constant 112 : index
    %c0_304 = arith.constant 0 : index
    %538 = vector.load %arg7[%c112_303, %c0_304] : memref<128x128xbf16, #tpu.memory_space<vmem>>, vector<16x71xbf16>
    tpu.vector_store %arg7[%c112_303, %c0_304], %537 {strides = array<i32>} : memref<128x128xbf16, #tpu.memory_space<vmem>>, vector<16x71xbf16>,
    %c0_305 = arith.constant 0 : index
    %c0_306 = arith.constant 0 : index
    %539 = vector.load %arg7[%c0_305, %c0_306] : memref<128x128xbf16, #tpu.memory_space<vmem>>, vector<128x128xbf16>
    %cst_307 = arith.constant dense<0.000000e+00> : vector<64x128xf32>
    %540 = tpu.matmul %0, %539, %cst_307 {dimension_numbers = #tpu.dot_dimension_numbers<[1], [0], [0], [1], [0, 0, 1, 1], [], []>} : vector<64x128xbf16>, vector<128x128xbf16>, vector<64x128xf32> -> vector<64x128xf32>
    %541 = vector.broadcast %1 : vector<64x1xf32> to vector<64x128xf32>
    %542 = arith.addf %540, %541 : vector<64x128xf32>
    %cst_308 = arith.constant 2.000000e-01 : f32
    %543 = vector.broadcast %cst_308 : f32 to vector<64x128xf32>
    %544 = arith.mulf %542, %543 : vector<64x128xf32>
    %545 = arith.maximumf %542, %544 : vector<64x128xf32>
    %546 = vector.broadcast %2 : vector<64x1xf32> to vector<64x128xf32>
    %547 = arith.mulf %545, %546 : vector<64x128xf32>
    %cst_309 = arith.constant 2.000000e-01 : f32
    %548 = vector.broadcast %cst_309 : f32 to vector<64x128xf32>
    %549 = arith.mulf %547, %548 : vector<64x128xf32>
    %550 = arith.maximumf %547, %549 : vector<64x128xf32>
    %551 = vector.extract_strided_slice %550 {offsets = [0, 0], sizes = [8, 128], strides = [1, 1]} : vector<64x128xf32> to vector<8x128xf32>
    %552 = vector.extract_strided_slice %550 {offsets = [8, 0], sizes = [8, 128], strides = [1, 1]} : vector<64x128xf32> to vector<8x128xf32>
    %553 = arith.maximumf %551, %552 : vector<8x128xf32>
    %554 = vector.extract_strided_slice %550 {offsets = [16, 0], sizes = [8, 128], strides = [1, 1]} : vector<64x128xf32> to vector<8x128xf32>
    %555 = vector.extract_strided_slice %550 {offsets = [24, 0], sizes = [8, 128], strides = [1, 1]} : vector<64x128xf32> to vector<8x128xf32>
    %556 = arith.maximumf %554, %555 : vector<8x128xf32>
    %557 = vector.extract_strided_slice %550 {offsets = [32, 0], sizes = [8, 128], strides = [1, 1]} : vector<64x128xf32> to vector<8x128xf32>
    %558 = vector.extract_strided_slice %550 {offsets = [40, 0], sizes = [8, 128], strides = [1, 1]} : vector<64x128xf32> to vector<8x128xf32>
    %559 = arith.maximumf %557, %558 : vector<8x128xf32>
    %560 = vector.extract_strided_slice %550 {offsets = [48, 0], sizes = [8, 128], strides = [1, 1]} : vector<64x128xf32> to vector<8x128xf32>
    %561 = vector.extract_strided_slice %550 {offsets = [56, 0], sizes = [8, 128], strides = [1, 1]} : vector<64x128xf32> to vector<8x128xf32>
    %562 = arith.maximumf %560, %561 : vector<8x128xf32>
    %563 = arith.maximumf %553, %556 : vector<8x128xf32>
    %564 = arith.maximumf %559, %562 : vector<8x128xf32>
    %565 = arith.maximumf %563, %564 : vector<8x128xf32>
    %566 = vector.extract_strided_slice %565 {offsets = [0, 0], sizes = [8, 8], strides = [1, 1]} : vector<8x128xf32> to vector<8x8xf32>
    %c0_310 = arith.constant 0 : index
    %c0_311 = arith.constant 0 : index
    %c384 = arith.constant 384 : index
    %567 = vector.load %arg6[%c0_310, %c0_311, %c384] : memref<1x8x512xf32, #tpu.memory_space<vmem>>, vector<1x8x8xf32>
    %568 = vector.shape_cast %567 : vector<1x8x8xf32> to vector<8x8xf32>
    %569 = vector.shape_cast %566 : vector<8x8xf32> to vector<1x8x8xf32>
    tpu.vector_store %arg6[%c0_310, %c0_311, %c384], %569 {strides = array<i32>} : memref<1x8x512xf32, #tpu.memory_space<vmem>>, vector<1x8x8xf32>,
    %570 = vector.extract_strided_slice %565 {offsets = [0, 9], sizes = [8, 8], strides = [1, 1]} : vector<8x128xf32> to vector<8x8xf32>
    %c0_312 = arith.constant 0 : index
    %c0_313 = arith.constant 0 : index
    %c392 = arith.constant 392 : index
    %571 = vector.load %arg6[%c0_312, %c0_313, %c392] : memref<1x8x512xf32, #tpu.memory_space<vmem>>, vector<1x8x8xf32>
    %572 = vector.shape_cast %571 : vector<1x8x8xf32> to vector<8x8xf32>
    %573 = vector.shape_cast %570 : vector<8x8xf32> to vector<1x8x8xf32>
    tpu.vector_store %arg6[%c0_312, %c0_313, %c392], %573 {strides = array<i32>} : memref<1x8x512xf32, #tpu.memory_space<vmem>>, vector<1x8x8xf32>,
    %574 = vector.extract_strided_slice %565 {offsets = [0, 18], sizes = [8, 8], strides = [1, 1]} : vector<8x128xf32> to vector<8x8xf32>
    %c0_314 = arith.constant 0 : index
    %c0_315 = arith.constant 0 : index
    %c400 = arith.constant 400 : index
    %575 = vector.load %arg6[%c0_314, %c0_315, %c400] : memref<1x8x512xf32, #tpu.memory_space<vmem>>, vector<1x8x8xf32>
    %576 = vector.shape_cast %575 : vector<1x8x8xf32> to vector<8x8xf32>
    %577 = vector.shape_cast %574 : vector<8x8xf32> to vector<1x8x8xf32>
    tpu.vector_store %arg6[%c0_314, %c0_315, %c400], %577 {strides = array<i32>} : memref<1x8x512xf32, #tpu.memory_space<vmem>>, vector<1x8x8xf32>,
    %578 = vector.extract_strided_slice %565 {offsets = [0, 27], sizes = [8, 8], strides = [1, 1]} : vector<8x128xf32> to vector<8x8xf32>
    %c0_316 = arith.constant 0 : index
    %c0_317 = arith.constant 0 : index
    %c408 = arith.constant 408 : index
    %579 = vector.load %arg6[%c0_316, %c0_317, %c408] : memref<1x8x512xf32, #tpu.memory_space<vmem>>, vector<1x8x8xf32>
    %580 = vector.shape_cast %579 : vector<1x8x8xf32> to vector<8x8xf32>
    %581 = vector.shape_cast %578 : vector<8x8xf32> to vector<1x8x8xf32>
    tpu.vector_store %arg6[%c0_316, %c0_317, %c408], %581 {strides = array<i32>} : memref<1x8x512xf32, #tpu.memory_space<vmem>>, vector<1x8x8xf32>,
    %582 = vector.extract_strided_slice %565 {offsets = [0, 36], sizes = [8, 8], strides = [1, 1]} : vector<8x128xf32> to vector<8x8xf32>
    %c0_318 = arith.constant 0 : index
    %c0_319 = arith.constant 0 : index
    %c416 = arith.constant 416 : index
    %583 = vector.load %arg6[%c0_318, %c0_319, %c416] : memref<1x8x512xf32, #tpu.memory_space<vmem>>, vector<1x8x8xf32>
    %584 = vector.shape_cast %583 : vector<1x8x8xf32> to vector<8x8xf32>
    %585 = vector.shape_cast %582 : vector<8x8xf32> to vector<1x8x8xf32>
    tpu.vector_store %arg6[%c0_318, %c0_319, %c416], %585 {strides = array<i32>} : memref<1x8x512xf32, #tpu.memory_space<vmem>>, vector<1x8x8xf32>,
    %586 = vector.extract_strided_slice %565 {offsets = [0, 45], sizes = [8, 8], strides = [1, 1]} : vector<8x128xf32> to vector<8x8xf32>
    %c0_320 = arith.constant 0 : index
    %c0_321 = arith.constant 0 : index
    %c424 = arith.constant 424 : index
    %587 = vector.load %arg6[%c0_320, %c0_321, %c424] : memref<1x8x512xf32, #tpu.memory_space<vmem>>, vector<1x8x8xf32>
    %588 = vector.shape_cast %587 : vector<1x8x8xf32> to vector<8x8xf32>
    %589 = vector.shape_cast %586 : vector<8x8xf32> to vector<1x8x8xf32>
    tpu.vector_store %arg6[%c0_320, %c0_321, %c424], %589 {strides = array<i32>} : memref<1x8x512xf32, #tpu.memory_space<vmem>>, vector<1x8x8xf32>,
    %590 = vector.extract_strided_slice %565 {offsets = [0, 54], sizes = [8, 8], strides = [1, 1]} : vector<8x128xf32> to vector<8x8xf32>
    %c0_322 = arith.constant 0 : index
    %c0_323 = arith.constant 0 : index
    %c432 = arith.constant 432 : index
    %591 = vector.load %arg6[%c0_322, %c0_323, %c432] : memref<1x8x512xf32, #tpu.memory_space<vmem>>, vector<1x8x8xf32>
    %592 = vector.shape_cast %591 : vector<1x8x8xf32> to vector<8x8xf32>
    %593 = vector.shape_cast %590 : vector<8x8xf32> to vector<1x8x8xf32>
    tpu.vector_store %arg6[%c0_322, %c0_323, %c432], %593 {strides = array<i32>} : memref<1x8x512xf32, #tpu.memory_space<vmem>>, vector<1x8x8xf32>,
    %594 = vector.extract_strided_slice %565 {offsets = [0, 63], sizes = [8, 8], strides = [1, 1]} : vector<8x128xf32> to vector<8x8xf32>
    %c0_324 = arith.constant 0 : index
    %c0_325 = arith.constant 0 : index
    %c440 = arith.constant 440 : index
    %595 = vector.load %arg6[%c0_324, %c0_325, %c440] : memref<1x8x512xf32, #tpu.memory_space<vmem>>, vector<1x8x8xf32>
    %596 = vector.shape_cast %595 : vector<1x8x8xf32> to vector<8x8xf32>
    %597 = vector.shape_cast %594 : vector<8x8xf32> to vector<1x8x8xf32>
    tpu.vector_store %arg6[%c0_324, %c0_325, %c440], %597 {strides = array<i32>} : memref<1x8x512xf32, #tpu.memory_space<vmem>>, vector<1x8x8xf32>,
    %c8_i32_326 = arith.constant 8 : i32
    %598 = arith.muli %arg1, %c8_i32_326 : i32
    %c7_i32 = arith.constant 7 : i32
    %599 = arith.addi %598, %c7_i32 : i32
    %c0_i32_327 = arith.constant 0 : i32
    %600 = arith.addi %599, %c0_i32_327 : i32
    %c0_328 = arith.constant 0 : index
    %601 = arith.index_cast %600 : i32 to index
    %c0_329 = arith.constant 0 : index
    %c0_330 = arith.constant 0 : index
    %602 = vector.load %arg2[%c0_328, %601, %c0_329, %c0_330] : memref<1x9x16x81xbf16, #tpu.memory_space<vmem>>, vector<1x1x16x81xbf16>
    %603 = vector.shape_cast %602 : vector<1x1x16x81xbf16> to vector<16x81xbf16>
    %c1_i32_331 = arith.constant 1 : i32
    %604 = arith.addi %599, %c1_i32_331 : i32
    %c0_332 = arith.constant 0 : index
    %605 = arith.index_cast %604 : i32 to index
    %c0_333 = arith.constant 0 : index
    %c0_334 = arith.constant 0 : index
    %606 = vector.load %arg2[%c0_332, %605, %c0_333, %c0_334] : memref<1x9x16x81xbf16, #tpu.memory_space<vmem>>, vector<1x1x16x81xbf16>
    %607 = vector.shape_cast %606 : vector<1x1x16x81xbf16> to vector<16x81xbf16>
    %608 = vector.extract_strided_slice %603 {offsets = [0, 0], sizes = [16, 72], strides = [1, 1]} : vector<16x81xbf16> to vector<16x72xbf16>
    %c0_335 = arith.constant 0 : index
    %c0_336 = arith.constant 0 : index
    %609 = vector.load %arg7[%c0_335, %c0_336] : memref<128x128xbf16, #tpu.memory_space<vmem>>, vector<16x72xbf16>
    tpu.vector_store %arg7[%c0_335, %c0_336], %608 {strides = array<i32>} : memref<128x128xbf16, #tpu.memory_space<vmem>>, vector<16x72xbf16>,
    %610 = vector.extract_strided_slice %603 {offsets = [0, 1], sizes = [16, 72], strides = [1, 1]} : vector<16x81xbf16> to vector<16x72xbf16>
    %c16_337 = arith.constant 16 : index
    %c0_338 = arith.constant 0 : index
    %611 = vector.load %arg7[%c16_337, %c0_338] : memref<128x128xbf16, #tpu.memory_space<vmem>>, vector<16x72xbf16>
    tpu.vector_store %arg7[%c16_337, %c0_338], %610 {strides = array<i32>} : memref<128x128xbf16, #tpu.memory_space<vmem>>, vector<16x72xbf16>,
    %612 = vector.extract_strided_slice %603 {offsets = [0, 9], sizes = [16, 72], strides = [1, 1]} : vector<16x81xbf16> to vector<16x72xbf16>
    %c32_339 = arith.constant 32 : index
    %c0_340 = arith.constant 0 : index
    %613 = vector.load %arg7[%c32_339, %c0_340] : memref<128x128xbf16, #tpu.memory_space<vmem>>, vector<16x72xbf16>
    tpu.vector_store %arg7[%c32_339, %c0_340], %612 {strides = array<i32>} : memref<128x128xbf16, #tpu.memory_space<vmem>>, vector<16x72xbf16>,
    %614 = vector.extract_strided_slice %603 {offsets = [0, 10], sizes = [16, 71], strides = [1, 1]} : vector<16x81xbf16> to vector<16x71xbf16>
    %c48_341 = arith.constant 48 : index
    %c0_342 = arith.constant 0 : index
    %615 = vector.load %arg7[%c48_341, %c0_342] : memref<128x128xbf16, #tpu.memory_space<vmem>>, vector<16x71xbf16>
    tpu.vector_store %arg7[%c48_341, %c0_342], %614 {strides = array<i32>} : memref<128x128xbf16, #tpu.memory_space<vmem>>, vector<16x71xbf16>,
    %616 = vector.extract_strided_slice %607 {offsets = [0, 0], sizes = [16, 72], strides = [1, 1]} : vector<16x81xbf16> to vector<16x72xbf16>
    %c64_343 = arith.constant 64 : index
    %c0_344 = arith.constant 0 : index
    %617 = vector.load %arg7[%c64_343, %c0_344] : memref<128x128xbf16, #tpu.memory_space<vmem>>, vector<16x72xbf16>
    tpu.vector_store %arg7[%c64_343, %c0_344], %616 {strides = array<i32>} : memref<128x128xbf16, #tpu.memory_space<vmem>>, vector<16x72xbf16>,
    %618 = vector.extract_strided_slice %607 {offsets = [0, 1], sizes = [16, 72], strides = [1, 1]} : vector<16x81xbf16> to vector<16x72xbf16>
    %c80_345 = arith.constant 80 : index
    %c0_346 = arith.constant 0 : index
    %619 = vector.load %arg7[%c80_345, %c0_346] : memref<128x128xbf16, #tpu.memory_space<vmem>>, vector<16x72xbf16>
    tpu.vector_store %arg7[%c80_345, %c0_346], %618 {strides = array<i32>} : memref<128x128xbf16, #tpu.memory_space<vmem>>, vector<16x72xbf16>,
    %620 = vector.extract_strided_slice %607 {offsets = [0, 9], sizes = [16, 72], strides = [1, 1]} : vector<16x81xbf16> to vector<16x72xbf16>
    %c96_347 = arith.constant 96 : index
    %c0_348 = arith.constant 0 : index
    %621 = vector.load %arg7[%c96_347, %c0_348] : memref<128x128xbf16, #tpu.memory_space<vmem>>, vector<16x72xbf16>
    tpu.vector_store %arg7[%c96_347, %c0_348], %620 {strides = array<i32>} : memref<128x128xbf16, #tpu.memory_space<vmem>>, vector<16x72xbf16>,
    %622 = vector.extract_strided_slice %607 {offsets = [0, 10], sizes = [16, 71], strides = [1, 1]} : vector<16x81xbf16> to vector<16x71xbf16>
    %c112_349 = arith.constant 112 : index
    %c0_350 = arith.constant 0 : index
    %623 = vector.load %arg7[%c112_349, %c0_350] : memref<128x128xbf16, #tpu.memory_space<vmem>>, vector<16x71xbf16>
    tpu.vector_store %arg7[%c112_349, %c0_350], %622 {strides = array<i32>} : memref<128x128xbf16, #tpu.memory_space<vmem>>, vector<16x71xbf16>,
    %c0_351 = arith.constant 0 : index
    %c0_352 = arith.constant 0 : index
    %624 = vector.load %arg7[%c0_351, %c0_352] : memref<128x128xbf16, #tpu.memory_space<vmem>>, vector<128x128xbf16>
    %cst_353 = arith.constant dense<0.000000e+00> : vector<64x128xf32>
    %625 = tpu.matmul %0, %624, %cst_353 {dimension_numbers = #tpu.dot_dimension_numbers<[1], [0], [0], [1], [0, 0, 1, 1], [], []>} : vector<64x128xbf16>, vector<128x128xbf16>, vector<64x128xf32> -> vector<64x128xf32>
    %626 = vector.broadcast %1 : vector<64x1xf32> to vector<64x128xf32>
    %627 = arith.addf %625, %626 : vector<64x128xf32>
    %cst_354 = arith.constant 2.000000e-01 : f32
    %628 = vector.broadcast %cst_354 : f32 to vector<64x128xf32>
    %629 = arith.mulf %627, %628 : vector<64x128xf32>
    %630 = arith.maximumf %627, %629 : vector<64x128xf32>
    %631 = vector.broadcast %2 : vector<64x1xf32> to vector<64x128xf32>
    %632 = arith.mulf %630, %631 : vector<64x128xf32>
    %cst_355 = arith.constant 2.000000e-01 : f32
    %633 = vector.broadcast %cst_355 : f32 to vector<64x128xf32>
    %634 = arith.mulf %632, %633 : vector<64x128xf32>
    %635 = arith.maximumf %632, %634 : vector<64x128xf32>
    %636 = vector.extract_strided_slice %635 {offsets = [0, 0], sizes = [8, 128], strides = [1, 1]} : vector<64x128xf32> to vector<8x128xf32>
    %637 = vector.extract_strided_slice %635 {offsets = [8, 0], sizes = [8, 128], strides = [1, 1]} : vector<64x128xf32> to vector<8x128xf32>
    %638 = arith.maximumf %636, %637 : vector<8x128xf32>
    %639 = vector.extract_strided_slice %635 {offsets = [16, 0], sizes = [8, 128], strides = [1, 1]} : vector<64x128xf32> to vector<8x128xf32>
    %640 = vector.extract_strided_slice %635 {offsets = [24, 0], sizes = [8, 128], strides = [1, 1]} : vector<64x128xf32> to vector<8x128xf32>
    %641 = arith.maximumf %639, %640 : vector<8x128xf32>
    %642 = vector.extract_strided_slice %635 {offsets = [32, 0], sizes = [8, 128], strides = [1, 1]} : vector<64x128xf32> to vector<8x128xf32>
    %643 = vector.extract_strided_slice %635 {offsets = [40, 0], sizes = [8, 128], strides = [1, 1]} : vector<64x128xf32> to vector<8x128xf32>
    %644 = arith.maximumf %642, %643 : vector<8x128xf32>
    %645 = vector.extract_strided_slice %635 {offsets = [48, 0], sizes = [8, 128], strides = [1, 1]} : vector<64x128xf32> to vector<8x128xf32>
    %646 = vector.extract_strided_slice %635 {offsets = [56, 0], sizes = [8, 128], strides = [1, 1]} : vector<64x128xf32> to vector<8x128xf32>
    %647 = arith.maximumf %645, %646 : vector<8x128xf32>
    %648 = arith.maximumf %638, %641 : vector<8x128xf32>
    %649 = arith.maximumf %644, %647 : vector<8x128xf32>
    %650 = arith.maximumf %648, %649 : vector<8x128xf32>
    %651 = vector.extract_strided_slice %650 {offsets = [0, 0], sizes = [8, 8], strides = [1, 1]} : vector<8x128xf32> to vector<8x8xf32>
    %c0_356 = arith.constant 0 : index
    %c0_357 = arith.constant 0 : index
    %c448 = arith.constant 448 : index
    %652 = vector.load %arg6[%c0_356, %c0_357, %c448] : memref<1x8x512xf32, #tpu.memory_space<vmem>>, vector<1x8x8xf32>
    %653 = vector.shape_cast %652 : vector<1x8x8xf32> to vector<8x8xf32>
    %654 = vector.shape_cast %651 : vector<8x8xf32> to vector<1x8x8xf32>
    tpu.vector_store %arg6[%c0_356, %c0_357, %c448], %654 {strides = array<i32>} : memref<1x8x512xf32, #tpu.memory_space<vmem>>, vector<1x8x8xf32>,
    %655 = vector.extract_strided_slice %650 {offsets = [0, 9], sizes = [8, 8], strides = [1, 1]} : vector<8x128xf32> to vector<8x8xf32>
    %c0_358 = arith.constant 0 : index
    %c0_359 = arith.constant 0 : index
    %c456 = arith.constant 456 : index
    %656 = vector.load %arg6[%c0_358, %c0_359, %c456] : memref<1x8x512xf32, #tpu.memory_space<vmem>>, vector<1x8x8xf32>
    %657 = vector.shape_cast %656 : vector<1x8x8xf32> to vector<8x8xf32>
    %658 = vector.shape_cast %655 : vector<8x8xf32> to vector<1x8x8xf32>
    tpu.vector_store %arg6[%c0_358, %c0_359, %c456], %658 {strides = array<i32>} : memref<1x8x512xf32, #tpu.memory_space<vmem>>, vector<1x8x8xf32>,
    %659 = vector.extract_strided_slice %650 {offsets = [0, 18], sizes = [8, 8], strides = [1, 1]} : vector<8x128xf32> to vector<8x8xf32>
    %c0_360 = arith.constant 0 : index
    %c0_361 = arith.constant 0 : index
    %c464 = arith.constant 464 : index
    %660 = vector.load %arg6[%c0_360, %c0_361, %c464] : memref<1x8x512xf32, #tpu.memory_space<vmem>>, vector<1x8x8xf32>
    %661 = vector.shape_cast %660 : vector<1x8x8xf32> to vector<8x8xf32>
    %662 = vector.shape_cast %659 : vector<8x8xf32> to vector<1x8x8xf32>
    tpu.vector_store %arg6[%c0_360, %c0_361, %c464], %662 {strides = array<i32>} : memref<1x8x512xf32, #tpu.memory_space<vmem>>, vector<1x8x8xf32>,
    %663 = vector.extract_strided_slice %650 {offsets = [0, 27], sizes = [8, 8], strides = [1, 1]} : vector<8x128xf32> to vector<8x8xf32>
    %c0_362 = arith.constant 0 : index
    %c0_363 = arith.constant 0 : index
    %c472 = arith.constant 472 : index
    %664 = vector.load %arg6[%c0_362, %c0_363, %c472] : memref<1x8x512xf32, #tpu.memory_space<vmem>>, vector<1x8x8xf32>
    %665 = vector.shape_cast %664 : vector<1x8x8xf32> to vector<8x8xf32>
    %666 = vector.shape_cast %663 : vector<8x8xf32> to vector<1x8x8xf32>
    tpu.vector_store %arg6[%c0_362, %c0_363, %c472], %666 {strides = array<i32>} : memref<1x8x512xf32, #tpu.memory_space<vmem>>, vector<1x8x8xf32>,
    %667 = vector.extract_strided_slice %650 {offsets = [0, 36], sizes = [8, 8], strides = [1, 1]} : vector<8x128xf32> to vector<8x8xf32>
    %c0_364 = arith.constant 0 : index
    %c0_365 = arith.constant 0 : index
    %c480 = arith.constant 480 : index
    %668 = vector.load %arg6[%c0_364, %c0_365, %c480] : memref<1x8x512xf32, #tpu.memory_space<vmem>>, vector<1x8x8xf32>
    %669 = vector.shape_cast %668 : vector<1x8x8xf32> to vector<8x8xf32>
    %670 = vector.shape_cast %667 : vector<8x8xf32> to vector<1x8x8xf32>
    tpu.vector_store %arg6[%c0_364, %c0_365, %c480], %670 {strides = array<i32>} : memref<1x8x512xf32, #tpu.memory_space<vmem>>, vector<1x8x8xf32>,
    %671 = vector.extract_strided_slice %650 {offsets = [0, 45], sizes = [8, 8], strides = [1, 1]} : vector<8x128xf32> to vector<8x8xf32>
    %c0_366 = arith.constant 0 : index
    %c0_367 = arith.constant 0 : index
    %c488 = arith.constant 488 : index
    %672 = vector.load %arg6[%c0_366, %c0_367, %c488] : memref<1x8x512xf32, #tpu.memory_space<vmem>>, vector<1x8x8xf32>
    %673 = vector.shape_cast %672 : vector<1x8x8xf32> to vector<8x8xf32>
    %674 = vector.shape_cast %671 : vector<8x8xf32> to vector<1x8x8xf32>
    tpu.vector_store %arg6[%c0_366, %c0_367, %c488], %674 {strides = array<i32>} : memref<1x8x512xf32, #tpu.memory_space<vmem>>, vector<1x8x8xf32>,
    %675 = vector.extract_strided_slice %650 {offsets = [0, 54], sizes = [8, 8], strides = [1, 1]} : vector<8x128xf32> to vector<8x8xf32>
    %c0_368 = arith.constant 0 : index
    %c0_369 = arith.constant 0 : index
    %c496 = arith.constant 496 : index
    %676 = vector.load %arg6[%c0_368, %c0_369, %c496] : memref<1x8x512xf32, #tpu.memory_space<vmem>>, vector<1x8x8xf32>
    %677 = vector.shape_cast %676 : vector<1x8x8xf32> to vector<8x8xf32>
    %678 = vector.shape_cast %675 : vector<8x8xf32> to vector<1x8x8xf32>
    tpu.vector_store %arg6[%c0_368, %c0_369, %c496], %678 {strides = array<i32>} : memref<1x8x512xf32, #tpu.memory_space<vmem>>, vector<1x8x8xf32>,
    %679 = vector.extract_strided_slice %650 {offsets = [0, 63], sizes = [8, 8], strides = [1, 1]} : vector<8x128xf32> to vector<8x8xf32>
    %c0_370 = arith.constant 0 : index
    %c0_371 = arith.constant 0 : index
    %c504 = arith.constant 504 : index
    %680 = vector.load %arg6[%c0_370, %c0_371, %c504] : memref<1x8x512xf32, #tpu.memory_space<vmem>>, vector<1x8x8xf32>
    %681 = vector.shape_cast %680 : vector<1x8x8xf32> to vector<8x8xf32>
    %682 = vector.shape_cast %679 : vector<8x8xf32> to vector<1x8x8xf32>
    tpu.vector_store %arg6[%c0_370, %c0_371, %c504], %682 {strides = array<i32>} : memref<1x8x512xf32, #tpu.memory_space<vmem>>, vector<1x8x8xf32>,
    return
  }
  func.func @transform_0(%arg0: i32, %arg1: i32) -> (i32, i32, i32, i32) {
    %c0_i32 = arith.constant 0 : i32
    %c0_i32_0 = arith.constant 0 : i32
    %c0_i32_1 = arith.constant 0 : i32
    %c0_i32_2 = arith.constant 0 : i32
    return %arg0, %c0_i32, %c0_i32_0, %c0_i32_1 : i32, i32, i32, i32
  }
  func.func @transform_1(%arg0: i32, %arg1: i32) -> (i32, i32) {
    %c0_i32 = arith.constant 0 : i32
    %c0_i32_0 = arith.constant 0 : i32
    %c0_i32_1 = arith.constant 0 : i32
    return %c0_i32, %c0_i32_0 : i32, i32
  }
  func.func @transform_2(%arg0: i32, %arg1: i32) -> (i32, i32) {
    %c0_i32 = arith.constant 0 : i32
    %c0_i32_0 = arith.constant 0 : i32
    %c0_i32_1 = arith.constant 0 : i32
    return %c0_i32, %c0_i32_0 : i32, i32
  }
  func.func @transform_3(%arg0: i32, %arg1: i32) -> (i32, i32) {
    %c0_i32 = arith.constant 0 : i32
    %c0_i32_0 = arith.constant 0 : i32
    %c0_i32_1 = arith.constant 0 : i32
    return %c0_i32, %c0_i32_0 : i32, i32
  }
  func.func @transform_4(%arg0: i32, %arg1: i32) -> (i32, i32, i32) {
    %c0_i32 = arith.constant 0 : i32
    %c0_i32_0 = arith.constant 0 : i32
    return %arg0, %c0_i32, %arg1 : i32, i32, i32
  }
}

</mosaic_0001>

<llo_original>
// kernel: tile.12
$region0: #{tile.12}
  #allocation0 [shape = 's32[1]{0}', space=sflag, size = 0x4, scoped, tag = 'scoped memory for tile.12']
  %s0 = inlined_call_operand.vmem [shape: f32[8], index: 0, kind: input, shape index: {}]
  %s1 = inlined_call_operand.vmem [shape: f32[8,8], index: 1, kind: output, shape index: {}]
  // Predicated region
  $region2: #{tile.12} parent=0 // pred_check
    _
  $region3: #{tile.12} parent=0 // pred_check_branch
    %3 = sbr.rel (0) target = $region5
  $region4: #{tile.12} parent=0 // pred_region
    _
  $region5: #{tile.12} parent=0 // pred_fallthru
    _
  %v4 = vld [vmem:[%s0] ss:$0 sm:$0xff]
  %5 = vst [vmem:[%s1] sm:$0xff] %v4

// kernel: tile.0
$region0: #{tile.0}
  %s0 = inlined_call_operand.vmem [shape: f32[8,8], index: 0, kind: input, shape index: {}]
  %s1 = inlined_call_operand.vmem [shape: f32[64,1], index: 1, kind: output, shape index: {}]
  %v2 = vld [vmem:[%s0] sm:$0xff]
  %vm3 = vcmask 7168
  %4 = vst.msk [vmem:[%s1] ss:$8 sm:$0xf] %vm3, %v2
  %5 = vst.msk [vmem:[%s1] ss:$8 sm:$0xf0] %vm3, %v2
  %v6 = vld [vmem:[%s0] sm:$0xff]
  %7 = vrot.lane.b32.xlu0 %v6, 127
  %v8 = vpop.permute.xlu0 %7
  %vm9 = vcmask 7168
  %s10 = scalar_lea.vmem %s1, 1
  %11 = vst.msk [vmem:[%s10] ss:$8 sm:$0xf] %vm9, %v8
  %s12 = scalar_lea.vmem %s1, 1
  %13 = vst.msk [vmem:[%s12] ss:$8 sm:$0xf0] %vm9, %v8
  %v14 = vld [vmem:[%s0] sm:$0xff]
  %15 = vrot.lane.b32.xlu0 %v14, 126
  %v16 = vpop.permute.xlu0 %15
  %vm17 = vcmask 7168
  %s18 = scalar_lea.vmem %s1, 2
  %19 = vst.msk [vmem:[%s18] ss:$8 sm:$0xf] %vm17, %v16
  %s20 = scalar_lea.vmem %s1, 2
  %21 = vst.msk [vmem:[%s20] ss:$8 sm:$0xf0] %vm17, %v16
  %v22 = vld [vmem:[%s0] sm:$0xff]
  %23 = vrot.lane.b32.xlu0 %v22, 125
  %v24 = vpop.permute.xlu0 %23
  %vm25 = vcmask 7168
  %s26 = scalar_lea.vmem %s1, 3
  %27 = vst.msk [vmem:[%s26] ss:$8 sm:$0xf] %vm25, %v24
  %s28 = scalar_lea.vmem %s1, 3
  %29 = vst.msk [vmem:[%s28] ss:$8 sm:$0xf0] %vm25, %v24
  %v30 = vld [vmem:[%s0] sm:$0xff]
  %31 = vrot.lane.b32.xlu0 %v30, 124
  %v32 = vpop.permute.xlu0 %31
  %vm33 = vcmask 7168
  %s34 = scalar_lea.vmem %s1, 4
  %35 = vst.msk [vmem:[%s34] ss:$8 sm:$0xf] %vm33, %v32
  %s36 = scalar_lea.vmem %s1, 4
  %37 = vst.msk [vmem:[%s36] ss:$8 sm:$0xf0] %vm33, %v32
  %v38 = vld [vmem:[%s0] sm:$0xff]
  %39 = vrot.lane.b32.xlu0 %v38, 123
  %v40 = vpop.permute.xlu0 %39
  %vm41 = vcmask 7168
  %s42 = scalar_lea.vmem %s1, 5
  %43 = vst.msk [vmem:[%s42] ss:$8 sm:$0xf] %vm41, %v40
  %s44 = scalar_lea.vmem %s1, 5
  %45 = vst.msk [vmem:[%s44] ss:$8 sm:$0xf0] %vm41, %v40
  %v46 = vld [vmem:[%s0] sm:$0xff]
  %47 = vrot.lane.b32.xlu0 %v46, 122
  %v48 = vpop.permute.xlu0 %47
  %vm49 = vcmask 7168
  %s50 = scalar_lea.vmem %s1, 6
  %51 = vst.msk [vmem:[%s50] ss:$8 sm:$0xf] %vm49, %v48
  %s52 = scalar_lea.vmem %s1, 6
  %53 = vst.msk [vmem:[%s52] ss:$8 sm:$0xf0] %vm49, %v48
  %v54 = vld [vmem:[%s0] sm:$0xff]
  %55 = vrot.lane.b32.xlu0 %v54, 121
  %v56 = vpop.permute.xlu0 %55
  %vm57 = vcmask 7168
  %s58 = scalar_lea.vmem %s1, 7
  %59 = vst.msk [vmem:[%s58] ss:$8 sm:$0xf] %vm57, %v56
  %s60 = scalar_lea.vmem %s1, 7
  %61 = vst.msk [vmem:[%s60] ss:$8 sm:$0xf0] %vm57, %v56

// kernel: model_forward.1
$region0: #{model_forward.1}
  #allocation0 [shape = 'u32[]', space=smem, size = 0x4, offset = 0x4, fixed_abs, tag = 'smem constant byte address 0x4 - core index']
  #allocation1 [shape = 'u32[144,128]{1,0:T(1,128)}', space=vmem, size = 0x12000, scoped, tag = 'internal scratch']
  #allocation2 [shape = 'bf16[128,128]{1,0:T(16,128)(2,1)}', space=vmem, size = 0x8000, scoped, tag = 'scratch operand']
  %s0 = inlined_call_operand.vmem [shape: bf16[2,9,16,81], index: 0, kind: input, shape index: {}]
  %s1 = inlined_call_operand.vmem [shape: bf16[64,128], index: 1, kind: input, shape index: {}]
  %s2 = inlined_call_operand.vmem [shape: f32[64,1], index: 2, kind: input, shape index: {}]
  %s3 = inlined_call_operand.vmem [shape: f32[64,1], index: 3, kind: input, shape index: {}]
  %s4 = inlined_call_operand.vmem [shape: f32[2,8,512], index: 4, kind: output, shape index: {}]
  %s5 = sld [smem:[#allocation0]]
  $region49: #{model_forward.1} parent=0
    _
  %s7 = ssub.s32 1, %s5
  %s8 = scalar_select 0, %s7, %s5
  loop: start=0, step=1, limit=4
  $region2: #{model_forward.1} parent=0 // loop_pre_header
    _
  $region3: #{model_forward.1} parent=0 // loop_header
    %s10 = sphi 0, %s14
    %p11 = scmp.ge.s32.totalorder %s10, 4
    %s17 = sphi 0, %s29
    %s18 = sphi 0, %s25
    %s19 = sphi 0, %s17
    %s20 = sphi 0, %s18
    %s21 = sphi 0, %s19
    %s22 = sphi 0, %s20
    %s32 = sphi 0, %s34
    %s35 = sphi 0, %s32
    %s36 = sphi 0, %s35
    %s52 = sphi 0, %s36
    %s56 = sphi 0, %s56
    %s58 = sphi 0, %s56
    %s59 = sphi 0, %s58
    %s73 = sphi 0, %s59
    %s77 = sphi 0, %s77
    %s79 = sphi 0, %s77
    %s80 = sphi 0, %s79
    %s94 = sphi 0, %s80
    %s98 = sphi 0, %s98
    %s100 = sphi 0, %s98
    %s101 = sphi 0, %s100
    %s115 = sphi 0, %s101
    %s123 = sphi 0, %s125
    %s126 = sphi 0, %s123
    %s127 = sphi 0, %s126
    %s143 = sphi 0, %s127
  $region4: #{model_forward.1} parent=0 // loop_header_branch
    %13 = sbr.rel (%p11) target = $region8
  $region5: #{model_forward.1} parent=0 // loop_body
    %s15 = ssub.s32 %s10, 1
    %s16 = ssub.s32 %s10, 2
    %s23 = sadd.s32 1, %s18
    %p24 = scmp.ge.s32.totalorder %s23, 1
    %s25 = scalar_select %p24, 0, %s23
    %s26 = sadd.s32 1, %s17
    %s27 = scalar_select %p24, %s26, %s17
    %p28 = scmp.ge.s32.totalorder %s27, 2
    %s29 = scalar_select %p28, 0, %s27
    %s30 = ssub.s32 %s17, %s29
    %p31 = scmp.eq.s32.totalorder %s30, 0
    %s33 = sadd.s32 %s32, 1
    %s34 = scalar_select %p31, %s32, %s33
    %p37 = pneg %p31
    %p38 = scmp.eq.s32.totalorder %s10, 1
    %p39 = por %p37, %p38
    %p40 = scmp.ne.s32.totalorder %s32, %s35
    %p41 = scmp.eq.s32.totalorder %s10, 0
    %p42 = por %p40, %p41
    %p43 = scmp.ne.s32.totalorder %s32, %s35
    %p44 = scmp.eq.s32.totalorder %s15, 1
    %p45 = por %p43, %p44
    %p46 = scmp.ne.s32.totalorder %s35, %s36
    %p47 = scmp.eq.s32.totalorder %s15, 0
    %p48 = por %p46, %p47
    %p49 = scmp.ne.s32.totalorder %s35, %s36
    %p50 = scmp.eq.s32.totalorder %s16, 1
    %p51 = por %p49, %p50
    %p53 = scmp.ne.s32.totalorder %s36, %s52
    %p54 = scmp.eq.s32.totalorder %s16, 0
    %p55 = por %p53, %p54
    %s57 = sadd.s32 %s56, 1
    %p60 = scmp.eq.s32.totalorder %s10, 1
    %p61 = scmp.ne.s32.totalorder %s56, %s58
    %p62 = scmp.eq.s32.totalorder %s10, 0
    %p63 = por %p61, %p62
    %p64 = scmp.ne.s32.totalorder %s56, %s58
    %p65 = scmp.eq.s32.totalorder %s15, 1
    %p66 = por %p64, %p65
    %p67 = scmp.ne.s32.totalorder %s58, %s59
    %p68 = scmp.eq.s32.totalorder %s15, 0
    %p69 = por %p67, %p68
    %p70 = scmp.ne.s32.totalorder %s58, %s59
    %p71 = scmp.eq.s32.totalorder %s16, 1
    %p72 = por %p70, %p71
    %p74 = scmp.ne.s32.totalorder %s59, %s73
    %p75 = scmp.eq.s32.totalorder %s16, 0
    %p76 = por %p74, %p75
    %s78 = sadd.s32 %s77, 1
    %p81 = scmp.eq.s32.totalorder %s10, 1
    %p82 = scmp.ne.s32.totalorder %s77, %s79
    %p83 = scmp.eq.s32.totalorder %s10, 0
    %p84 = por %p82, %p83
    %p85 = scmp.ne.s32.totalorder %s77, %s79
    %p86 = scmp.eq.s32.totalorder %s15, 1
    %p87 = por %p85, %p86
    %p88 = scmp.ne.s32.totalorder %s79, %s80
    %p89 = scmp.eq.s32.totalorder %s15, 0
    %p90 = por %p88, %p89
    %p91 = scmp.ne.s32.totalorder %s79, %s80
    %p92 = scmp.eq.s32.totalorder %s16, 1
    %p93 = por %p91, %p92
    %p95 = scmp.ne.s32.totalorder %s80, %s94
    %p96 = scmp.eq.s32.totalorder %s16, 0
    %p97 = por %p95, %p96
    %s99 = sadd.s32 %s98, 1
    %p102 = scmp.eq.s32.totalorder %s10, 1
    %p103 = scmp.ne.s32.totalorder %s98, %s100
    %p104 = scmp.eq.s32.totalorder %s10, 0
    %p105 = por %p103, %p104
    %p106 = scmp.ne.s32.totalorder %s98, %s100
    %p107 = scmp.eq.s32.totalorder %s15, 1
    %p108 = por %p106, %p107
    %p109 = scmp.ne.s32.totalorder %s100, %s101
    %p110 = scmp.eq.s32.totalorder %s15, 0
    %p111 = por %p109, %p110
    %p112 = scmp.ne.s32.totalorder %s100, %s101
    %p113 = scmp.eq.s32.totalorder %s16, 1
    %p114 = por %p112, %p113
    %p116 = scmp.ne.s32.totalorder %s101, %s115
    %p117 = scmp.eq.s32.totalorder %s16, 0
    %p118 = por %p116, %p117
    %s119 = ssub.s32 %s17, %s29
    %s120 = ssub.s32 %s18, %s25
    %s121 = sor.u32 %s119, %s120
    %p122 = scmp.eq.s32.totalorder %s121, 0
    %s124 = sadd.s32 %s123, 1
    %s125 = scalar_select %p122, %s123, %s124
    %p128 = pneg %p122
    %p129 = scmp.eq.s32.totalorder %s10, 1
    %p130 = por %p128, %p129
    %p131 = scmp.ne.s32.totalorder %s123, %s126
    %p132 = scmp.eq.s32.totalorder %s10, 0
    %p133 = por %p131, %p132
    %p134 = scmp.ne.s32.totalorder %s123, %s126
    %p135 = scmp.eq.s32.totalorder %s15, 1
    %p136 = por %p134, %p135
    %p137 = scmp.ne.s32.totalorder %s126, %s127
    %p138 = scmp.eq.s32.totalorder %s15, 0
    %p139 = por %p137, %p138
    %p140 = scmp.ne.s32.totalorder %s126, %s127
    %p141 = scmp.eq.s32.totalorder %s16, 1
    %p142 = por %p140, %p141
    %p144 = scmp.ne.s32.totalorder %s127, %s143
    %p145 = scmp.eq.s32.totalorder %s16, 0
    %p146 = por %p144, %p145
    %p147 = scmp.le.s32.totalorder 1, %s10
    %p148 = scmp.lt.s32.totalorder %s10, 3
    %p149 = pnand %p147, %p148
    %p150 = pneg %p149
    // Predicated region
    $region9: #{model_forward.1} parent=5 // pred_check
      _
    $region10: #{model_forward.1} parent=5 // pred_check_branch
      %152 = sbr.rel (%p149) target = $region12
    $region11: #{model_forward.1} parent=5 // pred_region
      %s153 = ssub.s32 %s10, 1
      // Predicated region
      $region13: #{model_forward.1} parent=11 // pred_check
        %p154 = pneg %p69
      $region14: #{model_forward.1} parent=11 // pred_check_branch
        %156 = sbr.rel (%p154) target = $region16
      $region15: #{model_forward.1} parent=11 // pred_region
        _
      $region16: #{model_forward.1} parent=11 // pred_fallthru
        _
      // Predicated region
      $region17: #{model_forward.1} parent=11 // pred_check
        %p157 = pneg %p90
      $region18: #{model_forward.1} parent=11 // pred_check_branch
        %159 = sbr.rel (%p157) target = $region20
      $region19: #{model_forward.1} parent=11 // pred_region
        _
      $region20: #{model_forward.1} parent=11 // pred_fallthru
        _
      // Predicated region
      $region21: #{model_forward.1} parent=11 // pred_check
        %p160 = pneg %p111
      $region22: #{model_forward.1} parent=11 // pred_check_branch
        %162 = sbr.rel (%p160) target = $region24
      $region23: #{model_forward.1} parent=11 // pred_region
        _
      $region24: #{model_forward.1} parent=11 // pred_fallthru
        _
    $region12: #{model_forward.1} parent=5 // pred_fallthru
      _
    %p163 = scmp.lt.s32.totalorder %s10, 2
    // Predicated region
    $region25: #{model_forward.1} parent=5 // pred_check
      %p164 = pneg %p163
    $region26: #{model_forward.1} parent=5 // pred_check_branch
      %166 = sbr.rel (%p164) target = $region28
    $region27: #{model_forward.1} parent=5 // pred_region
      // Predicated region
      $region29: #{model_forward.1} parent=27 // pred_check
        %p167 = pneg %p42
      $region30: #{model_forward.1} parent=27 // pred_check_branch
        %169 = sbr.rel (%p167) target = $region32
      $region31: #{model_forward.1} parent=27 // pred_region
        %p170 = scmp.lt.s32.totalorder %s17, 1
        %s171 = scalar_select %p170, %s17, 1
        %s172 = smul.addr %s171, 18
        %s173 = smul.addr %s172, 4
        %s174 = scalar_lea.vmem %s0, %s173
      $region32: #{model_forward.1} parent=27 // pred_fallthru
        _
    $region28: #{model_forward.1} parent=5 // pred_fallthru
      _
    %p175 = scmp.le.s32.totalorder 1, %s10
    %p176 = scmp.lt.s32.totalorder %s10, 3
    %p177 = pnand %p175, %p176
    %p178 = pneg %p177
    // Predicated region
    $region33: #{model_forward.1} parent=5 // pred_check
      _
    $region34: #{model_forward.1} parent=5 // pred_check_branch
      %180 = sbr.rel (%p177) target = $region36
    $region35: #{model_forward.1} parent=5 // pred_region
      %s181 = ssub.s32 %s10, 1
      %p182 = scmp.lt.s32.totalorder %s19, 1
      %s183 = scalar_select %p182, %s19, 1
      %s184 = smul.addr %s183, 18
      %s185 = smul.addr %s184, 4
      %s186 = scalar_lea.vmem %s0, %s185
      %p187 = pneg %p48
      %p188 = pneg %p45
      %p189 = pneg %p69
      %p190 = pneg %p66
      %p191 = pneg %p90
      %p192 = pneg %p87
      %p193 = pneg %p111
      %p194 = pneg %p108
      %p195 = pneg %p139
      %p196 = pneg %p136
      %s197 = smul.u32 4, %s20
      %p198 = scmp.lt.s32.totalorder %s19, 1
      %s199 = scalar_select %p198, %s19, 1
      %p200 = scmp.lt.s32.totalorder %s197, 3
      %s201 = scalar_select %p200, %s197, 3
      %s202 = smul.addr %s199, 4
      %s203 = sadd.s32 %s201, %s202
      %s204 = smul.addr %s203, 8
      %s205 = scalar_lea.vmem %s4, %s204
      %p206 = scmp.lt.s32.totalorder %s19, 1
      %s207 = scalar_select %p206, %s19, 1
      %s208 = smul.addr %s207, 18
      %s209 = smul.addr %s208, 4
      %s210 = scalar_lea.vmem %s0, %s209
      %s211 = smul.u32 4, %s20
      %p212 = scmp.lt.s32.totalorder %s19, 1
      %s213 = scalar_select %p212, %s19, 1
      %p214 = scmp.lt.s32.totalorder %s211, 3
      %s215 = scalar_select %p214, %s211, 3
      %s216 = smul.addr %s213, 4
      %s217 = sadd.s32 %s215, %s216
      %s218 = smul.addr %s217, 8
      %s219 = scalar_lea.vmem %s4, %s218
      %s220 = smul.u32 4, %s20
      %v222 = vld [vmem:[%s1] sm:$0xf]
      %v223 = vld [vmem:[%s1 + $0x4] sm:$0xf]
      %v224 = vld [vmem:[%s1 + $0x8] sm:$0xf]
      %v225 = vld [vmem:[%s1 + $0xc] sm:$0xf]
      %v226 = vld [vmem:[%s1 + $0x10] sm:$0xf]
      %v227 = vld [vmem:[%s1 + $0x14] sm:$0xf]
      %v228 = vld [vmem:[%s1 + $0x18] sm:$0xf]
      %v229 = vld [vmem:[%s1 + $0x1c] sm:$0xf]
      %v230 = vld [vmem:[%s2] sm:$0xff]
      %v231 = vld [vmem:[%s2 + $0x8] sm:$0xff]
      %v232 = vld [vmem:[%s2 + $0x10] sm:$0xff]
      %v233 = vld [vmem:[%s2 + $0x18] sm:$0xff]
      %v234 = vld [vmem:[%s2 + $0x20] sm:$0xff]
      %v235 = vld [vmem:[%s2 + $0x28] sm:$0xff]
      %v236 = vld [vmem:[%s2 + $0x30] sm:$0xff]
      %v237 = vld [vmem:[%s2 + $0x38] sm:$0xff]
      %v238 = vld [vmem:[%s3] sm:$0xff]
      %v239 = vld [vmem:[%s3 + $0x8] sm:$0xff]
      %v240 = vld [vmem:[%s3 + $0x10] sm:$0xff]
      %v241 = vld [vmem:[%s3 + $0x18] sm:$0xff]
      %v242 = vld [vmem:[%s3 + $0x20] sm:$0xff]
      %v243 = vld [vmem:[%s3 + $0x28] sm:$0xff]
      %v244 = vld [vmem:[%s3 + $0x30] sm:$0xff]
      %v245 = vld [vmem:[%s3 + $0x38] sm:$0xff]
      %s246 = smul.u32 %s20, 8
      %s247 = smul.u32 %s246, 2
      %s248 = smul.addr %s247, 4
      %s249 = scalar_lea.vmem %s210, %s248
      %v250 = vld [vmem:[%s249] sm:$0xf]
      %v251 = vld [vmem:[%s249 + $0x4] sm:$0xf]
      %s252 = sadd.s32 %s246, 1
      %s253 = smul.u32 %s252, 2
      %s254 = smul.addr %s253, 4
      %s255 = scalar_lea.vmem %s210, %s254
      %v256 = vld [vmem:[%s255] sm:$0xf]
      %v257 = vld [vmem:[%s255 + $0x4] sm:$0xf]
      %v260 = vunpack.c.l.b16 %v250
      %v261 = vunpack.c.l.b16 %v251
      %v262 = vpack.c.b16 %v261, %v260
      %vm264 = vcmask 588800
      %265 = vst.msk [vmem:[#allocation2] sm:$0xff] %vm264, %v262
      %266 = vrot.lane.b32.xlu0 %v262, 127
      %v267 = vpop.permute.xlu0 %266
      %269 = vst.msk [vmem:[#allocation2 + $0x8] sm:$0xff] %vm264, %v267
      %270 = vrot.lane.b32.xlu0 %v262, 119
      %v271 = vpop.permute.xlu0 %270
      %273 = vst.msk [vmem:[#allocation2 + $0x10] sm:$0xff] %vm264, %v271
      %274 = vrot.lane.b32.xlu0 %v262, 118
      %v275 = vpop.permute.xlu0 %274
      %vm277 = vcmask 580608
      %278 = vst.msk [vmem:[#allocation2 + $0x18] sm:$0xff] %vm277, %v275
      %v281 = vunpack.c.l.b16 %v256
      %v282 = vunpack.c.l.b16 %v257
      %v283 = vpack.c.b16 %v282, %v281
      %285 = vst.msk [vmem:[#allocation2 + $0x20] sm:$0xff] %vm264, %v283
      %286 = vrot.lane.b32.xlu0 %v283, 127
      %v287 = vpop.permute.xlu0 %286
      %289 = vst.msk [vmem:[#allocation2 + $0x28] sm:$0xff] %vm264, %v287
      %290 = vrot.lane.b32.xlu0 %v283, 119
      %v291 = vpop.permute.xlu0 %290
      %293 = vst.msk [vmem:[#allocation2 + $0x30] sm:$0xff] %vm264, %v291
      %294 = vrot.lane.b32.xlu0 %v283, 118
      %v295 = vpop.permute.xlu0 %294
      %297 = vst.msk [vmem:[#allocation2 + $0x38] sm:$0xff] %vm277, %v295
      %v298 = vld [vmem:[#allocation2] sm:$0xff]
      %v299 = vld [vmem:[#allocation2 + $0x8] sm:$0xff]
      %v300 = vld [vmem:[#allocation2 + $0x10] sm:$0xff]
      %v301 = vld [vmem:[#allocation2 + $0x18] sm:$0xff]
      %v302 = vld [vmem:[#allocation2 + $0x20] sm:$0xff]
      %v303 = vld [vmem:[#allocation2 + $0x28] sm:$0xff]
      %v304 = vld [vmem:[#allocation2 + $0x30] sm:$0xff]
      %v305 = vld [vmem:[#allocation2 + $0x38] sm:$0xff]
      %307 = vset.pattern.permute.xlu0 0
      %308 = vperm.xlu0 %307, %v230
      %v309 = vpop.permute.xlu0 %308
      %312 = vset.pattern.permute.xlu0 0
      %313 = vperm.xlu0 %312, %v231
      %v314 = vpop.permute.xlu0 %313
      %317 = vset.pattern.permute.xlu0 0
      %318 = vperm.xlu0 %317, %v232
      %v319 = vpop.permute.xlu0 %318
      %322 = vset.pattern.permute.xlu0 0
      %323 = vperm.xlu0 %322, %v233
      %v324 = vpop.permute.xlu0 %323
      %327 = vset.pattern.permute.xlu0 0
      %328 = vperm.xlu0 %327, %v234
      %v329 = vpop.permute.xlu0 %328
      %332 = vset.pattern.permute.xlu0 0
      %333 = vperm.xlu0 %332, %v235
      %v334 = vpop.permute.xlu0 %333
      %337 = vset.pattern.permute.xlu0 0
      %338 = vperm.xlu0 %337, %v236
      %v339 = vpop.permute.xlu0 %338
      %342 = vset.pattern.permute.xlu0 0
      %343 = vperm.xlu0 %342, %v237
      %v344 = vpop.permute.xlu0 %343
      %v354 = vunpack.c.l.b16 %v222
      %v355 = vunpack.c.l.b16 %v223
      %v356 = vunpack.c.l.b16 %v224
      %v357 = vunpack.c.l.b16 %v225
      %v358 = vunpack.c.l.b16 %v226
      %v359 = vunpack.c.l.b16 %v227
      %v360 = vunpack.c.l.b16 %v228
      %v361 = vunpack.c.l.b16 %v229
      %v362 = vpack.c.b16 %v355, %v354
      %v363 = vpack.c.b16 %v357, %v356
      %v364 = vpack.c.b16 %v359, %v358
      %v365 = vpack.c.b16 %v361, %v360
      %370 = vmatprep.subr.bf16.mxu0 0
      %371 = vmatpush1.bf16.msra.mxu0 %v298
      %372 = vmatprep.subr.bf16.mxu0 0
      %373 = vmatpush1.bf16.msra.mxu0 %v299
      %374 = vmatprep.subr.bf16.mxu0 0
      %375 = vmatpush1.bf16.msra.mxu0 %v300
      %376 = vmatprep.subr.bf16.mxu0 0
      %377 = vmatpush1.bf16.msra.mxu0 %v301
      %378 = vmatprep.subr.bf16.mxu0 0
      %379 = vmatpush1.bf16.msra.mxu0 %v302
      %380 = vmatprep.subr.bf16.mxu0 0
      %381 = vmatpush1.bf16.msra.mxu0 %v303
      %382 = vmatprep.subr.bf16.mxu0 0
      %383 = vmatpush1.bf16.msra.mxu0 %v304
      %384 = vmatprep.subr.bf16.mxu0 0
      %385 = vmatpush1.bf16.msra.mxu0 %v305
      %386 = vmatprep.subr.bf16.mxu0 0
      %387 = vmatpush1.bf16.msra.mxu0 0
      %388 = vmatprep.subr.bf16.mxu0 0
      %389 = vmatpush1.bf16.msra.mxu0 0
      %390 = vmatprep.subr.bf16.mxu0 0
      %391 = vmatpush1.bf16.msra.mxu0 0
      %392 = vmatprep.subr.bf16.mxu0 0
      %393 = vmatpush1.bf16.msra.mxu0 0
      %394 = vmatprep.subr.bf16.mxu0 0
      %395 = vmatpush1.bf16.msra.mxu0 0
      %396 = vmatprep.subr.bf16.mxu0 0
      %397 = vmatpush1.bf16.msra.mxu0 0
      %398 = vmatprep.subr.bf16.mxu0 0
      %399 = vmatpush1.bf16.msra.mxu0 0
      %400 = vmatprep.subr.bf16.mxu0 0
      %401 = vmatpush1.bf16.msra.mxu0 0
      %402 = vmatprep.mubr.bf16.mxu0 0
      %403 = vmatmul.mubr.bf16.gmra.mrb[0].mxu0 %v362
      %v404 = vpop.f32.mrb[0].mxu0
      %v405 = vadd.f32 %v309, %v404
      %v406 = vpop.f32.mrb[0].mxu0
      %v407 = vpop.f32.mrb[0].mxu0
      %v408 = vadd.f32 %v314, %v407
      %v409 = vpop.f32.mrb[0].mxu0
      %410 = vmatprep.mubr.bf16.mxu0 0
      %411 = vmatmul.mubr.bf16.gmra.mrb[0].mxu0 %v363
      %v412 = vpop.f32.mrb[0].mxu0
      %v413 = vadd.f32 %v319, %v412
      %v414 = vpop.f32.mrb[0].mxu0
      %v415 = vpop.f32.mrb[0].mxu0
      %v416 = vadd.f32 %v324, %v415
      %v417 = vpop.f32.mrb[0].mxu0
      %418 = vmatprep.mubr.bf16.mxu0 0
      %419 = vmatmul.mubr.bf16.gmra.mrb[0].mxu0 %v364
      %v420 = vpop.f32.mrb[0].mxu0
      %v421 = vadd.f32 %v329, %v420
      %v422 = vpop.f32.mrb[0].mxu0
      %v423 = vpop.f32.mrb[0].mxu0
      %v424 = vadd.f32 %v334, %v423
      %v425 = vpop.f32.mrb[0].mxu0
      %426 = vmatprep.mubr.bf16.mxu0 0
      %427 = vmatmul.mubr.bf16.gmra.mrb[0].mxu0 %v365
      %v428 = vpop.f32.mrb[0].mxu0
      %v429 = vadd.f32 %v339, %v428
      %v430 = vpop.f32.mrb[0].mxu0
      %v431 = vpop.f32.mrb[0].mxu0
      %v432 = vadd.f32 %v344, %v431
      %v433 = vpop.f32.mrb[0].mxu0
      %434 = vdwg.mxu0
      %v435 = vmul.f32 %v405, 0.2
      %v436 = vmul.f32 %v408, 0.2
      %v437 = vmul.f32 %v413, 0.2
      %v438 = vmul.f32 %v416, 0.2
      %v439 = vmul.f32 %v421, 0.2
      %v440 = vmul.f32 %v424, 0.2
      %v441 = vmul.f32 %v429, 0.2
      %v442 = vmul.f32 %v432, 0.2
      %v443 = vmax.f32 %v405, %v435
      %v444 = vmax.f32 %v408, %v436
      %v445 = vmax.f32 %v413, %v437
      %v446 = vmax.f32 %v416, %v438
      %v447 = vmax.f32 %v421, %v439
      %v448 = vmax.f32 %v424, %v440
      %v449 = vmax.f32 %v429, %v441
      %v450 = vmax.f32 %v432, %v442
      %452 = vset.pattern.permute.xlu0 0
      %453 = vperm.xlu0 %452, %v238
      %v454 = vpop.permute.xlu0 %453
      %457 = vset.pattern.permute.xlu0 0
      %458 = vperm.xlu0 %457, %v239
      %v459 = vpop.permute.xlu0 %458
      %462 = vset.pattern.permute.xlu0 0
      %463 = vperm.xlu0 %462, %v240
      %v464 = vpop.permute.xlu0 %463
      %467 = vset.pattern.permute.xlu0 0
      %468 = vperm.xlu0 %467, %v241
      %v469 = vpop.permute.xlu0 %468
      %472 = vset.pattern.permute.xlu0 0
      %473 = vperm.xlu0 %472, %v242
      %v474 = vpop.permute.xlu0 %473
      %477 = vset.pattern.permute.xlu0 0
      %478 = vperm.xlu0 %477, %v243
      %v479 = vpop.permute.xlu0 %478
      %482 = vset.pattern.permute.xlu0 0
      %483 = vperm.xlu0 %482, %v244
      %v484 = vpop.permute.xlu0 %483
      %487 = vset.pattern.permute.xlu0 0
      %488 = vperm.xlu0 %487, %v245
      %v489 = vpop.permute.xlu0 %488
      %v491 = vmul.f32 %v443, %v454
      %v492 = vmul.f32 %v444, %v459
      %v493 = vmul.f32 %v445, %v464
      %v494 = vmul.f32 %v446, %v469
      %v495 = vmul.f32 %v447, %v474
      %v496 = vmul.f32 %v448, %v479
      %v497 = vmul.f32 %v449, %v484
      %v498 = vmul.f32 %v450, %v489
      %v499 = vmul.f32 %v491, 0.2
      %v500 = vmul.f32 %v492, 0.2
      %v501 = vmul.f32 %v493, 0.2
      %v502 = vmul.f32 %v494, 0.2
      %v503 = vmul.f32 %v495, 0.2
      %v504 = vmul.f32 %v496, 0.2
      %v505 = vmul.f32 %v497, 0.2
      %v506 = vmul.f32 %v498, 0.2
      %v507 = vmax.f32 %v491, %v499
      %v508 = vmax.f32 %v492, %v500
      %v509 = vmax.f32 %v493, %v501
      %v510 = vmax.f32 %v494, %v502
      %v511 = vmax.f32 %v495, %v503
      %v512 = vmax.f32 %v496, %v504
      %v513 = vmax.f32 %v497, %v505
      %v514 = vmax.f32 %v498, %v506
      %v515 = vmax.f32 %v507, %v508
      %v516 = vmax.f32 %v509, %v510
      %v517 = vmax.f32 %v511, %v512
      %v518 = vmax.f32 %v513, %v514
      %v519 = vmax.f32 %v515, %v516
      %v520 = vmax.f32 %v517, %v518
      %v521 = vmax.f32 %v519, %v520
      %vm522 = vcmask 64512
      %523 = vst.msk [vmem:[%s219] sm:$0xff] %vm522, %v521
      %525 = vrot.lane.b32.xlu0 %v521, 127
      %v526 = vpop.permute.xlu0 %525
      %vm528 = vcmask 130112
      %529 = vst.msk [vmem:[%s219] sm:$0xff] %vm528, %v526
      %530 = vrot.lane.b32.xlu0 %v521, 126
      %v531 = vpop.permute.xlu0 %530
      %vm533 = vcmask 195712
      %534 = vst.msk [vmem:[%s219] sm:$0xff] %vm533, %v531
      %535 = vrot.lane.b32.xlu0 %v521, 125
      %v536 = vpop.permute.xlu0 %535
      %vm538 = vcmask 261312
      %539 = vst.msk [vmem:[%s219] sm:$0xff] %vm538, %v536
      %540 = vrot.lane.b32.xlu0 %v521, 124
      %v541 = vpop.permute.xlu0 %540
      %vm543 = vcmask 326912
      %544 = vst.msk [vmem:[%s219] sm:$0xff] %vm543, %v541
      %545 = vrot.lane.b32.xlu0 %v521, 123
      %v546 = vpop.permute.xlu0 %545
      %vm548 = vcmask 392512
      %549 = vst.msk [vmem:[%s219] sm:$0xff] %vm548, %v546
      %550 = vrot.lane.b32.xlu0 %v521, 122
      %v551 = vpop.permute.xlu0 %550
      %vm553 = vcmask 458112
      %554 = vst.msk [vmem:[%s219] sm:$0xff] %vm553, %v551
      %555 = vrot.lane.b32.xlu0 %v521, 121
      %v556 = vpop.permute.xlu0 %555
      %vm558 = vcmask 523712
      %559 = vst.msk [vmem:[%s219] sm:$0xff] %vm558, %v556
      %v560 = vld [vmem:[%s255] sm:$0xf]
      %v561 = vld [vmem:[%s255 + $0x4] sm:$0xf]
      %s562 = sadd.s32 %s246, 2
      %s563 = smul.u32 %s562, 2
      %s564 = smul.addr %s563, 4
      %s565 = scalar_lea.vmem %s210, %s564
      %v566 = vld [vmem:[%s565] sm:$0xf]
      %v567 = vld [vmem:[%s565 + $0x4] sm:$0xf]
      %v570 = vunpack.c.l.b16 %v560
      %v571 = vunpack.c.l.b16 %v561
      %v572 = vpack.c.b16 %v571, %v570
      %574 = vst.msk [vmem:[#allocation2] sm:$0xff] %vm264, %v572
      %575 = vrot.lane.b32.xlu0 %v572, 127
      %v576 = vpop.permute.xlu0 %575
      %578 = vst.msk [vmem:[#allocation2 + $0x8] sm:$0xff] %vm264, %v576
      %579 = vrot.lane.b32.xlu0 %v572, 119
      %v580 = vpop.permute.xlu0 %579
      %582 = vst.msk [vmem:[#allocation2 + $0x10] sm:$0xff] %vm264, %v580
      %583 = vrot.lane.b32.xlu0 %v572, 118
      %v584 = vpop.permute.xlu0 %583
      %586 = vst.msk [vmem:[#allocation2 + $0x18] sm:$0xff] %vm277, %v584
      %v589 = vunpack.c.l.b16 %v566
      %v590 = vunpack.c.l.b16 %v567
      %v591 = vpack.c.b16 %v590, %v589
      %593 = vst.msk [vmem:[#allocation2 + $0x20] sm:$0xff] %vm264, %v591
      %594 = vrot.lane.b32.xlu0 %v591, 127
      %v595 = vpop.permute.xlu0 %594
      %597 = vst.msk [vmem:[#allocation2 + $0x28] sm:$0xff] %vm264, %v595
      %598 = vrot.lane.b32.xlu0 %v591, 119
      %v599 = vpop.permute.xlu0 %598
      %601 = vst.msk [vmem:[#allocation2 + $0x30] sm:$0xff] %vm264, %v599
      %602 = vrot.lane.b32.xlu0 %v591, 118
      %v603 = vpop.permute.xlu0 %602
      %605 = vst.msk [vmem:[#allocation2 + $0x38] sm:$0xff] %vm277, %v603
      %v606 = vld [vmem:[#allocation2] sm:$0xff]
      %v607 = vld [vmem:[#allocation2 + $0x8] sm:$0xff]
      %v608 = vld [vmem:[#allocation2 + $0x10] sm:$0xff]
      %v609 = vld [vmem:[#allocation2 + $0x18] sm:$0xff]
      %v610 = vld [vmem:[#allocation2 + $0x20] sm:$0xff]
      %v611 = vld [vmem:[#allocation2 + $0x28] sm:$0xff]
      %v612 = vld [vmem:[#allocation2 + $0x30] sm:$0xff]
      %v613 = vld [vmem:[#allocation2 + $0x38] sm:$0xff]
      %614 = vmatprep.subr.bf16.mxu0 0
      %615 = vmatpush1.bf16.msra.mxu0 %v606
      %616 = vmatprep.subr.bf16.mxu0 0
      %617 = vmatpush1.bf16.msra.mxu0 %v607
      %618 = vmatprep.subr.bf16.mxu0 0
      %619 = vmatpush1.bf16.msra.mxu0 %v608
      %620 = vmatprep.subr.bf16.mxu0 0
      %621 = vmatpush1.bf16.msra.mxu0 %v609
      %622 = vmatprep.subr.bf16.mxu0 0
      %623 = vmatpush1.bf16.msra.mxu0 %v610
      %624 = vmatprep.subr.bf16.mxu0 0
      %625 = vmatpush1.bf16.msra.mxu0 %v611
      %626 = vmatprep.subr.bf16.mxu0 0
      %627 = vmatpush1.bf16.msra.mxu0 %v612
      %628 = vmatprep.subr.bf16.mxu0 0
      %629 = vmatpush1.bf16.msra.mxu0 %v613
      %630 = vmatprep.subr.bf16.mxu0 0
      %631 = vmatpush1.bf16.msra.mxu0 0
      %632 = vmatprep.subr.bf16.mxu0 0
      %633 = vmatpush1.bf16.msra.mxu0 0
      %634 = vmatprep.subr.bf16.mxu0 0
      %635 = vmatpush1.bf16.msra.mxu0 0
      %636 = vmatprep.subr.bf16.mxu0 0
      %637 = vmatpush1.bf16.msra.mxu0 0
      %638 = vmatprep.subr.bf16.mxu0 0
      %639 = vmatpush1.bf16.msra.mxu0 0
      %640 = vmatprep.subr.bf16.mxu0 0
      %641 = vmatpush1.bf16.msra.mxu0 0
      %642 = vmatprep.subr.bf16.mxu0 0
      %643 = vmatpush1.bf16.msra.mxu0 0
      %644 = vmatprep.subr.bf16.mxu0 0
      %645 = vmatpush1.bf16.msra.mxu0 0
      %646 = vmatprep.mubr.bf16.mxu0 0
      %647 = vmatmul.mubr.bf16.gmra.mrb[0].mxu0 %v362
      %v648 = vpop.f32.mrb[0].mxu0
      %v649 = vadd.f32 %v309, %v648
      %v650 = vpop.f32.mrb[0].mxu0
      %v651 = vpop.f32.mrb[0].mxu0
      %v652 = vadd.f32 %v314, %v651
      %v653 = vpop.f32.mrb[0].mxu0
      %654 = vmatprep.mubr.bf16.mxu0 0
      %655 = vmatmul.mubr.bf16.gmra.mrb[0].mxu0 %v363
      %v656 = vpop.f32.mrb[0].mxu0
      %v657 = vadd.f32 %v319, %v656
      %v658 = vpop.f32.mrb[0].mxu0
      %v659 = vpop.f32.mrb[0].mxu0
      %v660 = vadd.f32 %v324, %v659
      %v661 = vpop.f32.mrb[0].mxu0
      %662 = vmatprep.mubr.bf16.mxu0 0
      %663 = vmatmul.mubr.bf16.gmra.mrb[0].mxu0 %v364
      %v664 = vpop.f32.mrb[0].mxu0
      %v665 = vadd.f32 %v329, %v664
      %v666 = vpop.f32.mrb[0].mxu0
      %v667 = vpop.f32.mrb[0].mxu0
      %v668 = vadd.f32 %v334, %v667
      %v669 = vpop.f32.mrb[0].mxu0
      %670 = vmatprep.mubr.bf16.mxu0 0
      %671 = vmatmul.mubr.bf16.gmra.mrb[0].mxu0 %v365
      %v672 = vpop.f32.mrb[0].mxu0
      %v673 = vadd.f32 %v339, %v672
      %v674 = vpop.f32.mrb[0].mxu0
      %v675 = vpop.f32.mrb[0].mxu0
      %v676 = vadd.f32 %v344, %v675
      %v677 = vpop.f32.mrb[0].mxu0
      %678 = vdwg.mxu0
      %v679 = vmul.f32 %v649, 0.2
      %v680 = vmul.f32 %v652, 0.2
      %v681 = vmul.f32 %v657, 0.2
      %v682 = vmul.f32 %v660, 0.2
      %v683 = vmul.f32 %v665, 0.2
      %v684 = vmul.f32 %v668, 0.2
      %v685 = vmul.f32 %v673, 0.2
      %v686 = vmul.f32 %v676, 0.2
      %v687 = vmax.f32 %v649, %v679
      %v688 = vmax.f32 %v652, %v680
      %v689 = vmax.f32 %v657, %v681
      %v690 = vmax.f32 %v660, %v682
      %v691 = vmax.f32 %v665, %v683
      %v692 = vmax.f32 %v668, %v684
      %v693 = vmax.f32 %v673, %v685
      %v694 = vmax.f32 %v676, %v686
      %v695 = vmul.f32 %v687, %v454
      %v696 = vmul.f32 %v688, %v459
      %v697 = vmul.f32 %v689, %v464
      %v698 = vmul.f32 %v690, %v469
      %v699 = vmul.f32 %v691, %v474
      %v700 = vmul.f32 %v692, %v479
      %v701 = vmul.f32 %v693, %v484
      %v702 = vmul.f32 %v694, %v489
      %v703 = vmul.f32 %v695, 0.2
      %v704 = vmul.f32 %v696, 0.2
      %v705 = vmul.f32 %v697, 0.2
      %v706 = vmul.f32 %v698, 0.2
      %v707 = vmul.f32 %v699, 0.2
      %v708 = vmul.f32 %v700, 0.2
      %v709 = vmul.f32 %v701, 0.2
      %v710 = vmul.f32 %v702, 0.2
      %v711 = vmax.f32 %v695, %v703
      %v712 = vmax.f32 %v696, %v704
      %v713 = vmax.f32 %v697, %v705
      %v714 = vmax.f32 %v698, %v706
      %v715 = vmax.f32 %v699, %v707
      %v716 = vmax.f32 %v700, %v708
      %v717 = vmax.f32 %v701, %v709
      %v718 = vmax.f32 %v702, %v710
      %v719 = vmax.f32 %v711, %v712
      %v720 = vmax.f32 %v713, %v714
      %v721 = vmax.f32 %v715, %v716
      %v722 = vmax.f32 %v717, %v718
      %v723 = vmax.f32 %v719, %v720
      %v724 = vmax.f32 %v721, %v722
      %v725 = vmax.f32 %v723, %v724
      %727 = vrot.lane.b32.xlu0 %v725, 64
      %v728 = vpop.permute.xlu0 %727
      %vm730 = vcmask 589312
      %731 = vst.msk [vmem:[%s219] sm:$0xff] %vm730, %v728
      %732 = vrot.lane.b32.xlu0 %v725, 63
      %v733 = vpop.permute.xlu0 %732
      %vm735 = vcmask 654912
      %736 = vst.msk [vmem:[%s219] sm:$0xff] %vm735, %v733
      %737 = vrot.lane.b32.xlu0 %v725, 62
      %v738 = vpop.permute.xlu0 %737
      %vm740 = vcmask 720512
      %741 = vst.msk [vmem:[%s219] sm:$0xff] %vm740, %v738
      %742 = vrot.lane.b32.xlu0 %v725, 61
      %v743 = vpop.permute.xlu0 %742
      %vm745 = vcmask 786112
      %746 = vst.msk [vmem:[%s219] sm:$0xff] %vm745, %v743
      %747 = vrot.lane.b32.xlu0 %v725, 60
      %v748 = vpop.permute.xlu0 %747
      %vm750 = vcmask 851712
      %751 = vst.msk [vmem:[%s219] sm:$0xff] %vm750, %v748
      %752 = vrot.lane.b32.xlu0 %v725, 59
      %v753 = vpop.permute.xlu0 %752
      %vm755 = vcmask 917312
      %756 = vst.msk [vmem:[%s219] sm:$0xff] %vm755, %v753
      %757 = vrot.lane.b32.xlu0 %v725, 58
      %v758 = vpop.permute.xlu0 %757
      %vm760 = vcmask 982912
      %761 = vst.msk [vmem:[%s219] sm:$0xff] %vm760, %v758
      %762 = vrot.lane.b32.xlu0 %v725, 57
      %v763 = vpop.permute.xlu0 %762
      %vm765 = vcmask 1048512
      %766 = vst.msk [vmem:[%s219] sm:$0xff] %vm765, %v763
      %v767 = vld [vmem:[%s565] sm:$0xf]
      %v768 = vld [vmem:[%s565 + $0x4] sm:$0xf]
      %s769 = sadd.s32 %s246, 3
      %s770 = smul.u32 %s769, 2
      %s771 = smul.addr %s770, 4
      %s772 = scalar_lea.vmem %s210, %s771
      %v773 = vld [vmem:[%s772] sm:$0xf]
      %v774 = vld [vmem:[%s772 + $0x4] sm:$0xf]
      %v777 = vunpack.c.l.b16 %v767
      %v778 = vunpack.c.l.b16 %v768
      %v779 = vpack.c.b16 %v778, %v777
      %781 = vst.msk [vmem:[#allocation2] sm:$0xff] %vm264, %v779
      %782 = vrot.lane.b32.xlu0 %v779, 127
      %v783 = vpop.permute.xlu0 %782
      %785 = vst.msk [vmem:[#allocation2 + $0x8] sm:$0xff] %vm264, %v783
      %786 = vrot.lane.b32.xlu0 %v779, 119
      %v787 = vpop.permute.xlu0 %786
      %789 = vst.msk [vmem:[#allocation2 + $0x10] sm:$0xff] %vm264, %v787
      %790 = vrot.lane.b32.xlu0 %v779, 118
      %v791 = vpop.permute.xlu0 %790
      %793 = vst.msk [vmem:[#allocation2 + $0x18] sm:$0xff] %vm277, %v791
      %v796 = vunpack.c.l.b16 %v773
      %v797 = vunpack.c.l.b16 %v774
      %v798 = vpack.c.b16 %v797, %v796
      %800 = vst.msk [vmem:[#allocation2 + $0x20] sm:$0xff] %vm264, %v798
      %801 = vrot.lane.b32.xlu0 %v798, 127
      %v802 = vpop.permute.xlu0 %801
      %804 = vst.msk [vmem:[#allocation2 + $0x28] sm:$0xff] %vm264, %v802
      %805 = vrot.lane.b32.xlu0 %v798, 119
      %v806 = vpop.permute.xlu0 %805
      %808 = vst.msk [vmem:[#allocation2 + $0x30] sm:$0xff] %vm264, %v806
      %809 = vrot.lane.b32.xlu0 %v798, 118
      %v810 = vpop.permute.xlu0 %809
      %812 = vst.msk [vmem:[#allocation2 + $0x38] sm:$0xff] %vm277, %v810
      %v813 = vld [vmem:[#allocation2] sm:$0xff]
      %v814 = vld [vmem:[#allocation2 + $0x8] sm:$0xff]
      %v815 = vld [vmem:[#allocation2 + $0x10] sm:$0xff]
      %v816 = vld [vmem:[#allocation2 + $0x18] sm:$0xff]
      %v817 = vld [vmem:[#allocation2 + $0x20] sm:$0xff]
      %v818 = vld [vmem:[#allocation2 + $0x28] sm:$0xff]
      %v819 = vld [vmem:[#allocation2 + $0x30] sm:$0xff]
      %v820 = vld [vmem:[#allocation2 + $0x38] sm:$0xff]
      %821 = vmatprep.subr.bf16.mxu0 0
      %822 = vmatpush1.bf16.msra.mxu0 %v813
      %823 = vmatprep.subr.bf16.mxu0 0
      %824 = vmatpush1.bf16.msra.mxu0 %v814
      %825 = vmatprep.subr.bf16.mxu0 0
      %826 = vmatpush1.bf16.msra.mxu0 %v815
      %827 = vmatprep.subr.bf16.mxu0 0
      %828 = vmatpush1.bf16.msra.mxu0 %v816
      %829 = vmatprep.subr.bf16.mxu0 0
      %830 = vmatpush1.bf16.msra.mxu0 %v817
      %831 = vmatprep.subr.bf16.mxu0 0
      %832 = vmatpush1.bf16.msra.mxu0 %v818
      %833 = vmatprep.subr.bf16.mxu0 0
      %834 = vmatpush1.bf16.msra.mxu0 %v819
      %835 = vmatprep.subr.bf16.mxu0 0
      %836 = vmatpush1.bf16.msra.mxu0 %v820
      %837 = vmatprep.subr.bf16.mxu0 0
      %838 = vmatpush1.bf16.msra.mxu0 0
      %839 = vmatprep.subr.bf16.mxu0 0
      %840 = vmatpush1.bf16.msra.mxu0 0
      %841 = vmatprep.subr.bf16.mxu0 0
      %842 = vmatpush1.bf16.msra.mxu0 0
      %843 = vmatprep.subr.bf16.mxu0 0
      %844 = vmatpush1.bf16.msra.mxu0 0
      %845 = vmatprep.subr.bf16.mxu0 0
      %846 = vmatpush1.bf16.msra.mxu0 0
      %847 = vmatprep.subr.bf16.mxu0 0
      %848 = vmatpush1.bf16.msra.mxu0 0
      %849 = vmatprep.subr.bf16.mxu0 0
      %850 = vmatpush1.bf16.msra.mxu0 0
      %851 = vmatprep.subr.bf16.mxu0 0
      %852 = vmatpush1.bf16.msra.mxu0 0
      %853 = vmatprep.mubr.bf16.mxu0 0
      %854 = vmatmul.mubr.bf16.gmra.mrb[0].mxu0 %v362
      %v855 = vpop.f32.mrb[0].mxu0
      %v856 = vadd.f32 %v309, %v855
      %v857 = vpop.f32.mrb[0].mxu0
      %v858 = vpop.f32.mrb[0].mxu0
      %v859 = vadd.f32 %v314, %v858
      %v860 = vpop.f32.mrb[0].mxu0
      %861 = vmatprep.mubr.bf16.mxu0 0
      %862 = vmatmul.mubr.bf16.gmra.mrb[0].mxu0 %v363
      %v863 = vpop.f32.mrb[0].mxu0
      %v864 = vadd.f32 %v319, %v863
      %v865 = vpop.f32.mrb[0].mxu0
      %v866 = vpop.f32.mrb[0].mxu0
      %v867 = vadd.f32 %v324, %v866
      %v868 = vpop.f32.mrb[0].mxu0
      %869 = vmatprep.mubr.bf16.mxu0 0
      %870 = vmatmul.mubr.bf16.gmra.mrb[0].mxu0 %v364
      %v871 = vpop.f32.mrb[0].mxu0
      %v872 = vadd.f32 %v329, %v871
      %v873 = vpop.f32.mrb[0].mxu0
      %v874 = vpop.f32.mrb[0].mxu0
      %v875 = vadd.f32 %v334, %v874
      %v876 = vpop.f32.mrb[0].mxu0
      %877 = vmatprep.mubr.bf16.mxu0 0
      %878 = vmatmul.mubr.bf16.gmra.mrb[0].mxu0 %v365
      %v879 = vpop.f32.mrb[0].mxu0
      %v880 = vadd.f32 %v339, %v879
      %v881 = vpop.f32.mrb[0].mxu0
      %v882 = vpop.f32.mrb[0].mxu0
      %v883 = vadd.f32 %v344, %v882
      %v884 = vpop.f32.mrb[0].mxu0
      %885 = vdwg.mxu0
      %v886 = vmul.f32 %v856, 0.2
      %v887 = vmul.f32 %v859, 0.2
      %v888 = vmul.f32 %v864, 0.2
      %v889 = vmul.f32 %v867, 0.2
      %v890 = vmul.f32 %v872, 0.2
      %v891 = vmul.f32 %v875, 0.2
      %v892 = vmul.f32 %v880, 0.2
      %v893 = vmul.f32 %v883, 0.2
      %v894 = vmax.f32 %v856, %v886
      %v895 = vmax.f32 %v859, %v887
      %v896 = vmax.f32 %v864, %v888
      %v897 = vmax.f32 %v867, %v889
      %v898 = vmax.f32 %v872, %v890
      %v899 = vmax.f32 %v875, %v891
      %v900 = vmax.f32 %v880, %v892
      %v901 = vmax.f32 %v883, %v893
      %v902 = vmul.f32 %v894, %v454
      %v903 = vmul.f32 %v895, %v459
      %v904 = vmul.f32 %v896, %v464
      %v905 = vmul.f32 %v897, %v469
      %v906 = vmul.f32 %v898, %v474
      %v907 = vmul.f32 %v899, %v479
      %v908 = vmul.f32 %v900, %v484
      %v909 = vmul.f32 %v901, %v489
      %v910 = vmul.f32 %v902, 0.2
      %v911 = vmul.f32 %v903, 0.2
      %v912 = vmul.f32 %v904, 0.2
      %v913 = vmul.f32 %v905, 0.2
      %v914 = vmul.f32 %v906, 0.2
      %v915 = vmul.f32 %v907, 0.2
      %v916 = vmul.f32 %v908, 0.2
      %v917 = vmul.f32 %v909, 0.2
      %v918 = vmax.f32 %v902, %v910
      %v919 = vmax.f32 %v903, %v911
      %v920 = vmax.f32 %v904, %v912
      %v921 = vmax.f32 %v905, %v913
      %v922 = vmax.f32 %v906, %v914
      %v923 = vmax.f32 %v907, %v915
      %v924 = vmax.f32 %v908, %v916
      %v925 = vmax.f32 %v909, %v917
      %v926 = vmax.f32 %v918, %v919
      %v927 = vmax.f32 %v920, %v921
      %v928 = vmax.f32 %v922, %v923
      %v929 = vmax.f32 %v924, %v925
      %v930 = vmax.f32 %v926, %v927
      %v931 = vmax.f32 %v928, %v929
      %v932 = vmax.f32 %v930, %v931
      %933 = vst.msk [vmem:[%s219 + $0x8] sm:$0xff] %vm522, %v932
      %935 = vrot.lane.b32.xlu0 %v932, 127
      %v936 = vpop.permute.xlu0 %935
      %938 = vst.msk [vmem:[%s219 + $0x8] sm:$0xff] %vm528, %v936
      %939 = vrot.lane.b32.xlu0 %v932, 126
      %v940 = vpop.permute.xlu0 %939
      %942 = vst.msk [vmem:[%s219 + $0x8] sm:$0xff] %vm533, %v940
      %943 = vrot.lane.b32.xlu0 %v932, 125
      %v944 = vpop.permute.xlu0 %943
      %946 = vst.msk [vmem:[%s219 + $0x8] sm:$0xff] %vm538, %v944
      %947 = vrot.lane.b32.xlu0 %v932, 124
      %v948 = vpop.permute.xlu0 %947
      %950 = vst.msk [vmem:[%s219 + $0x8] sm:$0xff] %vm543, %v948
      %951 = vrot.lane.b32.xlu0 %v932, 123
      %v952 = vpop.permute.xlu0 %951
      %954 = vst.msk [vmem:[%s219 + $0x8] sm:$0xff] %vm548, %v952
      %955 = vrot.lane.b32.xlu0 %v932, 122
      %v956 = vpop.permute.xlu0 %955
      %958 = vst.msk [vmem:[%s219 + $0x8] sm:$0xff] %vm553, %v956
      %959 = vrot.lane.b32.xlu0 %v932, 121
      %v960 = vpop.permute.xlu0 %959
      %962 = vst.msk [vmem:[%s219 + $0x8] sm:$0xff] %vm558, %v960
      %v963 = vld [vmem:[%s772] sm:$0xf]
      %v964 = vld [vmem:[%s772 + $0x4] sm:$0xf]
      %s965 = sadd.s32 %s246, 4
      %s966 = smul.u32 %s965, 2
      %s967 = smul.addr %s966, 4
      %s968 = scalar_lea.vmem %s210, %s967
      %v969 = vld [vmem:[%s968] sm:$0xf]
      %v970 = vld [vmem:[%s968 + $0x4] sm:$0xf]
      %v973 = vunpack.c.l.b16 %v963
      %v974 = vunpack.c.l.b16 %v964
      %v975 = vpack.c.b16 %v974, %v973
      %977 = vst.msk [vmem:[#allocation2] sm:$0xff] %vm264, %v975
      %978 = vrot.lane.b32.xlu0 %v975, 127
      %v979 = vpop.permute.xlu0 %978
      %981 = vst.msk [vmem:[#allocation2 + $0x8] sm:$0xff] %vm264, %v979
      %982 = vrot.lane.b32.xlu0 %v975, 119
      %v983 = vpop.permute.xlu0 %982
      %985 = vst.msk [vmem:[#allocation2 + $0x10] sm:$0xff] %vm264, %v983
      %986 = vrot.lane.b32.xlu0 %v975, 118
      %v987 = vpop.permute.xlu0 %986
      %989 = vst.msk [vmem:[#allocation2 + $0x18] sm:$0xff] %vm277, %v987
      %v992 = vunpack.c.l.b16 %v969
      %v993 = vunpack.c.l.b16 %v970
      %v994 = vpack.c.b16 %v993, %v992
      %996 = vst.msk [vmem:[#allocation2 + $0x20] sm:$0xff] %vm264, %v994
      %997 = vrot.lane.b32.xlu0 %v994, 127
      %v998 = vpop.permute.xlu0 %997
      %1000 = vst.msk [vmem:[#allocation2 + $0x28] sm:$0xff] %vm264, %v998
      %1001 = vrot.lane.b32.xlu0 %v994, 119
      %v1002 = vpop.permute.xlu0 %1001
      %1004 = vst.msk [vmem:[#allocation2 + $0x30] sm:$0xff] %vm264, %v1002
      %1005 = vrot.lane.b32.xlu0 %v994, 118
      %v1006 = vpop.permute.xlu0 %1005
      %1008 = vst.msk [vmem:[#allocation2 + $0x38] sm:$0xff] %vm277, %v1006
      %v1009 = vld [vmem:[#allocation2] sm:$0xff]
      %v1010 = vld [vmem:[#allocation2 + $0x8] sm:$0xff]
      %v1011 = vld [vmem:[#allocation2 + $0x10] sm:$0xff]
      %v1012 = vld [vmem:[#allocation2 + $0x18] sm:$0xff]
      %v1013 = vld [vmem:[#allocation2 + $0x20] sm:$0xff]
      %v1014 = vld [vmem:[#allocation2 + $0x28] sm:$0xff]
      %v1015 = vld [vmem:[#allocation2 + $0x30] sm:$0xff]
      %v1016 = vld [vmem:[#allocation2 + $0x38] sm:$0xff]
      %1017 = vmatprep.subr.bf16.mxu0 0
      %1018 = vmatpush1.bf16.msra.mxu0 %v1009
      %1019 = vmatprep.subr.bf16.mxu0 0
      %1020 = vmatpush1.bf16.msra.mxu0 %v1010
      %1021 = vmatprep.subr.bf16.mxu0 0
      %1022 = vmatpush1.bf16.msra.mxu0 %v1011
      %1023 = vmatprep.subr.bf16.mxu0 0
      %1024 = vmatpush1.bf16.msra.mxu0 %v1012
      %1025 = vmatprep.subr.bf16.mxu0 0
      %1026 = vmatpush1.bf16.msra.mxu0 %v1013
      %1027 = vmatprep.subr.bf16.mxu0 0
      %1028 = vmatpush1.bf16.msra.mxu0 %v1014
      %1029 = vmatprep.subr.bf16.mxu0 0
      %1030 = vmatpush1.bf16.msra.mxu0 %v1015
      %1031 = vmatprep.subr.bf16.mxu0 0
      %1032 = vmatpush1.bf16.msra.mxu0 %v1016
      %1033 = vmatprep.subr.bf16.mxu0 0
      %1034 = vmatpush1.bf16.msra.mxu0 0
      %1035 = vmatprep.subr.bf16.mxu0 0
      %1036 = vmatpush1.bf16.msra.mxu0 0
      %1037 = vmatprep.subr.bf16.mxu0 0
      %1038 = vmatpush1.bf16.msra.mxu0 0
      %1039 = vmatprep.subr.bf16.mxu0 0
      %1040 = vmatpush1.bf16.msra.mxu0 0
      %1041 = vmatprep.subr.bf16.mxu0 0
      %1042 = vmatpush1.bf16.msra.mxu0 0
      %1043 = vmatprep.subr.bf16.mxu0 0
      %1044 = vmatpush1.bf16.msra.mxu0 0
      %1045 = vmatprep.subr.bf16.mxu0 0
      %1046 = vmatpush1.bf16.msra.mxu0 0
      %1047 = vmatprep.subr.bf16.mxu0 0
      %1048 = vmatpush1.bf16.msra.mxu0 0
      %1049 = vmatprep.mubr.bf16.mxu0 0
      %1050 = vmatmul.mubr.bf16.gmra.mrb[0].mxu0 %v362
      %v1051 = vpop.f32.mrb[0].mxu0
      %v1052 = vadd.f32 %v309, %v1051
      %v1053 = vpop.f32.mrb[0].mxu0
      %v1054 = vpop.f32.mrb[0].mxu0
      %v1055 = vadd.f32 %v314, %v1054
      %v1056 = vpop.f32.mrb[0].mxu0
      %1057 = vmatprep.mubr.bf16.mxu0 0
      %1058 = vmatmul.mubr.bf16.gmra.mrb[0].mxu0 %v363
      %v1059 = vpop.f32.mrb[0].mxu0
      %v1060 = vadd.f32 %v319, %v1059
      %v1061 = vpop.f32.mrb[0].mxu0
      %v1062 = vpop.f32.mrb[0].mxu0
      %v1063 = vadd.f32 %v324, %v1062
      %v1064 = vpop.f32.mrb[0].mxu0
      %1065 = vmatprep.mubr.bf16.mxu0 0
      %1066 = vmatmul.mubr.bf16.gmra.mrb[0].mxu0 %v364
      %v1067 = vpop.f32.mrb[0].mxu0
      %v1068 = vadd.f32 %v329, %v1067
      %v1069 = vpop.f32.mrb[0].mxu0
      %v1070 = vpop.f32.mrb[0].mxu0
      %v1071 = vadd.f32 %v334, %v1070
      %v1072 = vpop.f32.mrb[0].mxu0
      %1073 = vmatprep.mubr.bf16.mxu0 0
      %1074 = vmatmul.mubr.bf16.gmra.mrb[0].mxu0 %v365
      %v1075 = vpop.f32.mrb[0].mxu0
      %v1076 = vadd.f32 %v339, %v1075
      %v1077 = vpop.f32.mrb[0].mxu0
      %v1078 = vpop.f32.mrb[0].mxu0
      %v1079 = vadd.f32 %v344, %v1078
      %v1080 = vpop.f32.mrb[0].mxu0
      %1081 = vdwg.mxu0
      %v1082 = vmul.f32 %v1052, 0.2
      %v1083 = vmul.f32 %v1055, 0.2
      %v1084 = vmul.f32 %v1060, 0.2
      %v1085 = vmul.f32 %v1063, 0.2
      %v1086 = vmul.f32 %v1068, 0.2
      %v1087 = vmul.f32 %v1071, 0.2
      %v1088 = vmul.f32 %v1076, 0.2
      %v1089 = vmul.f32 %v1079, 0.2
      %v1090 = vmax.f32 %v1052, %v1082
      %v1091 = vmax.f32 %v1055, %v1083
      %v1092 = vmax.f32 %v1060, %v1084
      %v1093 = vmax.f32 %v1063, %v1085
      %v1094 = vmax.f32 %v1068, %v1086
      %v1095 = vmax.f32 %v1071, %v1087
      %v1096 = vmax.f32 %v1076, %v1088
      %v1097 = vmax.f32 %v1079, %v1089
      %v1098 = vmul.f32 %v1090, %v454
      %v1099 = vmul.f32 %v1091, %v459
      %v1100 = vmul.f32 %v1092, %v464
      %v1101 = vmul.f32 %v1093, %v469
      %v1102 = vmul.f32 %v1094, %v474
      %v1103 = vmul.f32 %v1095, %v479
      %v1104 = vmul.f32 %v1096, %v484
      %v1105 = vmul.f32 %v1097, %v489
      %v1106 = vmul.f32 %v1098, 0.2
      %v1107 = vmul.f32 %v1099, 0.2
      %v1108 = vmul.f32 %v1100, 0.2
      %v1109 = vmul.f32 %v1101, 0.2
      %v1110 = vmul.f32 %v1102, 0.2
      %v1111 = vmul.f32 %v1103, 0.2
      %v1112 = vmul.f32 %v1104, 0.2
      %v1113 = vmul.f32 %v1105, 0.2
      %v1114 = vmax.f32 %v1098, %v1106
      %v1115 = vmax.f32 %v1099, %v1107
      %v1116 = vmax.f32 %v1100, %v1108
      %v1117 = vmax.f32 %v1101, %v1109
      %v1118 = vmax.f32 %v1102, %v1110
      %v1119 = vmax.f32 %v1103, %v1111
      %v1120 = vmax.f32 %v1104, %v1112
      %v1121 = vmax.f32 %v1105, %v1113
      %v1122 = vmax.f32 %v1114, %v1115
      %v1123 = vmax.f32 %v1116, %v1117
      %v1124 = vmax.f32 %v1118, %v1119
      %v1125 = vmax.f32 %v1120, %v1121
      %v1126 = vmax.f32 %v1122, %v1123
      %v1127 = vmax.f32 %v1124, %v1125
      %v1128 = vmax.f32 %v1126, %v1127
      %1130 = vrot.lane.b32.xlu0 %v1128, 64
      %v1131 = vpop.permute.xlu0 %1130
      %1133 = vst.msk [vmem:[%s219 + $0x8] sm:$0xff] %vm730, %v1131
      %1134 = vrot.lane.b32.xlu0 %v1128, 63
      %v1135 = vpop.permute.xlu0 %1134
      %1137 = vst.msk [vmem:[%s219 + $0x8] sm:$0xff] %vm735, %v1135
      %1138 = vrot.lane.b32.xlu0 %v1128, 62
      %v1139 = vpop.permute.xlu0 %1138
      %1141 = vst.msk [vmem:[%s219 + $0x8] sm:$0xff] %vm740, %v1139
      %1142 = vrot.lane.b32.xlu0 %v1128, 61
      %v1143 = vpop.permute.xlu0 %1142
      %1145 = vst.msk [vmem:[%s219 + $0x8] sm:$0xff] %vm745, %v1143
      %1146 = vrot.lane.b32.xlu0 %v1128, 60
      %v1147 = vpop.permute.xlu0 %1146
      %1149 = vst.msk [vmem:[%s219 + $0x8] sm:$0xff] %vm750, %v1147
      %1150 = vrot.lane.b32.xlu0 %v1128, 59
      %v1151 = vpop.permute.xlu0 %1150
      %1153 = vst.msk [vmem:[%s219 + $0x8] sm:$0xff] %vm755, %v1151
      %1154 = vrot.lane.b32.xlu0 %v1128, 58
      %v1155 = vpop.permute.xlu0 %1154
      %1157 = vst.msk [vmem:[%s219 + $0x8] sm:$0xff] %vm760, %v1155
      %1158 = vrot.lane.b32.xlu0 %v1128, 57
      %v1159 = vpop.permute.xlu0 %1158
      %1161 = vst.msk [vmem:[%s219 + $0x8] sm:$0xff] %vm765, %v1159
      %v1162 = vld [vmem:[%s968] sm:$0xf]
      %v1163 = vld [vmem:[%s968 + $0x4] sm:$0xf]
      %s1164 = sadd.s32 %s246, 5
      %s1165 = smul.u32 %s1164, 2
      %s1166 = smul.addr %s1165, 4
      %s1167 = scalar_lea.vmem %s210, %s1166
      %v1168 = vld [vmem:[%s1167] sm:$0xf]
      %v1169 = vld [vmem:[%s1167 + $0x4] sm:$0xf]
      %v1172 = vunpack.c.l.b16 %v1162
      %v1173 = vunpack.c.l.b16 %v1163
      %v1174 = vpack.c.b16 %v1173, %v1172
      %1176 = vst.msk [vmem:[#allocation2] sm:$0xff] %vm264, %v1174
      %1177 = vrot.lane.b32.xlu0 %v1174, 127
      %v1178 = vpop.permute.xlu0 %1177
      %1180 = vst.msk [vmem:[#allocation2 + $0x8] sm:$0xff] %vm264, %v1178
      %1181 = vrot.lane.b32.xlu0 %v1174, 119
      %v1182 = vpop.permute.xlu0 %1181
      %1184 = vst.msk [vmem:[#allocation2 + $0x10] sm:$0xff] %vm264, %v1182
      %1185 = vrot.lane.b32.xlu0 %v1174, 118
      %v1186 = vpop.permute.xlu0 %1185
      %1188 = vst.msk [vmem:[#allocation2 + $0x18] sm:$0xff] %vm277, %v1186
      %v1191 = vunpack.c.l.b16 %v1168
      %v1192 = vunpack.c.l.b16 %v1169
      %v1193 = vpack.c.b16 %v1192, %v1191
      %1195 = vst.msk [vmem:[#allocation2 + $0x20] sm:$0xff] %vm264, %v1193
      %1196 = vrot.lane.b32.xlu0 %v1193, 127
      %v1197 = vpop.permute.xlu0 %1196
      %1199 = vst.msk [vmem:[#allocation2 + $0x28] sm:$0xff] %vm264, %v1197
      %1200 = vrot.lane.b32.xlu0 %v1193, 119
      %v1201 = vpop.permute.xlu0 %1200
      %1203 = vst.msk [vmem:[#allocation2 + $0x30] sm:$0xff] %vm264, %v1201
      %1204 = vrot.lane.b32.xlu0 %v1193, 118
      %v1205 = vpop.permute.xlu0 %1204
      %1207 = vst.msk [vmem:[#allocation2 + $0x38] sm:$0xff] %vm277, %v1205
      %v1208 = vld [vmem:[#allocation2] sm:$0xff]
      %v1209 = vld [vmem:[#allocation2 + $0x8] sm:$0xff]
      %v1210 = vld [vmem:[#allocation2 + $0x10] sm:$0xff]
      %v1211 = vld [vmem:[#allocation2 + $0x18] sm:$0xff]
      %v1212 = vld [vmem:[#allocation2 + $0x20] sm:$0xff]
      %v1213 = vld [vmem:[#allocation2 + $0x28] sm:$0xff]
      %v1214 = vld [vmem:[#allocation2 + $0x30] sm:$0xff]
      %v1215 = vld [vmem:[#allocation2 + $0x38] sm:$0xff]
      %1216 = vmatprep.subr.bf16.mxu0 0
      %1217 = vmatpush1.bf16.msra.mxu0 %v1208
      %1218 = vmatprep.subr.bf16.mxu0 0
      %1219 = vmatpush1.bf16.msra.mxu0 %v1209
      %1220 = vmatprep.subr.bf16.mxu0 0
      %1221 = vmatpush1.bf16.msra.mxu0 %v1210
      %1222 = vmatprep.subr.bf16.mxu0 0
      %1223 = vmatpush1.bf16.msra.mxu0 %v1211
      %1224 = vmatprep.subr.bf16.mxu0 0
      %1225 = vmatpush1.bf16.msra.mxu0 %v1212
      %1226 = vmatprep.subr.bf16.mxu0 0
      %1227 = vmatpush1.bf16.msra.mxu0 %v1213
      %1228 = vmatprep.subr.bf16.mxu0 0
      %1229 = vmatpush1.bf16.msra.mxu0 %v1214
      %1230 = vmatprep.subr.bf16.mxu0 0
      %1231 = vmatpush1.bf16.msra.mxu0 %v1215
      %1232 = vmatprep.subr.bf16.mxu0 0
      %1233 = vmatpush1.bf16.msra.mxu0 0
      %1234 = vmatprep.subr.bf16.mxu0 0
      %1235 = vmatpush1.bf16.msra.mxu0 0
      %1236 = vmatprep.subr.bf16.mxu0 0
      %1237 = vmatpush1.bf16.msra.mxu0 0
      %1238 = vmatprep.subr.bf16.mxu0 0
      %1239 = vmatpush1.bf16.msra.mxu0 0
      %1240 = vmatprep.subr.bf16.mxu0 0
      %1241 = vmatpush1.bf16.msra.mxu0 0
      %1242 = vmatprep.subr.bf16.mxu0 0
      %1243 = vmatpush1.bf16.msra.mxu0 0
      %1244 = vmatprep.subr.bf16.mxu0 0
      %1245 = vmatpush1.bf16.msra.mxu0 0
      %1246 = vmatprep.subr.bf16.mxu0 0
      %1247 = vmatpush1.bf16.msra.mxu0 0
      %1248 = vmatprep.mubr.bf16.mxu0 0
      %1249 = vmatmul.mubr.bf16.gmra.mrb[0].mxu0 %v362
      %v1250 = vpop.f32.mrb[0].mxu0
      %v1251 = vadd.f32 %v309, %v1250
      %v1252 = vpop.f32.mrb[0].mxu0
      %v1253 = vpop.f32.mrb[0].mxu0
      %v1254 = vadd.f32 %v314, %v1253
      %v1255 = vpop.f32.mrb[0].mxu0
      %1256 = vmatprep.mubr.bf16.mxu0 0
      %1257 = vmatmul.mubr.bf16.gmra.mrb[0].mxu0 %v363
      %v1258 = vpop.f32.mrb[0].mxu0
      %v1259 = vadd.f32 %v319, %v1258
      %v1260 = vpop.f32.mrb[0].mxu0
      %v1261 = vpop.f32.mrb[0].mxu0
      %v1262 = vadd.f32 %v324, %v1261
      %v1263 = vpop.f32.mrb[0].mxu0
      %1264 = vmatprep.mubr.bf16.mxu0 0
      %1265 = vmatmul.mubr.bf16.gmra.mrb[0].mxu0 %v364
      %v1266 = vpop.f32.mrb[0].mxu0
      %v1267 = vadd.f32 %v329, %v1266
      %v1268 = vpop.f32.mrb[0].mxu0
      %v1269 = vpop.f32.mrb[0].mxu0
      %v1270 = vadd.f32 %v334, %v1269
      %v1271 = vpop.f32.mrb[0].mxu0
      %1272 = vmatprep.mubr.bf16.mxu0 0
      %1273 = vmatmul.mubr.bf16.gmra.mrb[0].mxu0 %v365
      %v1274 = vpop.f32.mrb[0].mxu0
      %v1275 = vadd.f32 %v339, %v1274
      %v1276 = vpop.f32.mrb[0].mxu0
      %v1277 = vpop.f32.mrb[0].mxu0
      %v1278 = vadd.f32 %v344, %v1277
      %v1279 = vpop.f32.mrb[0].mxu0
      %1280 = vdwg.mxu0
      %v1281 = vmul.f32 %v1251, 0.2
      %v1282 = vmul.f32 %v1254, 0.2
      %v1283 = vmul.f32 %v1259, 0.2
      %v1284 = vmul.f32 %v1262, 0.2
      %v1285 = vmul.f32 %v1267, 0.2
      %v1286 = vmul.f32 %v1270, 0.2
      %v1287 = vmul.f32 %v1275, 0.2
      %v1288 = vmul.f32 %v1278, 0.2
      %v1289 = vmax.f32 %v1251, %v1281
      %v1290 = vmax.f32 %v1254, %v1282
      %v1291 = vmax.f32 %v1259, %v1283
      %v1292 = vmax.f32 %v1262, %v1284
      %v1293 = vmax.f32 %v1267, %v1285
      %v1294 = vmax.f32 %v1270, %v1286
      %v1295 = vmax.f32 %v1275, %v1287
      %v1296 = vmax.f32 %v1278, %v1288
      %v1297 = vmul.f32 %v1289, %v454
      %v1298 = vmul.f32 %v1290, %v459
      %v1299 = vmul.f32 %v1291, %v464
      %v1300 = vmul.f32 %v1292, %v469
      %v1301 = vmul.f32 %v1293, %v474
      %v1302 = vmul.f32 %v1294, %v479
      %v1303 = vmul.f32 %v1295, %v484
      %v1304 = vmul.f32 %v1296, %v489
      %v1305 = vmul.f32 %v1297, 0.2
      %v1306 = vmul.f32 %v1298, 0.2
      %v1307 = vmul.f32 %v1299, 0.2
      %v1308 = vmul.f32 %v1300, 0.2
      %v1309 = vmul.f32 %v1301, 0.2
      %v1310 = vmul.f32 %v1302, 0.2
      %v1311 = vmul.f32 %v1303, 0.2
      %v1312 = vmul.f32 %v1304, 0.2
      %v1313 = vmax.f32 %v1297, %v1305
      %v1314 = vmax.f32 %v1298, %v1306
      %v1315 = vmax.f32 %v1299, %v1307
      %v1316 = vmax.f32 %v1300, %v1308
      %v1317 = vmax.f32 %v1301, %v1309
      %v1318 = vmax.f32 %v1302, %v1310
      %v1319 = vmax.f32 %v1303, %v1311
      %v1320 = vmax.f32 %v1304, %v1312
      %v1321 = vmax.f32 %v1313, %v1314
      %v1322 = vmax.f32 %v1315, %v1316
      %v1323 = vmax.f32 %v1317, %v1318
      %v1324 = vmax.f32 %v1319, %v1320
      %v1325 = vmax.f32 %v1321, %v1322
      %v1326 = vmax.f32 %v1323, %v1324
      %v1327 = vmax.f32 %v1325, %v1326
      %1328 = vst.msk [vmem:[%s219 + $0x10] sm:$0xff] %vm522, %v1327
      %1330 = vrot.lane.b32.xlu0 %v1327, 127
      %v1331 = vpop.permute.xlu0 %1330
      %1333 = vst.msk [vmem:[%s219 + $0x10] sm:$0xff] %vm528, %v1331
      %1334 = vrot.lane.b32.xlu0 %v1327, 126
      %v1335 = vpop.permute.xlu0 %1334
      %1337 = vst.msk [vmem:[%s219 + $0x10] sm:$0xff] %vm533, %v1335
      %1338 = vrot.lane.b32.xlu0 %v1327, 125
      %v1339 = vpop.permute.xlu0 %1338
      %1341 = vst.msk [vmem:[%s219 + $0x10] sm:$0xff] %vm538, %v1339
      %1342 = vrot.lane.b32.xlu0 %v1327, 124
      %v1343 = vpop.permute.xlu0 %1342
      %1345 = vst.msk [vmem:[%s219 + $0x10] sm:$0xff] %vm543, %v1343
      %1346 = vrot.lane.b32.xlu0 %v1327, 123
      %v1347 = vpop.permute.xlu0 %1346
      %1349 = vst.msk [vmem:[%s219 + $0x10] sm:$0xff] %vm548, %v1347
      %1350 = vrot.lane.b32.xlu0 %v1327, 122
      %v1351 = vpop.permute.xlu0 %1350
      %1353 = vst.msk [vmem:[%s219 + $0x10] sm:$0xff] %vm553, %v1351
      %1354 = vrot.lane.b32.xlu0 %v1327, 121
      %v1355 = vpop.permute.xlu0 %1354
      %1357 = vst.msk [vmem:[%s219 + $0x10] sm:$0xff] %vm558, %v1355
      %v1358 = vld [vmem:[%s1167] sm:$0xf]
      %v1359 = vld [vmem:[%s1167 + $0x4] sm:$0xf]
      %s1360 = sadd.s32 %s246, 6
      %s1361 = smul.u32 %s1360, 2
      %s1362 = smul.addr %s1361, 4
      %s1363 = scalar_lea.vmem %s210, %s1362
      %v1364 = vld [vmem:[%s1363] sm:$0xf]
      %v1365 = vld [vmem:[%s1363 + $0x4] sm:$0xf]
      %v1368 = vunpack.c.l.b16 %v1358
      %v1369 = vunpack.c.l.b16 %v1359
      %v1370 = vpack.c.b16 %v1369, %v1368
      %1372 = vst.msk [vmem:[#allocation2] sm:$0xff] %vm264, %v1370
      %1373 = vrot.lane.b32.xlu0 %v1370, 127
      %v1374 = vpop.permute.xlu0 %1373
      %1376 = vst.msk [vmem:[#allocation2 + $0x8] sm:$0xff] %vm264, %v1374
      %1377 = vrot.lane.b32.xlu0 %v1370, 119
      %v1378 = vpop.permute.xlu0 %1377
      %1380 = vst.msk [vmem:[#allocation2 + $0x10] sm:$0xff] %vm264, %v1378
      %1381 = vrot.lane.b32.xlu0 %v1370, 118
      %v1382 = vpop.permute.xlu0 %1381
      %1384 = vst.msk [vmem:[#allocation2 + $0x18] sm:$0xff] %vm277, %v1382
      %v1387 = vunpack.c.l.b16 %v1364
      %v1388 = vunpack.c.l.b16 %v1365
      %v1389 = vpack.c.b16 %v1388, %v1387
      %1391 = vst.msk [vmem:[#allocation2 + $0x20] sm:$0xff] %vm264, %v1389
      %1392 = vrot.lane.b32.xlu0 %v1389, 127
      %v1393 = vpop.permute.xlu0 %1392
      %1395 = vst.msk [vmem:[#allocation2 + $0x28] sm:$0xff] %vm264, %v1393
      %1396 = vrot.lane.b32.xlu0 %v1389, 119
      %v1397 = vpop.permute.xlu0 %1396
      %1399 = vst.msk [vmem:[#allocation2 + $0x30] sm:$0xff] %vm264, %v1397
      %1400 = vrot.lane.b32.xlu0 %v1389, 118
      %v1401 = vpop.permute.xlu0 %1400
      %1403 = vst.msk [vmem:[#allocation2 + $0x38] sm:$0xff] %vm277, %v1401
      %v1404 = vld [vmem:[#allocation2] sm:$0xff]
      %v1405 = vld [vmem:[#allocation2 + $0x8] sm:$0xff]
      %v1406 = vld [vmem:[#allocation2 + $0x10] sm:$0xff]
      %v1407 = vld [vmem:[#allocation2 + $0x18] sm:$0xff]
      %v1408 = vld [vmem:[#allocation2 + $0x20] sm:$0xff]
      %v1409 = vld [vmem:[#allocation2 + $0x28] sm:$0xff]
      %v1410 = vld [vmem:[#allocation2 + $0x30] sm:$0xff]
      %v1411 = vld [vmem:[#allocation2 + $0x38] sm:$0xff]
      %1412 = vmatprep.subr.bf16.mxu0 0
      %1413 = vmatpush1.bf16.msra.mxu0 %v1404
      %1414 = vmatprep.subr.bf16.mxu0 0
      %1415 = vmatpush1.bf16.msra.mxu0 %v1405
      %1416 = vmatprep.subr.bf16.mxu0 0
      %1417 = vmatpush1.bf16.msra.mxu0 %v1406
      %1418 = vmatprep.subr.bf16.mxu0 0
      %1419 = vmatpush1.bf16.msra.mxu0 %v1407
      %1420 = vmatprep.subr.bf16.mxu0 0
      %1421 = vmatpush1.bf16.msra.mxu0 %v1408
      %1422 = vmatprep.subr.bf16.mxu0 0
      %1423 = vmatpush1.bf16.msra.mxu0 %v1409
      %1424 = vmatprep.subr.bf16.mxu0 0
      %1425 = vmatpush1.bf16.msra.mxu0 %v1410
      %1426 = vmatprep.subr.bf16.mxu0 0
      %1427 = vmatpush1.bf16.msra.mxu0 %v1411
      %1428 = vmatprep.subr.bf16.mxu0 0
      %1429 = vmatpush1.bf16.msra.mxu0 0
      %1430 = vmatprep.subr.bf16.mxu0 0
      %1431 = vmatpush1.bf16.msra.mxu0 0
      %1432 = vmatprep.subr.bf16.mxu0 0
      %1433 = vmatpush1.bf16.msra.mxu0 0
      %1434 = vmatprep.subr.bf16.mxu0 0
      %1435 = vmatpush1.bf16.msra.mxu0 0
      %1436 = vmatprep.subr.bf16.mxu0 0
      %1437 = vmatpush1.bf16.msra.mxu0 0
      %1438 = vmatprep.subr.bf16.mxu0 0
      %1439 = vmatpush1.bf16.msra.mxu0 0
      %1440 = vmatprep.subr.bf16.mxu0 0
      %1441 = vmatpush1.bf16.msra.mxu0 0
      %1442 = vmatprep.subr.bf16.mxu0 0
      %1443 = vmatpush1.bf16.msra.mxu0 0
      %1444 = vmatprep.mubr.bf16.mxu0 0
      %1445 = vmatmul.mubr.bf16.gmra.mrb[0].mxu0 %v362
      %v1446 = vpop.f32.mrb[0].mxu0
      %v1447 = vadd.f32 %v309, %v1446
      %v1448 = vpop.f32.mrb[0].mxu0
      %v1449 = vpop.f32.mrb[0].mxu0
      %v1450 = vadd.f32 %v314, %v1449
      %v1451 = vpop.f32.mrb[0].mxu0
      %1452 = vmatprep.mubr.bf16.mxu0 0
      %1453 = vmatmul.mubr.bf16.gmra.mrb[0].mxu0 %v363
      %v1454 = vpop.f32.mrb[0].mxu0
      %v1455 = vadd.f32 %v319, %v1454
      %v1456 = vpop.f32.mrb[0].mxu0
      %v1457 = vpop.f32.mrb[0].mxu0
      %v1458 = vadd.f32 %v324, %v1457
      %v1459 = vpop.f32.mrb[0].mxu0
      %1460 = vmatprep.mubr.bf16.mxu0 0
      %1461 = vmatmul.mubr.bf16.gmra.mrb[0].mxu0 %v364
      %v1462 = vpop.f32.mrb[0].mxu0
      %v1463 = vadd.f32 %v329, %v1462
      %v1464 = vpop.f32.mrb[0].mxu0
      %v1465 = vpop.f32.mrb[0].mxu0
      %v1466 = vadd.f32 %v334, %v1465
      %v1467 = vpop.f32.mrb[0].mxu0
      %1468 = vmatprep.mubr.bf16.mxu0 0
      %1469 = vmatmul.mubr.bf16.gmra.mrb[0].mxu0 %v365
      %v1470 = vpop.f32.mrb[0].mxu0
      %v1471 = vadd.f32 %v339, %v1470
      %v1472 = vpop.f32.mrb[0].mxu0
      %v1473 = vpop.f32.mrb[0].mxu0
      %v1474 = vadd.f32 %v344, %v1473
      %v1475 = vpop.f32.mrb[0].mxu0
      %1476 = vdwg.mxu0
      %v1477 = vmul.f32 %v1447, 0.2
      %v1478 = vmul.f32 %v1450, 0.2
      %v1479 = vmul.f32 %v1455, 0.2
      %v1480 = vmul.f32 %v1458, 0.2
      %v1481 = vmul.f32 %v1463, 0.2
      %v1482 = vmul.f32 %v1466, 0.2
      %v1483 = vmul.f32 %v1471, 0.2
      %v1484 = vmul.f32 %v1474, 0.2
      %v1485 = vmax.f32 %v1447, %v1477
      %v1486 = vmax.f32 %v1450, %v1478
      %v1487 = vmax.f32 %v1455, %v1479
      %v1488 = vmax.f32 %v1458, %v1480
      %v1489 = vmax.f32 %v1463, %v1481
      %v1490 = vmax.f32 %v1466, %v1482
      %v1491 = vmax.f32 %v1471, %v1483
      %v1492 = vmax.f32 %v1474, %v1484
      %v1493 = vmul.f32 %v1485, %v454
      %v1494 = vmul.f32 %v1486, %v459
      %v1495 = vmul.f32 %v1487, %v464
      %v1496 = vmul.f32 %v1488, %v469
      %v1497 = vmul.f32 %v1489, %v474
      %v1498 = vmul.f32 %v1490, %v479
      %v1499 = vmul.f32 %v1491, %v484
      %v1500 = vmul.f32 %v1492, %v489
      %v1501 = vmul.f32 %v1493, 0.2
      %v1502 = vmul.f32 %v1494, 0.2
      %v1503 = vmul.f32 %v1495, 0.2
      %v1504 = vmul.f32 %v1496, 0.2
      %v1505 = vmul.f32 %v1497, 0.2
      %v1506 = vmul.f32 %v1498, 0.2
      %v1507 = vmul.f32 %v1499, 0.2
      %v1508 = vmul.f32 %v1500, 0.2
      %v1509 = vmax.f32 %v1493, %v1501
      %v1510 = vmax.f32 %v1494, %v1502
      %v1511 = vmax.f32 %v1495, %v1503
      %v1512 = vmax.f32 %v1496, %v1504
      %v1513 = vmax.f32 %v1497, %v1505
      %v1514 = vmax.f32 %v1498, %v1506
      %v1515 = vmax.f32 %v1499, %v1507
      %v1516 = vmax.f32 %v1500, %v1508
      %v1517 = vmax.f32 %v1509, %v1510
      %v1518 = vmax.f32 %v1511, %v1512
      %v1519 = vmax.f32 %v1513, %v1514
      %v1520 = vmax.f32 %v1515, %v1516
      %v1521 = vmax.f32 %v1517, %v1518
      %v1522 = vmax.f32 %v1519, %v1520
      %v1523 = vmax.f32 %v1521, %v1522
      %1525 = vrot.lane.b32.xlu0 %v1523, 64
      %v1526 = vpop.permute.xlu0 %1525
      %1528 = vst.msk [vmem:[%s219 + $0x10] sm:$0xff] %vm730, %v1526
      %1529 = vrot.lane.b32.xlu0 %v1523, 63
      %v1530 = vpop.permute.xlu0 %1529
      %1532 = vst.msk [vmem:[%s219 + $0x10] sm:$0xff] %vm735, %v1530
      %1533 = vrot.lane.b32.xlu0 %v1523, 62
      %v1534 = vpop.permute.xlu0 %1533
      %1536 = vst.msk [vmem:[%s219 + $0x10] sm:$0xff] %vm740, %v1534
      %1537 = vrot.lane.b32.xlu0 %v1523, 61
      %v1538 = vpop.permute.xlu0 %1537
      %1540 = vst.msk [vmem:[%s219 + $0x10] sm:$0xff] %vm745, %v1538
      %1541 = vrot.lane.b32.xlu0 %v1523, 60
      %v1542 = vpop.permute.xlu0 %1541
      %1544 = vst.msk [vmem:[%s219 + $0x10] sm:$0xff] %vm750, %v1542
      %1545 = vrot.lane.b32.xlu0 %v1523, 59
      %v1546 = vpop.permute.xlu0 %1545
      %1548 = vst.msk [vmem:[%s219 + $0x10] sm:$0xff] %vm755, %v1546
      %1549 = vrot.lane.b32.xlu0 %v1523, 58
      %v1550 = vpop.permute.xlu0 %1549
      %1552 = vst.msk [vmem:[%s219 + $0x10] sm:$0xff] %vm760, %v1550
      %1553 = vrot.lane.b32.xlu0 %v1523, 57
      %v1554 = vpop.permute.xlu0 %1553
      %1556 = vst.msk [vmem:[%s219 + $0x10] sm:$0xff] %vm765, %v1554
      %v1557 = vld [vmem:[%s1363] sm:$0xf]
      %v1558 = vld [vmem:[%s1363 + $0x4] sm:$0xf]
      %s1559 = sadd.s32 %s246, 7
      %s1560 = smul.u32 %s1559, 2
      %s1561 = smul.addr %s1560, 4
      %s1562 = scalar_lea.vmem %s210, %s1561
      %v1563 = vld [vmem:[%s1562] sm:$0xf]
      %v1564 = vld [vmem:[%s1562 + $0x4] sm:$0xf]
      %v1567 = vunpack.c.l.b16 %v1557
      %v1568 = vunpack.c.l.b16 %v1558
      %v1569 = vpack.c.b16 %v1568, %v1567
      %1571 = vst.msk [vmem:[#allocation2] sm:$0xff] %vm264, %v1569
      %1572 = vrot.lane.b32.xlu0 %v1569, 127
      %v1573 = vpop.permute.xlu0 %1572
      %1575 = vst.msk [vmem:[#allocation2 + $0x8] sm:$0xff] %vm264, %v1573
      %1576 = vrot.lane.b32.xlu0 %v1569, 119
      %v1577 = vpop.permute.xlu0 %1576
      %1579 = vst.msk [vmem:[#allocation2 + $0x10] sm:$0xff] %vm264, %v1577
      %1580 = vrot.lane.b32.xlu0 %v1569, 118
      %v1581 = vpop.permute.xlu0 %1580
      %1583 = vst.msk [vmem:[#allocation2 + $0x18] sm:$0xff] %vm277, %v1581
      %v1586 = vunpack.c.l.b16 %v1563
      %v1587 = vunpack.c.l.b16 %v1564
      %v1588 = vpack.c.b16 %v1587, %v1586
      %1590 = vst.msk [vmem:[#allocation2 + $0x20] sm:$0xff] %vm264, %v1588
      %1591 = vrot.lane.b32.xlu0 %v1588, 127
      %v1592 = vpop.permute.xlu0 %1591
      %1594 = vst.msk [vmem:[#allocation2 + $0x28] sm:$0xff] %vm264, %v1592
      %1595 = vrot.lane.b32.xlu0 %v1588, 119
      %v1596 = vpop.permute.xlu0 %1595
      %1598 = vst.msk [vmem:[#allocation2 + $0x30] sm:$0xff] %vm264, %v1596
      %1599 = vrot.lane.b32.xlu0 %v1588, 118
      %v1600 = vpop.permute.xlu0 %1599
      %1602 = vst.msk [vmem:[#allocation2 + $0x38] sm:$0xff] %vm277, %v1600
      %v1603 = vld [vmem:[#allocation2] sm:$0xff]
      %v1604 = vld [vmem:[#allocation2 + $0x8] sm:$0xff]
      %v1605 = vld [vmem:[#allocation2 + $0x10] sm:$0xff]
      %v1606 = vld [vmem:[#allocation2 + $0x18] sm:$0xff]
      %v1607 = vld [vmem:[#allocation2 + $0x20] sm:$0xff]
      %v1608 = vld [vmem:[#allocation2 + $0x28] sm:$0xff]
      %v1609 = vld [vmem:[#allocation2 + $0x30] sm:$0xff]
      %v1610 = vld [vmem:[#allocation2 + $0x38] sm:$0xff]
      %1611 = vmatprep.subr.bf16.mxu0 0
      %1612 = vmatpush1.bf16.msra.mxu0 %v1603
      %1613 = vmatprep.subr.bf16.mxu0 0
      %1614 = vmatpush1.bf16.msra.mxu0 %v1604
      %1615 = vmatprep.subr.bf16.mxu0 0
      %1616 = vmatpush1.bf16.msra.mxu0 %v1605
      %1617 = vmatprep.subr.bf16.mxu0 0
      %1618 = vmatpush1.bf16.msra.mxu0 %v1606
      %1619 = vmatprep.subr.bf16.mxu0 0
      %1620 = vmatpush1.bf16.msra.mxu0 %v1607
      %1621 = vmatprep.subr.bf16.mxu0 0
      %1622 = vmatpush1.bf16.msra.mxu0 %v1608
      %1623 = vmatprep.subr.bf16.mxu0 0
      %1624 = vmatpush1.bf16.msra.mxu0 %v1609
      %1625 = vmatprep.subr.bf16.mxu0 0
      %1626 = vmatpush1.bf16.msra.mxu0 %v1610
      %1627 = vmatprep.subr.bf16.mxu0 0
      %1628 = vmatpush1.bf16.msra.mxu0 0
      %1629 = vmatprep.subr.bf16.mxu0 0
      %1630 = vmatpush1.bf16.msra.mxu0 0
      %1631 = vmatprep.subr.bf16.mxu0 0
      %1632 = vmatpush1.bf16.msra.mxu0 0
      %1633 = vmatprep.subr.bf16.mxu0 0
      %1634 = vmatpush1.bf16.msra.mxu0 0
      %1635 = vmatprep.subr.bf16.mxu0 0
      %1636 = vmatpush1.bf16.msra.mxu0 0
      %1637 = vmatprep.subr.bf16.mxu0 0
      %1638 = vmatpush1.bf16.msra.mxu0 0
      %1639 = vmatprep.subr.bf16.mxu0 0
      %1640 = vmatpush1.bf16.msra.mxu0 0
      %1641 = vmatprep.subr.bf16.mxu0 0
      %1642 = vmatpush1.bf16.msra.mxu0 0
      %1643 = vmatprep.mubr.bf16.mxu0 0
      %1644 = vmatmul.mubr.bf16.gmra.mrb[0].mxu0 %v362
      %v1645 = vpop.f32.mrb[0].mxu0
      %v1646 = vadd.f32 %v309, %v1645
      %v1647 = vpop.f32.mrb[0].mxu0
      %v1648 = vpop.f32.mrb[0].mxu0
      %v1649 = vadd.f32 %v314, %v1648
      %v1650 = vpop.f32.mrb[0].mxu0
      %1651 = vmatprep.mubr.bf16.mxu0 0
      %1652 = vmatmul.mubr.bf16.gmra.mrb[0].mxu0 %v363
      %v1653 = vpop.f32.mrb[0].mxu0
      %v1654 = vadd.f32 %v319, %v1653
      %v1655 = vpop.f32.mrb[0].mxu0
      %v1656 = vpop.f32.mrb[0].mxu0
      %v1657 = vadd.f32 %v324, %v1656
      %v1658 = vpop.f32.mrb[0].mxu0
      %1659 = vmatprep.mubr.bf16.mxu0 0
      %1660 = vmatmul.mubr.bf16.gmra.mrb[0].mxu0 %v364
      %v1661 = vpop.f32.mrb[0].mxu0
      %v1662 = vadd.f32 %v329, %v1661
      %v1663 = vpop.f32.mrb[0].mxu0
      %v1664 = vpop.f32.mrb[0].mxu0
      %v1665 = vadd.f32 %v334, %v1664
      %v1666 = vpop.f32.mrb[0].mxu0
      %1667 = vmatprep.mubr.bf16.mxu0 0
      %1668 = vmatmul.mubr.bf16.gmra.mrb[0].mxu0 %v365
      %v1669 = vpop.f32.mrb[0].mxu0
      %v1670 = vadd.f32 %v339, %v1669
      %v1671 = vpop.f32.mrb[0].mxu0
      %v1672 = vpop.f32.mrb[0].mxu0
      %v1673 = vadd.f32 %v344, %v1672
      %v1674 = vpop.f32.mrb[0].mxu0
      %1675 = vdwg.mxu0
      %v1676 = vmul.f32 %v1646, 0.2
      %v1677 = vmul.f32 %v1649, 0.2
      %v1678 = vmul.f32 %v1654, 0.2
      %v1679 = vmul.f32 %v1657, 0.2
      %v1680 = vmul.f32 %v1662, 0.2
      %v1681 = vmul.f32 %v1665, 0.2
      %v1682 = vmul.f32 %v1670, 0.2
      %v1683 = vmul.f32 %v1673, 0.2
      %v1684 = vmax.f32 %v1646, %v1676
      %v1685 = vmax.f32 %v1649, %v1677
      %v1686 = vmax.f32 %v1654, %v1678
      %v1687 = vmax.f32 %v1657, %v1679
      %v1688 = vmax.f32 %v1662, %v1680
      %v1689 = vmax.f32 %v1665, %v1681
      %v1690 = vmax.f32 %v1670, %v1682
      %v1691 = vmax.f32 %v1673, %v1683
      %v1692 = vmul.f32 %v1684, %v454
      %v1693 = vmul.f32 %v1685, %v459
      %v1694 = vmul.f32 %v1686, %v464
      %v1695 = vmul.f32 %v1687, %v469
      %v1696 = vmul.f32 %v1688, %v474
      %v1697 = vmul.f32 %v1689, %v479
      %v1698 = vmul.f32 %v1690, %v484
      %v1699 = vmul.f32 %v1691, %v489
      %v1700 = vmul.f32 %v1692, 0.2
      %v1701 = vmul.f32 %v1693, 0.2
      %v1702 = vmul.f32 %v1694, 0.2
      %v1703 = vmul.f32 %v1695, 0.2
      %v1704 = vmul.f32 %v1696, 0.2
      %v1705 = vmul.f32 %v1697, 0.2
      %v1706 = vmul.f32 %v1698, 0.2
      %v1707 = vmul.f32 %v1699, 0.2
      %v1708 = vmax.f32 %v1692, %v1700
      %v1709 = vmax.f32 %v1693, %v1701
      %v1710 = vmax.f32 %v1694, %v1702
      %v1711 = vmax.f32 %v1695, %v1703
      %v1712 = vmax.f32 %v1696, %v1704
      %v1713 = vmax.f32 %v1697, %v1705
      %v1714 = vmax.f32 %v1698, %v1706
      %v1715 = vmax.f32 %v1699, %v1707
      %v1716 = vmax.f32 %v1708, %v1709
      %v1717 = vmax.f32 %v1710, %v1711
      %v1718 = vmax.f32 %v1712, %v1713
      %v1719 = vmax.f32 %v1714, %v1715
      %v1720 = vmax.f32 %v1716, %v1717
      %v1721 = vmax.f32 %v1718, %v1719
      %v1722 = vmax.f32 %v1720, %v1721
      %1723 = vst.msk [vmem:[%s219 + $0x18] sm:$0xff] %vm522, %v1722
      %1725 = vrot.lane.b32.xlu0 %v1722, 127
      %v1726 = vpop.permute.xlu0 %1725
      %1728 = vst.msk [vmem:[%s219 + $0x18] sm:$0xff] %vm528, %v1726
      %1729 = vrot.lane.b32.xlu0 %v1722, 126
      %v1730 = vpop.permute.xlu0 %1729
      %1732 = vst.msk [vmem:[%s219 + $0x18] sm:$0xff] %vm533, %v1730
      %1733 = vrot.lane.b32.xlu0 %v1722, 125
      %v1734 = vpop.permute.xlu0 %1733
      %1736 = vst.msk [vmem:[%s219 + $0x18] sm:$0xff] %vm538, %v1734
      %1737 = vrot.lane.b32.xlu0 %v1722, 124
      %v1738 = vpop.permute.xlu0 %1737
      %1740 = vst.msk [vmem:[%s219 + $0x18] sm:$0xff] %vm543, %v1738
      %1741 = vrot.lane.b32.xlu0 %v1722, 123
      %v1742 = vpop.permute.xlu0 %1741
      %1744 = vst.msk [vmem:[%s219 + $0x18] sm:$0xff] %vm548, %v1742
      %1745 = vrot.lane.b32.xlu0 %v1722, 122
      %v1746 = vpop.permute.xlu0 %1745
      %1748 = vst.msk [vmem:[%s219 + $0x18] sm:$0xff] %vm553, %v1746
      %1749 = vrot.lane.b32.xlu0 %v1722, 121
      %v1750 = vpop.permute.xlu0 %1749
      %1752 = vst.msk [vmem:[%s219 + $0x18] sm:$0xff] %vm558, %v1750
      %v1753 = vld [vmem:[%s1562] sm:$0xf]
      %v1754 = vld [vmem:[%s1562 + $0x4] sm:$0xf]
      %s1755 = sadd.s32 %s246, 8
      %s1756 = smul.u32 %s1755, 2
      %s1757 = smul.addr %s1756, 4
      %s1758 = scalar_lea.vmem %s210, %s1757
      %v1759 = vld [vmem:[%s1758] sm:$0xf]
      %v1760 = vld [vmem:[%s1758 + $0x4] sm:$0xf]
      %v1763 = vunpack.c.l.b16 %v1753
      %v1764 = vunpack.c.l.b16 %v1754
      %v1765 = vpack.c.b16 %v1764, %v1763
      %1767 = vst.msk [vmem:[#allocation2] sm:$0xff] %vm264, %v1765
      %1768 = vrot.lane.b32.xlu0 %v1765, 127
      %v1769 = vpop.permute.xlu0 %1768
      %1771 = vst.msk [vmem:[#allocation2 + $0x8] sm:$0xff] %vm264, %v1769
      %1772 = vrot.lane.b32.xlu0 %v1765, 119
      %v1773 = vpop.permute.xlu0 %1772
      %1775 = vst.msk [vmem:[#allocation2 + $0x10] sm:$0xff] %vm264, %v1773
      %1776 = vrot.lane.b32.xlu0 %v1765, 118
      %v1777 = vpop.permute.xlu0 %1776
      %1779 = vst.msk [vmem:[#allocation2 + $0x18] sm:$0xff] %vm277, %v1777
      %v1782 = vunpack.c.l.b16 %v1759
      %v1783 = vunpack.c.l.b16 %v1760
      %v1784 = vpack.c.b16 %v1783, %v1782
      %1786 = vst.msk [vmem:[#allocation2 + $0x20] sm:$0xff] %vm264, %v1784
      %1787 = vrot.lane.b32.xlu0 %v1784, 127
      %v1788 = vpop.permute.xlu0 %1787
      %1790 = vst.msk [vmem:[#allocation2 + $0x28] sm:$0xff] %vm264, %v1788
      %1791 = vrot.lane.b32.xlu0 %v1784, 119
      %v1792 = vpop.permute.xlu0 %1791
      %1794 = vst.msk [vmem:[#allocation2 + $0x30] sm:$0xff] %vm264, %v1792
      %1795 = vrot.lane.b32.xlu0 %v1784, 118
      %v1796 = vpop.permute.xlu0 %1795
      %1798 = vst.msk [vmem:[#allocation2 + $0x38] sm:$0xff] %vm277, %v1796
      %v1799 = vld [vmem:[#allocation2] sm:$0xff]
      %v1800 = vld [vmem:[#allocation2 + $0x8] sm:$0xff]
      %v1801 = vld [vmem:[#allocation2 + $0x10] sm:$0xff]
      %v1802 = vld [vmem:[#allocation2 + $0x18] sm:$0xff]
      %v1803 = vld [vmem:[#allocation2 + $0x20] sm:$0xff]
      %v1804 = vld [vmem:[#allocation2 + $0x28] sm:$0xff]
      %v1805 = vld [vmem:[#allocation2 + $0x30] sm:$0xff]
      %v1806 = vld [vmem:[#allocation2 + $0x38] sm:$0xff]
      %1807 = vmatprep.subr.bf16.mxu0 0
      %1808 = vmatpush1.bf16.msra.mxu0 %v1799
      %1809 = vmatprep.subr.bf16.mxu0 0
      %1810 = vmatpush1.bf16.msra.mxu0 %v1800
      %1811 = vmatprep.subr.bf16.mxu0 0
      %1812 = vmatpush1.bf16.msra.mxu0 %v1801
      %1813 = vmatprep.subr.bf16.mxu0 0
      %1814 = vmatpush1.bf16.msra.mxu0 %v1802
      %1815 = vmatprep.subr.bf16.mxu0 0
      %1816 = vmatpush1.bf16.msra.mxu0 %v1803
      %1817 = vmatprep.subr.bf16.mxu0 0
      %1818 = vmatpush1.bf16.msra.mxu0 %v1804
      %1819 = vmatprep.subr.bf16.mxu0 0
      %1820 = vmatpush1.bf16.msra.mxu0 %v1805
      %1821 = vmatprep.subr.bf16.mxu0 0
      %1822 = vmatpush1.bf16.msra.mxu0 %v1806
      %1823 = vmatprep.subr.bf16.mxu0 0
      %1824 = vmatpush1.bf16.msra.mxu0 0
      %1825 = vmatprep.subr.bf16.mxu0 0
      %1826 = vmatpush1.bf16.msra.mxu0 0
      %1827 = vmatprep.subr.bf16.mxu0 0
      %1828 = vmatpush1.bf16.msra.mxu0 0
      %1829 = vmatprep.subr.bf16.mxu0 0
      %1830 = vmatpush1.bf16.msra.mxu0 0
      %1831 = vmatprep.subr.bf16.mxu0 0
      %1832 = vmatpush1.bf16.msra.mxu0 0
      %1833 = vmatprep.subr.bf16.mxu0 0
      %1834 = vmatpush1.bf16.msra.mxu0 0
      %1835 = vmatprep.subr.bf16.mxu0 0
      %1836 = vmatpush1.bf16.msra.mxu0 0
      %1837 = vmatprep.subr.bf16.mxu0 0
      %1838 = vmatpush1.bf16.msra.mxu0 0
      %1839 = vmatprep.mubr.bf16.mxu0 0
      %1840 = vmatmul.mubr.bf16.gmra.mrb[0].mxu0 %v362
      %v1841 = vpop.f32.mrb[0].mxu0
      %v1842 = vadd.f32 %v309, %v1841
      %v1843 = vpop.f32.mrb[0].mxu0
      %v1844 = vpop.f32.mrb[0].mxu0
      %v1845 = vadd.f32 %v314, %v1844
      %v1846 = vpop.f32.mrb[0].mxu0
      %1847 = vmatprep.mubr.bf16.mxu0 0
      %1848 = vmatmul.mubr.bf16.gmra.mrb[0].mxu0 %v363
      %v1849 = vpop.f32.mrb[0].mxu0
      %v1850 = vadd.f32 %v319, %v1849
      %v1851 = vpop.f32.mrb[0].mxu0
      %v1852 = vpop.f32.mrb[0].mxu0
      %v1853 = vadd.f32 %v324, %v1852
      %v1854 = vpop.f32.mrb[0].mxu0
      %1855 = vmatprep.mubr.bf16.mxu0 0
      %1856 = vmatmul.mubr.bf16.gmra.mrb[0].mxu0 %v364
      %v1857 = vpop.f32.mrb[0].mxu0
      %v1858 = vadd.f32 %v329, %v1857
      %v1859 = vpop.f32.mrb[0].mxu0
      %v1860 = vpop.f32.mrb[0].mxu0
      %v1861 = vadd.f32 %v334, %v1860
      %v1862 = vpop.f32.mrb[0].mxu0
      %1863 = vmatprep.mubr.bf16.mxu0 0
      %1864 = vmatmul.mubr.bf16.gmra.mrb[0].mxu0 %v365
      %v1865 = vpop.f32.mrb[0].mxu0
      %v1866 = vadd.f32 %v339, %v1865
      %v1867 = vpop.f32.mrb[0].mxu0
      %v1868 = vpop.f32.mrb[0].mxu0
      %v1869 = vadd.f32 %v344, %v1868
      %v1870 = vpop.f32.mrb[0].mxu0
      %1871 = vdwg.mxu0
      %v1872 = vmul.f32 %v1842, 0.2
      %v1873 = vmul.f32 %v1845, 0.2
      %v1874 = vmul.f32 %v1850, 0.2
      %v1875 = vmul.f32 %v1853, 0.2
      %v1876 = vmul.f32 %v1858, 0.2
      %v1877 = vmul.f32 %v1861, 0.2
      %v1878 = vmul.f32 %v1866, 0.2
      %v1879 = vmul.f32 %v1869, 0.2
      %v1880 = vmax.f32 %v1842, %v1872
      %v1881 = vmax.f32 %v1845, %v1873
      %v1882 = vmax.f32 %v1850, %v1874
      %v1883 = vmax.f32 %v1853, %v1875
      %v1884 = vmax.f32 %v1858, %v1876
      %v1885 = vmax.f32 %v1861, %v1877
      %v1886 = vmax.f32 %v1866, %v1878
      %v1887 = vmax.f32 %v1869, %v1879
      %v1888 = vmul.f32 %v1880, %v454
      %v1889 = vmul.f32 %v1881, %v459
      %v1890 = vmul.f32 %v1882, %v464
      %v1891 = vmul.f32 %v1883, %v469
      %v1892 = vmul.f32 %v1884, %v474
      %v1893 = vmul.f32 %v1885, %v479
      %v1894 = vmul.f32 %v1886, %v484
      %v1895 = vmul.f32 %v1887, %v489
      %v1896 = vmul.f32 %v1888, 0.2
      %v1897 = vmul.f32 %v1889, 0.2
      %v1898 = vmul.f32 %v1890, 0.2
      %v1899 = vmul.f32 %v1891, 0.2
      %v1900 = vmul.f32 %v1892, 0.2
      %v1901 = vmul.f32 %v1893, 0.2
      %v1902 = vmul.f32 %v1894, 0.2
      %v1903 = vmul.f32 %v1895, 0.2
      %v1904 = vmax.f32 %v1888, %v1896
      %v1905 = vmax.f32 %v1889, %v1897
      %v1906 = vmax.f32 %v1890, %v1898
      %v1907 = vmax.f32 %v1891, %v1899
      %v1908 = vmax.f32 %v1892, %v1900
      %v1909 = vmax.f32 %v1893, %v1901
      %v1910 = vmax.f32 %v1894, %v1902
      %v1911 = vmax.f32 %v1895, %v1903
      %v1912 = vmax.f32 %v1904, %v1905
      %v1913 = vmax.f32 %v1906, %v1907
      %v1914 = vmax.f32 %v1908, %v1909
      %v1915 = vmax.f32 %v1910, %v1911
      %v1916 = vmax.f32 %v1912, %v1913
      %v1917 = vmax.f32 %v1914, %v1915
      %v1918 = vmax.f32 %v1916, %v1917
      %1920 = vrot.lane.b32.xlu0 %v1918, 64
      %v1921 = vpop.permute.xlu0 %1920
      %1923 = vst.msk [vmem:[%s219 + $0x18] sm:$0xff] %vm730, %v1921
      %1924 = vrot.lane.b32.xlu0 %v1918, 63
      %v1925 = vpop.permute.xlu0 %1924
      %1927 = vst.msk [vmem:[%s219 + $0x18] sm:$0xff] %vm735, %v1925
      %1928 = vrot.lane.b32.xlu0 %v1918, 62
      %v1929 = vpop.permute.xlu0 %1928
      %1931 = vst.msk [vmem:[%s219 + $0x18] sm:$0xff] %vm740, %v1929
      %1932 = vrot.lane.b32.xlu0 %v1918, 61
      %v1933 = vpop.permute.xlu0 %1932
      %1935 = vst.msk [vmem:[%s219 + $0x18] sm:$0xff] %vm745, %v1933
      %1936 = vrot.lane.b32.xlu0 %v1918, 60
      %v1937 = vpop.permute.xlu0 %1936
      %1939 = vst.msk [vmem:[%s219 + $0x18] sm:$0xff] %vm750, %v1937
      %1940 = vrot.lane.b32.xlu0 %v1918, 59
      %v1941 = vpop.permute.xlu0 %1940
      %1943 = vst.msk [vmem:[%s219 + $0x18] sm:$0xff] %vm755, %v1941
      %1944 = vrot.lane.b32.xlu0 %v1918, 58
      %v1945 = vpop.permute.xlu0 %1944
      %1947 = vst.msk [vmem:[%s219 + $0x18] sm:$0xff] %vm760, %v1945
      %1948 = vrot.lane.b32.xlu0 %v1918, 57
      %v1949 = vpop.permute.xlu0 %1948
      %1951 = vst.msk [vmem:[%s219 + $0x18] sm:$0xff] %vm765, %v1949
      %s1952 = smul.u32 4, %s20
      %p1953 = scmp.lt.s32.totalorder %s19, 1
      %s1954 = scalar_select %p1953, %s19, 1
      %p1955 = scmp.lt.s32.totalorder %s1952, 3
      %s1956 = scalar_select %p1955, %s1952, 3
      %s1957 = smul.addr %s1954, 4
      %s1958 = sadd.s32 %s1956, %s1957
      %s1959 = smul.addr %s1958, 8
      %s1960 = scalar_lea.vmem %s4, %s1959
      // Predicated region
      $region37: #{model_forward.1} parent=35 // pred_check
        %p1961 = pneg %p136
      $region38: #{model_forward.1} parent=35 // pred_check_branch
        %1963 = sbr.rel (%p1961) target = $region40
      $region39: #{model_forward.1} parent=35 // pred_region
        %s1964 = smul.u32 4, %s20
      $region40: #{model_forward.1} parent=35 // pred_fallthru
        _
    $region36: #{model_forward.1} parent=5 // pred_fallthru
      _
    %p1965 = scmp.le.s32.totalorder 2, %s10
    // Predicated region
    $region41: #{model_forward.1} parent=5 // pred_check
      %p1966 = pneg %p1965
    $region42: #{model_forward.1} parent=5 // pred_check_branch
      %1968 = sbr.rel (%p1966) target = $region44
    $region43: #{model_forward.1} parent=5 // pred_region
      %s1969 = ssub.s32 %s10, 2
      // Predicated region
      $region45: #{model_forward.1} parent=43 // pred_check
        %p1970 = pneg %p142
      $region46: #{model_forward.1} parent=43 // pred_check_branch
        %1972 = sbr.rel (%p1970) target = $region48
      $region47: #{model_forward.1} parent=43 // pred_region
        %s1973 = smul.u32 4, %s22
        %p1974 = scmp.lt.s32.totalorder %s21, 1
        %s1975 = scalar_select %p1974, %s21, 1
        %p1976 = scmp.lt.s32.totalorder %s1973, 3
        %s1977 = scalar_select %p1976, %s1973, 3
        %s1978 = smul.addr %s1975, 4
        %s1979 = sadd.s32 %s1977, %s1978
        %s1980 = smul.addr %s1979, 8
        %s1981 = scalar_lea.vmem %s4, %s1980
      $region48: #{model_forward.1} parent=43 // pred_fallthru
        _
    $region44: #{model_forward.1} parent=5 // pred_fallthru
      _
  $region6: #{model_forward.1} parent=0 // loop_footer
    %s14 = sadd.s32 1, %s10
  $region7: #{model_forward.1} parent=0 // loop_footer_branch
    %9 = sbr.rel target = $region3
  $region8: #{model_forward.1} parent=0 // loop_exit
    _

</llo_original>
